<compile_context>
chip_gen: v5e
topology: v5e:2x2
jax: 0.10.0
libtpu: 0.0.40
codegen_flags: <defaults>
</compile_context>

<pallas_src>
import math
from functools import partial

import jax
import jax.numpy as jnp
from jax import lax
from jax.experimental import pallas as pl
from jax.experimental.pallas import tpu as pltpu

_MIB = 1024 * 1024


def _tpu_budget():
    """(vmem_limit_bytes, max_batch_tile) tuned per TPU generation."""
    try:
        cap = pltpu.get_tpu_info().vmem_capacity_bytes
    except Exception:
        cap = 128 * _MIB
    if cap <= 64 * _MIB:               # v7x: 64 MiB per TensorCore
        return 52 * _MIB, 4
    return 96 * _MIB, 8                # v5e / v6e: 128 MiB per TensorCore


def _pick_batch_tile(n, max_tile):
    """Largest divisor of n that is <= max_tile while keeping >= 2 grid steps."""
    best = 1
    for t in range(1, min(n, max_tile) + 1):
        if n % t == 0 and n // t >= 2:
            best = t
    return best


def _pick_mlp_chunk(hidden, target=1024):
    """Largest divisor of `hidden` that is <= target and a multiple of 128
    (falls back to the whole hidden dim for tiny/odd sizes)."""
    if hidden <= target:
        return hidden
    c = target - (target % 128)
    while c >= 128:
        if hidden % c == 0:
            return c
        c -= 128
    return hidden


# ---------------------------------------------------------------------------
# Pallas kernel: one ResidualAttentionBlock forward for a tile of the batch
# ---------------------------------------------------------------------------
def _resblock_kernel(x_ref,
                     ln1_w_ref, ln1_b_ref,
                     wq_ref, bq_ref, wk_ref, bk_ref, wv_ref, bv_ref,
                     wo_ref, bo_ref,
                     ln2_w_ref, ln2_b_ref,
                     wfc_ref, bfc_ref, wproj_ref, bproj_ref,
                     o_ref,
                     *, b_tile, seq_len, d_model, n_head, approx_softmax):
    B, L, D, H = b_tile, seq_len, d_model, n_head
    dh = D // H
    cdt = wq_ref.dtype            # MXU operand dtype (bf16 or f32); acc is f32

    x = x_ref[...].astype(jnp.float32).reshape(B * L, D)       # (BL, D)

    def layernorm(v, w_ref, b_ref):
        # PyTorch LayerNorm semantics: fp32 math, eps=1e-5, biased variance.
        mu = jnp.mean(v, axis=-1, keepdims=True)
        var = jnp.mean((v - mu) ** 2, axis=-1, keepdims=True)
        return (v - mu) * lax.rsqrt(var + 1e-5) * w_ref[...] + b_ref[...]

    # ---- Multi-head self attention on ln_1(x) ------------------------------
    h = layernorm(x, ln1_w_ref, ln1_b_ref).astype(cdt)          # (BL, D)
    # Weights are already (in, out) and 1/sqrt(dh) is folded into wq/bq.
    q = jnp.dot(h, wq_ref[...], preferred_element_type=jnp.float32) + bq_ref[...]
    k = jnp.dot(h, wk_ref[...], preferred_element_type=jnp.float32) + bk_ref[...]
    v = jnp.dot(h, wv_ref[...], preferred_element_type=jnp.float32) + bv_ref[...]

    # One head-transpose per Q/K/V slab (hoisted out of any per-batch loop),
    # then a single (B*H)-batched pair of einsums: the live set is one block
    # of scores/probs and there is no sublane-axis concatenate.
    def to_heads(t):                                            # (BL,D)->(BH,L,dh)
        t = t.reshape(B, L, H, dh).astype(cdt)
        return jnp.transpose(t, (0, 2, 1, 3)).reshape(B * H, L, dh)

    qh, kh, vh = to_heads(q), to_heads(k), to_heads(v)

    s = jnp.einsum("gld,gmd->glm", qh, kh,
                   preferred_element_type=jnp.float32)          # (BH, L, L)
    # TODO(synk): attn_mask is None in this module config; add the additive
    # (causal/text) mask to `s` here if one is ever needed.
    s = s - jnp.max(s, axis=-1, keepdims=True)
    p = jnp.exp(s)
    denom = jnp.sum(p, axis=-1, keepdims=True)
    if approx_softmax:
        p = p * pl.reciprocal(denom, approx=True)               # EUP slot
    else:
        p = p / denom                                           # exact, for validation
    ctx = jnp.einsum("glm,gmd->gld", p.astype(cdt), vh,
                     preferred_element_type=jnp.float32)        # (BH, L, dh)
    ctx = jnp.transpose(ctx.reshape(B, H, L, dh), (0, 2, 1, 3)).reshape(B * L, D)

    attn = jnp.dot(ctx.astype(cdt), wo_ref[...],
                   preferred_element_type=jnp.float32) + bo_ref[...]
    x = x + attn                                                # residual 1

    # ---- MLP on ln_2(x): hidden dim streamed in chunks ----------------------
    # wfc: (n_chunks, D, chunk), bfc: (n_chunks, 1, chunk), wproj: (n_chunks, chunk, D).
    # fc / QuickGELU intermediates only ever exist one (BL, chunk) block at a
    # time; the (BL, D) f32 accumulator is the fori_loop carry.
    h2 = layernorm(x, ln2_w_ref, ln2_b_ref).astype(cdt)
    n_chunks = wfc_ref.shape[0]

    def mlp_chunk(c, acc):
        fc = jnp.dot(h2, wfc_ref[c],
                     preferred_element_type=jnp.float32) + bfc_ref[c]   # (BL, chunk)
        g = fc * jax.nn.sigmoid(1.702 * fc)                     # QuickGELU (f32)
        return acc + jnp.dot(g.astype(cdt), wproj_ref[c],
                             preferred_element_type=jnp.float32)

    mlp = lax.fori_loop(0, n_chunks, mlp_chunk,
                        jnp.zeros((B * L, D), jnp.float32)) + bproj_ref[...]

    o_ref[...] = (x + mlp).reshape(B, L, D).astype(o_ref.dtype)  # residual 2


# ---------------------------------------------------------------------------
# Parameter preparation (one-time, host/XLA side)
# ---------------------------------------------------------------------------
def prepare_params(raw, *, d_model, n_head, param_dtype=jnp.float32,
                   mlp_chunk=None):
    """PyTorch-layout params -> kernel layout:
       * matmul weights pre-transposed to (in, out),
       * 1/sqrt(head_dim) folded into the Q projection (weights + bias),
       * MLP weights pre-split along the hidden dim into (n_chunks, ...) so the
         kernel streams the hidden dim with a simple first-axis index,
       * matmul weights optionally cast to bf16 (MXU operands); LN params and
         biases stay f32 (added in f32)."""
    D = d_model
    hidden = 4 * D
    if mlp_chunk is None:
        mlp_chunk = _pick_mlp_chunk(hidden)
    assert hidden % mlp_chunk == 0
    n_chunks = hidden // mlp_chunk

    scale = 1.0 / math.sqrt(D // n_head)
    f32 = lambda a: jnp.asarray(a, jnp.float32)
    w = lambda a: f32(a).T.astype(param_dtype)             # (out,in) -> (in,out)
    vec = lambda a, n: f32(a).reshape(1, n)

    wqkv = f32(raw["wqkv"])                                 # (3D, D)
    bqkv = f32(raw["bqkv"]).reshape(3 * D)

    wfc = f32(raw["wfc"]).T.reshape(D, n_chunks, mlp_chunk)          # (D,4D)->(D,nc,c)
    wfc = jnp.transpose(wfc, (1, 0, 2)).astype(param_dtype)          # (nc, D, c)
    bfc = f32(raw["bfc"]).reshape(n_chunks, 1, mlp_chunk)            # (nc, 1, c)
    wproj = f32(raw["wproj"]).T.reshape(n_chunks, mlp_chunk, D).astype(param_dtype)

    return {
        "ln1_w": vec(raw["ln1_w"], D), "ln1_b": vec(raw["ln1_b"], D),
        "wq": (wqkv[:D] * scale).T.astype(param_dtype),
        "bq": (bqkv[:D] * scale).reshape(1, D),
        "wk": w(wqkv[D:2 * D]),        "bk": bqkv[D:2 * D].reshape(1, D),
        "wv": w(wqkv[2 * D:]),         "bv": bqkv[2 * D:].reshape(1, D),
        "wo": w(raw["wo"]),            "bo": vec(raw["bo"], D),
        "ln2_w": vec(raw["ln2_w"], D), "ln2_b": vec(raw["ln2_b"], D),
        "wfc": wfc, "bfc": bfc,
        "wproj": wproj, "bproj": vec(raw["bproj"], D),
    }


# ---------------------------------------------------------------------------
# Wrapper
# ---------------------------------------------------------------------------
def residual_attention_block(x, params, *, d_model, n_head,
                             act_dtype=None, approx_softmax=True):
    """x: (L, N, D) -> (L, N, D).  `params` comes from prepare_params().
       act_dtype=jnp.bfloat16 halves activation DMA/VMEM (math stays f32)."""
    L, N, D = x.shape
    assert D == d_model and D % n_head == 0

    vmem_limit, max_tile = _tpu_budget()
    b_tile = _pick_batch_tile(N, max_tile)

    act_dt = act_dtype if act_dtype is not None else x.dtype
    # NOTE: callers that already hold (N, L, D) activations can skip these two
    # wrapper transposes entirely (each is a full HBM read+write in XLA).
    xb = jnp.transpose(x, (1, 0, 2)).astype(act_dt)        # (N, L, D)

    names = ("ln1_w", "ln1_b", "wq", "bq", "wk", "bk", "wv", "bv",
             "wo", "bo", "ln2_w", "ln2_b", "wfc", "bfc", "wproj", "bproj")
    weights = [params[n] for n in names]

    kernel = partial(_resblock_kernel, b_tile=b_tile, seq_len=L,
                     d_model=D, n_head=n_head, approx_softmax=approx_softmax)

    def weight_spec(a, single_buffer):
        # Grid-invariant weight blocks: same block index every step, so Pallas
        # only DMAs them once; single-buffering halves their VMEM footprint.
        idx = lambda n, nd=a.ndim: (0,) * nd
        if single_buffer:
            return pl.BlockSpec(a.shape, idx, pipeline_mode=pl.Buffered(1))
        return pl.BlockSpec(a.shape, idx)

    def call(single_buffer_weights):
        # TODO(synk): on v7x with f32 params / very large d_model, stream the
        # (n_chunks, D, chunk) MLP weights over an extra 'arbitrary' grid axis
        # (double-buffered BlockSpecs) instead of holding them whole in VMEM.
        return pl.pallas_call(
            kernel,
            out_shape=jax.ShapeDtypeStruct((N, L, D), act_dt),
            grid_spec=pltpu.PrefetchScalarGridSpec(
                num_scalar_prefetch=0,
                grid=(N // b_tile,),
                in_specs=[pl.BlockSpec((b_tile, L, D), lambda n: (n, 0, 0))]
                         + [weight_spec(a, single_buffer_weights) for a in weights],
                out_specs=pl.BlockSpec((b_tile, L, D), lambda n: (n, 0, 0)),
            ),
            compiler_params=pltpu.CompilerParams(
                dimension_semantics=("parallel",),
                vmem_limit_bytes=vmem_limit),
        )(xb, *weights)

    try:
        out = call(True)
    except Exception:
        # Fallback if pipeline_mode=pl.Buffered(1) is not supported by the
        # installed jax; default double-buffering is still correct.
        out = call(False)

    return jnp.transpose(out, (1, 0, 2)).astype(x.dtype)   # back to (L, N, D)


# ---------------------------------------------------------------------------
# Pure-JAX reference (PyTorch semantics, f32) for correctness checks
# ---------------------------------------------------------------------------
def _reference(x, raw, *, d_model, n_head):
    L, N, D = x.shape
    H, dh = n_head, d_model // n_head
    scale = 1.0 / math.sqrt(dh)

    def ln(v, w, b):
        mu = jnp.mean(v, -1, keepdims=True)
        var = jnp.mean((v - mu) ** 2, -1, keepdims=True)
        return (v - mu) / jnp.sqrt(var + 1e-5) * w + b

    h = ln(x, raw["ln1_w"], raw["ln1_b"])
    qkv = h @ raw["wqkv"].T + raw["bqkv"]                  # (L, N, 3D)
    q, k, v = jnp.split(qkv, 3, axis=-1)

    def heads(t):                                          # (L,N,D)->(N,H,L,dh)
        return t.reshape(L, N, H, dh).transpose(1, 2, 0, 3)

    qh, kh, vh = heads(q) * scale, heads(k), heads(v)
    s = jnp.einsum("nhld,nhmd->nhlm", qh, kh)
    p = jax.nn.softmax(s, axis=-1)
    a = jnp.einsum("nhlm,nhmd->nhld", p, vh)
    a = a.transpose(2, 0, 1, 3).reshape(L, N, D)
    a = a @ raw["wo"].T + raw["bo"]
    x = x + a
    h2 = ln(x, raw["ln2_w"], raw["ln2_b"])
    fc = h2 @ raw["wfc"].T + raw["bfc"]
    g = fc * jax.nn.sigmoid(1.702 * fc)
    return x + g @ raw["wproj"].T + raw["bproj"]


# ---------------------------------------------------------------------------
# Main
# ---------------------------------------------------------------------------
if __name__ == "__main__":
    L, N, D, H = 8, 4, 32, 4   # seq, batch, d_model, n_head

    key = jax.random.PRNGKey(0)
    ks = jax.random.split(key, 12)
    s = 0.05
    raw = {
        "ln1_w": 1.0 + 0.1 * jax.random.normal(ks[9], (D,), jnp.float32),
        "ln1_b": 0.1 * jax.random.normal(ks[10], (D,), jnp.float32),
        "wqkv": s * jax.random.normal(ks[0], (3 * D, D), jnp.float32),
        "bqkv": s * jax.random.normal(ks[1], (3 * D,), jnp.float32),
        "wo":   s * jax.random.normal(ks[2], (D, D), jnp.float32),
        "bo":   s * jax.random.normal(ks[3], (D,), jnp.float32),
        "ln2_w": 1.0 + 0.1 * jax.random.normal(ks[11], (D,), jnp.float32),
        "ln2_b": jnp.zeros((D,), jnp.float32),
        "wfc":  s * jax.random.normal(ks[4], (4 * D, D), jnp.float32),
        "bfc":  s * jax.random.normal(ks[5], (4 * D,), jnp.float32),
        "wproj": s * jax.random.normal(ks[6], (D, 4 * D), jnp.float32),
        "bproj": s * jax.random.normal(ks[7], (D,), jnp.float32),
    }
    x = jax.random.normal(ks[8], (L, N, D), jnp.float32)

    ref = _reference(x, raw, d_model=D, n_head=H)

    # f32 weights + exact softmax: tight check (only MXU/f32 op ordering).
    p32 = prepare_params(raw, d_model=D, n_head=H, param_dtype=jnp.float32)
    out32 = jax.block_until_ready(
        residual_attention_block(x, p32, d_model=D, n_head=H,
                                 approx_softmax=False))
    assert out32.shape == (L, N, D)
    assert jnp.allclose(out32, ref, atol=2e-3, rtol=2e-3), "f32 mismatch vs reference"

    # bf16 MXU operands (weights stored bf16, activations cast at the dots),
    # approx-reciprocal softmax (production config).
    pbf = prepare_params(raw, d_model=D, n_head=H, param_dtype=jnp.bfloat16)
    outbf = jax.block_until_ready(
        residual_attention_block(x, pbf, d_model=D, n_head=H))
    assert jnp.allclose(outbf, ref, atol=2e-2, rtol=2e-2), "bf16 mismatch vs reference"

    # bf16 activations at the pallas_call boundary (halves activation DMA/VMEM;
    # LN/softmax/QuickGELU/residual math stays f32 inside the kernel).
    outbf_act = jax.block_until_ready(
        residual_attention_block(x, pbf, d_model=D, n_head=H,
                                 act_dtype=jnp.bfloat16))
    assert jnp.allclose(outbf_act, ref, atol=5e-2, rtol=5e-2), \
        "bf16-activation mismatch vs reference"

    print("KERNEL_OK")
</pallas_src>

<mosaic_0001>
module attributes {stable_mosaic.version = 11 : i64} {
  func.func @_resblock_kernel(%arg0: i32, %arg1: memref<2x8x32xf32, #tpu.memory_space<vmem>>, %arg2: memref<1x32xf32, #tpu.memory_space<vmem>>, %arg3: memref<1x32xf32, #tpu.memory_space<vmem>>, %arg4: memref<32x32xf32, #tpu.memory_space<vmem>>, %arg5: memref<1x32xf32, #tpu.memory_space<vmem>>, %arg6: memref<32x32xf32, #tpu.memory_space<vmem>>, %arg7: memref<1x32xf32, #tpu.memory_space<vmem>>, %arg8: memref<32x32xf32, #tpu.memory_space<vmem>>, %arg9: memref<1x32xf32, #tpu.memory_space<vmem>>, %arg10: memref<32x32xf32, #tpu.memory_space<vmem>>, %arg11: memref<1x32xf32, #tpu.memory_space<vmem>>, %arg12: memref<1x32xf32, #tpu.memory_space<vmem>>, %arg13: memref<1x32xf32, #tpu.memory_space<vmem>>, %arg14: memref<1x32x128xf32, #tpu.memory_space<vmem>>, %arg15: memref<1x1x128xf32, #tpu.memory_space<vmem>>, %arg16: memref<1x128x32xf32, #tpu.memory_space<vmem>>, %arg17: memref<1x32xf32, #tpu.memory_space<vmem>>, %arg18: memref<2x8x32xf32, #tpu.memory_space<vmem>>) attributes {dimension_semantics = [#tpu.dimension_semantics<parallel>], iteration_bounds = array<i64: 2>, scalar_prefetch = 0 : i64, scratch_operands = 0 : i64, tpu.core_type = #tpu.core_type<tc>, window_params = [{transform_indices = @transform_0, window_bounds = array<i64: 2, 8, 32>}, {pipeline_mode = #tpu.pipeline_mode<synchronous>, transform_indices = @transform_1, window_bounds = array<i64: 1, 32>}, {pipeline_mode = #tpu.pipeline_mode<synchronous>, transform_indices = @transform_2, window_bounds = array<i64: 1, 32>}, {pipeline_mode = #tpu.pipeline_mode<synchronous>, transform_indices = @transform_3, window_bounds = array<i64: 32, 32>}, {pipeline_mode = #tpu.pipeline_mode<synchronous>, transform_indices = @transform_4, window_bounds = array<i64: 1, 32>}, {pipeline_mode = #tpu.pipeline_mode<synchronous>, transform_indices = @transform_5, window_bounds = array<i64: 32, 32>}, {pipeline_mode = #tpu.pipeline_mode<synchronous>, transform_indices = @transform_6, window_bounds = array<i64: 1, 32>}, {pipeline_mode = #tpu.pipeline_mode<synchronous>, transform_indices = @transform_7, window_bounds = array<i64: 32, 32>}, {pipeline_mode = #tpu.pipeline_mode<synchronous>, transform_indices = @transform_8, window_bounds = array<i64: 1, 32>}, {pipeline_mode = #tpu.pipeline_mode<synchronous>, transform_indices = @transform_9, window_bounds = array<i64: 32, 32>}, {pipeline_mode = #tpu.pipeline_mode<synchronous>, transform_indices = @transform_10, window_bounds = array<i64: 1, 32>}, {pipeline_mode = #tpu.pipeline_mode<synchronous>, transform_indices = @transform_11, window_bounds = array<i64: 1, 32>}, {pipeline_mode = #tpu.pipeline_mode<synchronous>, transform_indices = @transform_12, window_bounds = array<i64: 1, 32>}, {pipeline_mode = #tpu.pipeline_mode<synchronous>, transform_indices = @transform_13, window_bounds = array<i64: 1, 32, 128>}, {pipeline_mode = #tpu.pipeline_mode<synchronous>, transform_indices = @transform_14, window_bounds = array<i64: 1, 1, 128>}, {pipeline_mode = #tpu.pipeline_mode<synchronous>, transform_indices = @transform_15, window_bounds = array<i64: 1, 128, 32>}, {pipeline_mode = #tpu.pipeline_mode<synchronous>, transform_indices = @transform_16, window_bounds = array<i64: 1, 32>}, {transform_indices = @transform_17, window_bounds = array<i64: 2, 8, 32>}]} {
    %c0 = arith.constant 0 : index
    %c0_0 = arith.constant 0 : index
    %c0_1 = arith.constant 0 : index
    %0 = vector.load %arg1[%c0, %c0_0, %c0_1] : memref<2x8x32xf32, #tpu.memory_space<vmem>>, vector<2x8x32xf32>
    %1 = vector.shape_cast %0 : vector<2x8x32xf32> to vector<16x32xf32>
    %cst = arith.constant dense<0.000000e+00> : vector<16xf32>
    %2 = vector.multi_reduction <add>, %1, %cst [1] : vector<16x32xf32> to vector<16xf32>
    %3 = vector.shape_cast %2 : vector<16xf32> to vector<16x1xf32>
    %cst_2 = arith.constant 3.200000e+01 : f32
    %4 = vector.broadcast %cst_2 : f32 to vector<16x1xf32>
    %5 = arith.divf %3, %4 : vector<16x1xf32>
    %6 = vector.broadcast %5 : vector<16x1xf32> to vector<16x32xf32>
    %7 = arith.subf %1, %6 : vector<16x32xf32>
    %8 = arith.mulf %7, %7 : vector<16x32xf32>
    %cst_3 = arith.constant dense<0.000000e+00> : vector<16xf32>
    %9 = vector.multi_reduction <add>, %8, %cst_3 [1] : vector<16x32xf32> to vector<16xf32>
    %10 = vector.shape_cast %9 : vector<16xf32> to vector<16x1xf32>
    %cst_4 = arith.constant 3.200000e+01 : f32
    %11 = vector.broadcast %cst_4 : f32 to vector<16x1xf32>
    %12 = arith.divf %10, %11 : vector<16x1xf32>
    %13 = vector.broadcast %5 : vector<16x1xf32> to vector<16x32xf32>
    %14 = arith.subf %1, %13 : vector<16x32xf32>
    %cst_5 = arith.constant 9.99999974E-6 : f32
    %15 = vector.broadcast %cst_5 : f32 to vector<16x1xf32>
    %16 = arith.addf %12, %15 : vector<16x1xf32>
    %17 = math.rsqrt %16 : vector<16x1xf32>
    %18 = vector.broadcast %17 : vector<16x1xf32> to vector<16x32xf32>
    %19 = arith.mulf %14, %18 : vector<16x32xf32>
    %c0_6 = arith.constant 0 : index
    %c0_7 = arith.constant 0 : index
    %20 = vector.load %arg2[%c0_6, %c0_7] : memref<1x32xf32, #tpu.memory_space<vmem>>, vector<1x32xf32>
    %21 = vector.broadcast %20 : vector<1x32xf32> to vector<16x32xf32>
    %22 = arith.mulf %19, %21 : vector<16x32xf32>
    %c0_8 = arith.constant 0 : index
    %c0_9 = arith.constant 0 : index
    %23 = vector.load %arg3[%c0_8, %c0_9] : memref<1x32xf32, #tpu.memory_space<vmem>>, vector<1x32xf32>
    %24 = vector.broadcast %23 : vector<1x32xf32> to vector<16x32xf32>
    %25 = arith.addf %22, %24 : vector<16x32xf32>
    %c0_10 = arith.constant 0 : index
    %c0_11 = arith.constant 0 : index
    %26 = vector.load %arg4[%c0_10, %c0_11] : memref<32x32xf32, #tpu.memory_space<vmem>>, vector<32x32xf32>
    %cst_12 = arith.constant dense<0.000000e+00> : vector<16x32xf32>
    %27 = tpu.matmul %25, %26, %cst_12 {dimension_numbers = #tpu.dot_dimension_numbers<[1], [0], [0], [1], [0, 0, 1, 1], [], []>} : vector<16x32xf32>, vector<32x32xf32>, vector<16x32xf32> -> vector<16x32xf32>
    %c0_13 = arith.constant 0 : index
    %c0_14 = arith.constant 0 : index
    %28 = vector.load %arg5[%c0_13, %c0_14] : memref<1x32xf32, #tpu.memory_space<vmem>>, vector<1x32xf32>
    %29 = vector.broadcast %28 : vector<1x32xf32> to vector<16x32xf32>
    %30 = arith.addf %27, %29 : vector<16x32xf32>
    %c0_15 = arith.constant 0 : index
    %c0_16 = arith.constant 0 : index
    %31 = vector.load %arg6[%c0_15, %c0_16] : memref<32x32xf32, #tpu.memory_space<vmem>>, vector<32x32xf32>
    %cst_17 = arith.constant dense<0.000000e+00> : vector<16x32xf32>
    %32 = tpu.matmul %25, %31, %cst_17 {dimension_numbers = #tpu.dot_dimension_numbers<[1], [0], [0], [1], [0, 0, 1, 1], [], []>} : vector<16x32xf32>, vector<32x32xf32>, vector<16x32xf32> -> vector<16x32xf32>
    %c0_18 = arith.constant 0 : index
    %c0_19 = arith.constant 0 : index
    %33 = vector.load %arg7[%c0_18, %c0_19] : memref<1x32xf32, #tpu.memory_space<vmem>>, vector<1x32xf32>
    %34 = vector.broadcast %33 : vector<1x32xf32> to vector<16x32xf32>
    %35 = arith.addf %32, %34 : vector<16x32xf32>
    %c0_20 = arith.constant 0 : index
    %c0_21 = arith.constant 0 : index
    %36 = vector.load %arg8[%c0_20, %c0_21] : memref<32x32xf32, #tpu.memory_space<vmem>>, vector<32x32xf32>
    %cst_22 = arith.constant dense<0.000000e+00> : vector<16x32xf32>
    %37 = tpu.matmul %25, %36, %cst_22 {dimension_numbers = #tpu.dot_dimension_numbers<[1], [0], [0], [1], [0, 0, 1, 1], [], []>} : vector<16x32xf32>, vector<32x32xf32>, vector<16x32xf32> -> vector<16x32xf32>
    %c0_23 = arith.constant 0 : index
    %c0_24 = arith.constant 0 : index
    %38 = vector.load %arg9[%c0_23, %c0_24] : memref<1x32xf32, #tpu.memory_space<vmem>>, vector<1x32xf32>
    %39 = vector.broadcast %38 : vector<1x32xf32> to vector<16x32xf32>
    %40 = arith.addf %37, %39 : vector<16x32xf32>
    %41 = vector.shape_cast %30 : vector<16x32xf32> to vector<2x8x4x8xf32>
    %42 = tpu.transpose %41, [0, 2, 1, 3] : vector<2x8x4x8xf32> -> vector<2x4x8x8xf32>
    %43 = vector.shape_cast %42 : vector<2x4x8x8xf32> to vector<8x8x8xf32>
    %44 = vector.shape_cast %35 : vector<16x32xf32> to vector<2x8x4x8xf32>
    %45 = tpu.transpose %44, [0, 2, 1, 3] : vector<2x8x4x8xf32> -> vector<2x4x8x8xf32>
    %46 = vector.shape_cast %45 : vector<2x4x8x8xf32> to vector<8x8x8xf32>
    %47 = vector.shape_cast %40 : vector<16x32xf32> to vector<2x8x4x8xf32>
    %48 = tpu.transpose %47, [0, 2, 1, 3] : vector<2x8x4x8xf32> -> vector<2x4x8x8xf32>
    %49 = vector.shape_cast %48 : vector<2x4x8x8xf32> to vector<8x8x8xf32>
    "tpu.trace_start"() <{level = 10 : i32, message = "gld,gmd->glm"}> : () -> ()
    %cst_25 = arith.constant dense<0.000000e+00> : vector<8x8x8xf32>
    %50 = tpu.matmul %43, %46, %cst_25 {dimension_numbers = #tpu.dot_dimension_numbers<[2], [2], [1], [1], [0, 0, 0, 1, 1, 1], [0], [0]>} : vector<8x8x8xf32>, vector<8x8x8xf32>, vector<8x8x8xf32> -> vector<8x8x8xf32>
    "tpu.trace_stop"() : () -> ()
    %cst_26 = arith.constant dense<0xFF800000> : vector<8x8xf32>
    %51 = vector.multi_reduction <maximumf>, %50, %cst_26 [2] : vector<8x8x8xf32> to vector<8x8xf32>
    %52 = vector.shape_cast %51 : vector<8x8xf32> to vector<8x8x1xf32>
    %53 = vector.broadcast %52 : vector<8x8x1xf32> to vector<8x8x8xf32>
    %54 = arith.subf %50, %53 : vector<8x8x8xf32>
    %55 = math.exp %54 : vector<8x8x8xf32>
    %cst_27 = arith.constant dense<0.000000e+00> : vector<8x8xf32>
    %56 = vector.multi_reduction <add>, %55, %cst_27 [2] : vector<8x8x8xf32> to vector<8x8xf32>
    %57 = vector.shape_cast %56 : vector<8x8xf32> to vector<8x8x1xf32>
    %58 = vector.broadcast %57 : vector<8x8x1xf32> to vector<8x8x8xf32>
    %59 = arith.divf %55, %58 : vector<8x8x8xf32>
    "tpu.trace_start"() <{level = 10 : i32, message = "glm,gmd->gld"}> : () -> ()
    %cst_28 = arith.constant dense<0.000000e+00> : vector<8x8x8xf32>
    %60 = tpu.matmul %59, %49, %cst_28 {dimension_numbers = #tpu.dot_dimension_numbers<[2], [1], [1], [2], [0, 0, 0, 1, 1, 2], [0], [0]>} : vector<8x8x8xf32>, vector<8x8x8xf32>, vector<8x8x8xf32> -> vector<8x8x8xf32>
    "tpu.trace_stop"() : () -> ()
    %61 = vector.shape_cast %60 : vector<8x8x8xf32> to vector<2x4x8x8xf32>
    %62 = tpu.transpose %61, [0, 2, 1, 3] : vector<2x4x8x8xf32> -> vector<2x8x4x8xf32>
    %63 = vector.shape_cast %62 : vector<2x8x4x8xf32> to vector<16x32xf32>
    %c0_29 = arith.constant 0 : index
    %c0_30 = arith.constant 0 : index
    %64 = vector.load %arg10[%c0_29, %c0_30] : memref<32x32xf32, #tpu.memory_space<vmem>>, vector<32x32xf32>
    %cst_31 = arith.constant dense<0.000000e+00> : vector<16x32xf32>
    %65 = tpu.matmul %63, %64, %cst_31 {dimension_numbers = #tpu.dot_dimension_numbers<[1], [0], [0], [1], [0, 0, 1, 1], [], []>} : vector<16x32xf32>, vector<32x32xf32>, vector<16x32xf32> -> vector<16x32xf32>
    %c0_32 = arith.constant 0 : index
    %c0_33 = arith.constant 0 : index
    %66 = vector.load %arg11[%c0_32, %c0_33] : memref<1x32xf32, #tpu.memory_space<vmem>>, vector<1x32xf32>
    %67 = vector.broadcast %66 : vector<1x32xf32> to vector<16x32xf32>
    %68 = arith.addf %65, %67 : vector<16x32xf32>
    %69 = arith.addf %1, %68 : vector<16x32xf32>
    %cst_34 = arith.constant dense<0.000000e+00> : vector<16xf32>
    %70 = vector.multi_reduction <add>, %69, %cst_34 [1] : vector<16x32xf32> to vector<16xf32>
    %71 = vector.shape_cast %70 : vector<16xf32> to vector<16x1xf32>
    %cst_35 = arith.constant 3.200000e+01 : f32
    %72 = vector.broadcast %cst_35 : f32 to vector<16x1xf32>
    %73 = arith.divf %71, %72 : vector<16x1xf32>
    %74 = vector.broadcast %73 : vector<16x1xf32> to vector<16x32xf32>
    %75 = arith.subf %69, %74 : vector<16x32xf32>
    %76 = arith.mulf %75, %75 : vector<16x32xf32>
    %cst_36 = arith.constant dense<0.000000e+00> : vector<16xf32>
    %77 = vector.multi_reduction <add>, %76, %cst_36 [1] : vector<16x32xf32> to vector<16xf32>
    %78 = vector.shape_cast %77 : vector<16xf32> to vector<16x1xf32>
    %cst_37 = arith.constant 3.200000e+01 : f32
    %79 = vector.broadcast %cst_37 : f32 to vector<16x1xf32>
    %80 = arith.divf %78, %79 : vector<16x1xf32>
    %81 = vector.broadcast %73 : vector<16x1xf32> to vector<16x32xf32>
    %82 = arith.subf %69, %81 : vector<16x32xf32>
    %cst_38 = arith.constant 9.99999974E-6 : f32
    %83 = vector.broadcast %cst_38 : f32 to vector<16x1xf32>
    %84 = arith.addf %80, %83 : vector<16x1xf32>
    %85 = math.rsqrt %84 : vector<16x1xf32>
    %86 = vector.broadcast %85 : vector<16x1xf32> to vector<16x32xf32>
    %87 = arith.mulf %82, %86 : vector<16x32xf32>
    %c0_39 = arith.constant 0 : index
    %c0_40 = arith.constant 0 : index
    %88 = vector.load %arg12[%c0_39, %c0_40] : memref<1x32xf32, #tpu.memory_space<vmem>>, vector<1x32xf32>
    %89 = vector.broadcast %88 : vector<1x32xf32> to vector<16x32xf32>
    %90 = arith.mulf %87, %89 : vector<16x32xf32>
    %c0_41 = arith.constant 0 : index
    %c0_42 = arith.constant 0 : index
    %91 = vector.load %arg13[%c0_41, %c0_42] : memref<1x32xf32, #tpu.memory_space<vmem>>, vector<1x32xf32>
    %92 = vector.broadcast %91 : vector<1x32xf32> to vector<16x32xf32>
    %93 = arith.addf %90, %92 : vector<16x32xf32>
    %cst_43 = arith.constant 0.000000e+00 : f32
    %94 = vector.broadcast %cst_43 : f32 to vector<16x32xf32>
    %c0_i32 = arith.constant 0 : i32
    %95 = arith.index_cast %c0_i32 : i32 to index
    %c0_44 = arith.constant 0 : index
    %c0_45 = arith.constant 0 : index
    %96 = vector.load %arg14[%95, %c0_44, %c0_45] : memref<1x32x128xf32, #tpu.memory_space<vmem>>, vector<1x32x128xf32>
    %97 = vector.shape_cast %96 : vector<1x32x128xf32> to vector<32x128xf32>
    %cst_46 = arith.constant dense<0.000000e+00> : vector<16x128xf32>
    %98 = tpu.matmul %93, %97, %cst_46 {dimension_numbers = #tpu.dot_dimension_numbers<[1], [0], [0], [1], [0, 0, 1, 1], [], []>} : vector<16x32xf32>, vector<32x128xf32>, vector<16x128xf32> -> vector<16x128xf32>
    %99 = arith.index_cast %c0_i32 : i32 to index
    %c0_47 = arith.constant 0 : index
    %c0_48 = arith.constant 0 : index
    %100 = vector.load %arg15[%99, %c0_47, %c0_48] : memref<1x1x128xf32, #tpu.memory_space<vmem>>, vector<1x1x128xf32>
    %101 = vector.shape_cast %100 : vector<1x1x128xf32> to vector<1x128xf32>
    %102 = vector.broadcast %101 : vector<1x128xf32> to vector<16x128xf32>
    %103 = arith.addf %98, %102 : vector<16x128xf32>
    %cst_49 = arith.constant 1.702000e+00 : f32
    %104 = vector.broadcast %cst_49 : f32 to vector<16x128xf32>
    %105 = arith.mulf %104, %103 : vector<16x128xf32>
    %106 = arith.negf %105 : vector<16x128xf32>
    %107 = math.exp %106 : vector<16x128xf32>
    %cst_50 = arith.constant 1.000000e+00 : f32
    %108 = vector.broadcast %cst_50 : f32 to vector<16x128xf32>
    %109 = arith.addf %108, %107 : vector<16x128xf32>
    %110 = arith.divf %108, %109 : vector<16x128xf32>
    %111 = arith.mulf %103, %110 : vector<16x128xf32>
    %112 = arith.index_cast %c0_i32 : i32 to index
    %c0_51 = arith.constant 0 : index
    %c0_52 = arith.constant 0 : index
    %113 = vector.load %arg16[%112, %c0_51, %c0_52] : memref<1x128x32xf32, #tpu.memory_space<vmem>>, vector<1x128x32xf32>
    %114 = vector.shape_cast %113 : vector<1x128x32xf32> to vector<128x32xf32>
    %cst_53 = arith.constant dense<0.000000e+00> : vector<16x32xf32>
    %115 = tpu.matmul %111, %114, %cst_53 {dimension_numbers = #tpu.dot_dimension_numbers<[1], [0], [0], [1], [0, 0, 1, 1], [], []>} : vector<16x128xf32>, vector<128x32xf32>, vector<16x32xf32> -> vector<16x32xf32>
    %116 = arith.addf %94, %115 : vector<16x32xf32>
    %c1_i32 = arith.constant 1 : i32
    %c0_54 = arith.constant 0 : index
    %c0_55 = arith.constant 0 : index
    %117 = vector.load %arg17[%c0_54, %c0_55] : memref<1x32xf32, #tpu.memory_space<vmem>>, vector<1x32xf32>
    %118 = vector.broadcast %117 : vector<1x32xf32> to vector<16x32xf32>
    %119 = arith.addf %116, %118 : vector<16x32xf32>
    %120 = arith.addf %69, %119 : vector<16x32xf32>
    %121 = vector.shape_cast %120 : vector<16x32xf32> to vector<2x8x32xf32>
    %c0_56 = arith.constant 0 : index
    %c0_57 = arith.constant 0 : index
    %c0_58 = arith.constant 0 : index
    %122 = vector.load %arg18[%c0_56, %c0_57, %c0_58] : memref<2x8x32xf32, #tpu.memory_space<vmem>>, vector<2x8x32xf32>
    tpu.vector_store %arg18[%c0_56, %c0_57, %c0_58], %121 {strides = array<i32>} : memref<2x8x32xf32, #tpu.memory_space<vmem>>, vector<2x8x32xf32>,
    return
  }
  func.func @transform_0(%arg0: i32) -> (i32, i32, i32) {
    %c0_i32 = arith.constant 0 : i32
    %c0_i32_0 = arith.constant 0 : i32
    %c0_i32_1 = arith.constant 0 : i32
    return %arg0, %c0_i32, %c0_i32_0 : i32, i32, i32
  }
  func.func @transform_1(%arg0: i32) -> (i32, i32) {
    %c0_i32 = arith.constant 0 : i32
    %c0_i32_0 = arith.constant 0 : i32
    %c0_i32_1 = arith.constant 0 : i32
    return %c0_i32, %c0_i32_0 : i32, i32
  }
  func.func @transform_2(%arg0: i32) -> (i32, i32) {
    %c0_i32 = arith.constant 0 : i32
    %c0_i32_0 = arith.constant 0 : i32
    %c0_i32_1 = arith.constant 0 : i32
    return %c0_i32, %c0_i32_0 : i32, i32
  }
  func.func @transform_3(%arg0: i32) -> (i32, i32) {
    %c0_i32 = arith.constant 0 : i32
    %c0_i32_0 = arith.constant 0 : i32
    %c0_i32_1 = arith.constant 0 : i32
    return %c0_i32, %c0_i32_0 : i32, i32
  }
  func.func @transform_4(%arg0: i32) -> (i32, i32) {
    %c0_i32 = arith.constant 0 : i32
    %c0_i32_0 = arith.constant 0 : i32
    %c0_i32_1 = arith.constant 0 : i32
    return %c0_i32, %c0_i32_0 : i32, i32
  }
  func.func @transform_5(%arg0: i32) -> (i32, i32) {
    %c0_i32 = arith.constant 0 : i32
    %c0_i32_0 = arith.constant 0 : i32
    %c0_i32_1 = arith.constant 0 : i32
    return %c0_i32, %c0_i32_0 : i32, i32
  }
  func.func @transform_6(%arg0: i32) -> (i32, i32) {
    %c0_i32 = arith.constant 0 : i32
    %c0_i32_0 = arith.constant 0 : i32
    %c0_i32_1 = arith.constant 0 : i32
    return %c0_i32, %c0_i32_0 : i32, i32
  }
  func.func @transform_7(%arg0: i32) -> (i32, i32) {
    %c0_i32 = arith.constant 0 : i32
    %c0_i32_0 = arith.constant 0 : i32
    %c0_i32_1 = arith.constant 0 : i32
    return %c0_i32, %c0_i32_0 : i32, i32
  }
  func.func @transform_8(%arg0: i32) -> (i32, i32) {
    %c0_i32 = arith.constant 0 : i32
    %c0_i32_0 = arith.constant 0 : i32
    %c0_i32_1 = arith.constant 0 : i32
    return %c0_i32, %c0_i32_0 : i32, i32
  }
  func.func @transform_9(%arg0: i32) -> (i32, i32) {
    %c0_i32 = arith.constant 0 : i32
    %c0_i32_0 = arith.constant 0 : i32
    %c0_i32_1 = arith.constant 0 : i32
    return %c0_i32, %c0_i32_0 : i32, i32
  }
  func.func @transform_10(%arg0: i32) -> (i32, i32) {
    %c0_i32 = arith.constant 0 : i32
    %c0_i32_0 = arith.constant 0 : i32
    %c0_i32_1 = arith.constant 0 : i32
    return %c0_i32, %c0_i32_0 : i32, i32
  }
  func.func @transform_11(%arg0: i32) -> (i32, i32) {
    %c0_i32 = arith.constant 0 : i32
    %c0_i32_0 = arith.constant 0 : i32
    %c0_i32_1 = arith.constant 0 : i32
    return %c0_i32, %c0_i32_0 : i32, i32
  }
  func.func @transform_12(%arg0: i32) -> (i32, i32) {
    %c0_i32 = arith.constant 0 : i32
    %c0_i32_0 = arith.constant 0 : i32
    %c0_i32_1 = arith.constant 0 : i32
    return %c0_i32, %c0_i32_0 : i32, i32
  }
  func.func @transform_13(%arg0: i32) -> (i32, i32, i32) {
    %c0_i32 = arith.constant 0 : i32
    %c0_i32_0 = arith.constant 0 : i32
    %c0_i32_1 = arith.constant 0 : i32
    %c0_i32_2 = arith.constant 0 : i32
    return %c0_i32, %c0_i32_0, %c0_i32_1 : i32, i32, i32
  }
  func.func @transform_14(%arg0: i32) -> (i32, i32, i32) {
    %c0_i32 = arith.constant 0 : i32
    %c0_i32_0 = arith.constant 0 : i32
    %c0_i32_1 = arith.constant 0 : i32
    %c0_i32_2 = arith.constant 0 : i32
    return %c0_i32, %c0_i32_0, %c0_i32_1 : i32, i32, i32
  }
  func.func @transform_15(%arg0: i32) -> (i32, i32, i32) {
    %c0_i32 = arith.constant 0 : i32
    %c0_i32_0 = arith.constant 0 : i32
    %c0_i32_1 = arith.constant 0 : i32
    %c0_i32_2 = arith.constant 0 : i32
    return %c0_i32, %c0_i32_0, %c0_i32_1 : i32, i32, i32
  }
  func.func @transform_16(%arg0: i32) -> (i32, i32) {
    %c0_i32 = arith.constant 0 : i32
    %c0_i32_0 = arith.constant 0 : i32
    %c0_i32_1 = arith.constant 0 : i32
    return %c0_i32, %c0_i32_0 : i32, i32
  }
  func.func @transform_17(%arg0: i32) -> (i32, i32, i32) {
    %c0_i32 = arith.constant 0 : i32
    %c0_i32_0 = arith.constant 0 : i32
    %c0_i32_1 = arith.constant 0 : i32
    return %arg0, %c0_i32, %c0_i32_0 : i32, i32, i32
  }
}

module attributes {stable_mosaic.version = 11 : i64} {
  func.func @_resblock_kernel(%arg0: i32, %arg1: memref<2x8x32xf32, #tpu.memory_space<vmem>>, %arg2: memref<1x32xf32, #tpu.memory_space<vmem>>, %arg3: memref<1x32xf32, #tpu.memory_space<vmem>>, %arg4: memref<32x32xf32, #tpu.memory_space<vmem>>, %arg5: memref<1x32xf32, #tpu.memory_space<vmem>>, %arg6: memref<32x32xf32, #tpu.memory_space<vmem>>, %arg7: memref<1x32xf32, #tpu.memory_space<vmem>>, %arg8: memref<32x32xf32, #tpu.memory_space<vmem>>, %arg9: memref<1x32xf32, #tpu.memory_space<vmem>>, %arg10: memref<32x32xf32, #tpu.memory_space<vmem>>, %arg11: memref<1x32xf32, #tpu.memory_space<vmem>>, %arg12: memref<1x32xf32, #tpu.memory_space<vmem>>, %arg13: memref<1x32xf32, #tpu.memory_space<vmem>>, %arg14: memref<1x32x128xf32, #tpu.memory_space<vmem>>, %arg15: memref<1x1x128xf32, #tpu.memory_space<vmem>>, %arg16: memref<1x128x32xf32, #tpu.memory_space<vmem>>, %arg17: memref<1x32xf32, #tpu.memory_space<vmem>>, %arg18: memref<2x8x32xf32, #tpu.memory_space<vmem>>) attributes {dimension_semantics = [#tpu.dimension_semantics<parallel>], iteration_bounds = array<i64: 2>, scalar_prefetch = 0 : i64, scratch_operands = 0 : i64, tpu.core_type = #tpu.core_type<tc>, window_params = [{transform_indices = @transform_0, window_bounds = array<i64: 2, 8, 32>}, {pipeline_mode = #tpu.pipeline_mode<synchronous>, transform_indices = @transform_1, window_bounds = array<i64: 1, 32>}, {pipeline_mode = #tpu.pipeline_mode<synchronous>, transform_indices = @transform_2, window_bounds = array<i64: 1, 32>}, {pipeline_mode = #tpu.pipeline_mode<synchronous>, transform_indices = @transform_3, window_bounds = array<i64: 32, 32>}, {pipeline_mode = #tpu.pipeline_mode<synchronous>, transform_indices = @transform_4, window_bounds = array<i64: 1, 32>}, {pipeline_mode = #tpu.pipeline_mode<synchronous>, transform_indices = @transform_5, window_bounds = array<i64: 32, 32>}, {pipeline_mode = #tpu.pipeline_mode<synchronous>, transform_indices = @transform_6, window_bounds = array<i64: 1, 32>}, {pipeline_mode = #tpu.pipeline_mode<synchronous>, transform_indices = @transform_7, window_bounds = array<i64: 32, 32>}, {pipeline_mode = #tpu.pipeline_mode<synchronous>, transform_indices = @transform_8, window_bounds = array<i64: 1, 32>}, {pipeline_mode = #tpu.pipeline_mode<synchronous>, transform_indices = @transform_9, window_bounds = array<i64: 32, 32>}, {pipeline_mode = #tpu.pipeline_mode<synchronous>, transform_indices = @transform_10, window_bounds = array<i64: 1, 32>}, {pipeline_mode = #tpu.pipeline_mode<synchronous>, transform_indices = @transform_11, window_bounds = array<i64: 1, 32>}, {pipeline_mode = #tpu.pipeline_mode<synchronous>, transform_indices = @transform_12, window_bounds = array<i64: 1, 32>}, {pipeline_mode = #tpu.pipeline_mode<synchronous>, transform_indices = @transform_13, window_bounds = array<i64: 1, 32, 128>}, {pipeline_mode = #tpu.pipeline_mode<synchronous>, transform_indices = @transform_14, window_bounds = array<i64: 1, 1, 128>}, {pipeline_mode = #tpu.pipeline_mode<synchronous>, transform_indices = @transform_15, window_bounds = array<i64: 1, 128, 32>}, {pipeline_mode = #tpu.pipeline_mode<synchronous>, transform_indices = @transform_16, window_bounds = array<i64: 1, 32>}, {transform_indices = @transform_17, window_bounds = array<i64: 2, 8, 32>}]} {
    %c0 = arith.constant 0 : index
    %c0_0 = arith.constant 0 : index
    %c0_1 = arith.constant 0 : index
    %0 = vector.load %arg1[%c0, %c0_0, %c0_1] : memref<2x8x32xf32, #tpu.memory_space<vmem>>, vector<2x8x32xf32>
    %1 = vector.shape_cast %0 : vector<2x8x32xf32> to vector<16x32xf32>
    %cst = arith.constant dense<0.000000e+00> : vector<16xf32>
    %2 = vector.multi_reduction <add>, %1, %cst [1] : vector<16x32xf32> to vector<16xf32>
    %3 = vector.shape_cast %2 : vector<16xf32> to vector<16x1xf32>
    %cst_2 = arith.constant 3.200000e+01 : f32
    %4 = vector.broadcast %cst_2 : f32 to vector<16x1xf32>
    %5 = arith.divf %3, %4 : vector<16x1xf32>
    %6 = vector.broadcast %5 : vector<16x1xf32> to vector<16x32xf32>
    %7 = arith.subf %1, %6 : vector<16x32xf32>
    %8 = arith.mulf %7, %7 : vector<16x32xf32>
    %cst_3 = arith.constant dense<0.000000e+00> : vector<16xf32>
    %9 = vector.multi_reduction <add>, %8, %cst_3 [1] : vector<16x32xf32> to vector<16xf32>
    %10 = vector.shape_cast %9 : vector<16xf32> to vector<16x1xf32>
    %cst_4 = arith.constant 3.200000e+01 : f32
    %11 = vector.broadcast %cst_4 : f32 to vector<16x1xf32>
    %12 = arith.divf %10, %11 : vector<16x1xf32>
    %13 = vector.broadcast %5 : vector<16x1xf32> to vector<16x32xf32>
    %14 = arith.subf %1, %13 : vector<16x32xf32>
    %cst_5 = arith.constant 9.99999974E-6 : f32
    %15 = vector.broadcast %cst_5 : f32 to vector<16x1xf32>
    %16 = arith.addf %12, %15 : vector<16x1xf32>
    %17 = math.rsqrt %16 : vector<16x1xf32>
    %18 = vector.broadcast %17 : vector<16x1xf32> to vector<16x32xf32>
    %19 = arith.mulf %14, %18 : vector<16x32xf32>
    %c0_6 = arith.constant 0 : index
    %c0_7 = arith.constant 0 : index
    %20 = vector.load %arg2[%c0_6, %c0_7] : memref<1x32xf32, #tpu.memory_space<vmem>>, vector<1x32xf32>
    %21 = vector.broadcast %20 : vector<1x32xf32> to vector<16x32xf32>
    %22 = arith.mulf %19, %21 : vector<16x32xf32>
    %c0_8 = arith.constant 0 : index
    %c0_9 = arith.constant 0 : index
    %23 = vector.load %arg3[%c0_8, %c0_9] : memref<1x32xf32, #tpu.memory_space<vmem>>, vector<1x32xf32>
    %24 = vector.broadcast %23 : vector<1x32xf32> to vector<16x32xf32>
    %25 = arith.addf %22, %24 : vector<16x32xf32>
    %c0_10 = arith.constant 0 : index
    %c0_11 = arith.constant 0 : index
    %26 = vector.load %arg4[%c0_10, %c0_11] : memref<32x32xf32, #tpu.memory_space<vmem>>, vector<32x32xf32>
    %cst_12 = arith.constant dense<0.000000e+00> : vector<16x32xf32>
    %27 = tpu.matmul %25, %26, %cst_12 {dimension_numbers = #tpu.dot_dimension_numbers<[1], [0], [0], [1], [0, 0, 1, 1], [], []>} : vector<16x32xf32>, vector<32x32xf32>, vector<16x32xf32> -> vector<16x32xf32>
    %c0_13 = arith.constant 0 : index
    %c0_14 = arith.constant 0 : index
    %28 = vector.load %arg5[%c0_13, %c0_14] : memref<1x32xf32, #tpu.memory_space<vmem>>, vector<1x32xf32>
    %29 = vector.broadcast %28 : vector<1x32xf32> to vector<16x32xf32>
    %30 = arith.addf %27, %29 : vector<16x32xf32>
    %c0_15 = arith.constant 0 : index
    %c0_16 = arith.constant 0 : index
    %31 = vector.load %arg6[%c0_15, %c0_16] : memref<32x32xf32, #tpu.memory_space<vmem>>, vector<32x32xf32>
    %cst_17 = arith.constant dense<0.000000e+00> : vector<16x32xf32>
    %32 = tpu.matmul %25, %31, %cst_17 {dimension_numbers = #tpu.dot_dimension_numbers<[1], [0], [0], [1], [0, 0, 1, 1], [], []>} : vector<16x32xf32>, vector<32x32xf32>, vector<16x32xf32> -> vector<16x32xf32>
    %c0_18 = arith.constant 0 : index
    %c0_19 = arith.constant 0 : index
    %33 = vector.load %arg7[%c0_18, %c0_19] : memref<1x32xf32, #tpu.memory_space<vmem>>, vector<1x32xf32>
    %34 = vector.broadcast %33 : vector<1x32xf32> to vector<16x32xf32>
    %35 = arith.addf %32, %34 : vector<16x32xf32>
    %c0_20 = arith.constant 0 : index
    %c0_21 = arith.constant 0 : index
    %36 = vector.load %arg8[%c0_20, %c0_21] : memref<32x32xf32, #tpu.memory_space<vmem>>, vector<32x32xf32>
    %cst_22 = arith.constant dense<0.000000e+00> : vector<16x32xf32>
    %37 = tpu.matmul %25, %36, %cst_22 {dimension_numbers = #tpu.dot_dimension_numbers<[1], [0], [0], [1], [0, 0, 1, 1], [], []>} : vector<16x32xf32>, vector<32x32xf32>, vector<16x32xf32> -> vector<16x32xf32>
    %c0_23 = arith.constant 0 : index
    %c0_24 = arith.constant 0 : index
    %38 = vector.load %arg9[%c0_23, %c0_24] : memref<1x32xf32, #tpu.memory_space<vmem>>, vector<1x32xf32>
    %39 = vector.broadcast %38 : vector<1x32xf32> to vector<16x32xf32>
    %40 = arith.addf %37, %39 : vector<16x32xf32>
    %41 = vector.shape_cast %30 : vector<16x32xf32> to vector<2x8x4x8xf32>
    %42 = tpu.transpose %41, [0, 2, 1, 3] : vector<2x8x4x8xf32> -> vector<2x4x8x8xf32>
    %43 = vector.shape_cast %42 : vector<2x4x8x8xf32> to vector<8x8x8xf32>
    %44 = vector.shape_cast %35 : vector<16x32xf32> to vector<2x8x4x8xf32>
    %45 = tpu.transpose %44, [0, 2, 1, 3] : vector<2x8x4x8xf32> -> vector<2x4x8x8xf32>
    %46 = vector.shape_cast %45 : vector<2x4x8x8xf32> to vector<8x8x8xf32>
    %47 = vector.shape_cast %40 : vector<16x32xf32> to vector<2x8x4x8xf32>
    %48 = tpu.transpose %47, [0, 2, 1, 3] : vector<2x8x4x8xf32> -> vector<2x4x8x8xf32>
    %49 = vector.shape_cast %48 : vector<2x4x8x8xf32> to vector<8x8x8xf32>
    "tpu.trace_start"() <{level = 10 : i32, message = "gld,gmd->glm"}> : () -> ()
    %cst_25 = arith.constant dense<0.000000e+00> : vector<8x8x8xf32>
    %50 = tpu.matmul %43, %46, %cst_25 {dimension_numbers = #tpu.dot_dimension_numbers<[2], [2], [1], [1], [0, 0, 0, 1, 1, 1], [0], [0]>} : vector<8x8x8xf32>, vector<8x8x8xf32>, vector<8x8x8xf32> -> vector<8x8x8xf32>
    "tpu.trace_stop"() : () -> ()
    %cst_26 = arith.constant dense<0xFF800000> : vector<8x8xf32>
    %51 = vector.multi_reduction <maximumf>, %50, %cst_26 [2] : vector<8x8x8xf32> to vector<8x8xf32>
    %52 = vector.shape_cast %51 : vector<8x8xf32> to vector<8x8x1xf32>
    %53 = vector.broadcast %52 : vector<8x8x1xf32> to vector<8x8x8xf32>
    %54 = arith.subf %50, %53 : vector<8x8x8xf32>
    %55 = math.exp %54 : vector<8x8x8xf32>
    %cst_27 = arith.constant dense<0.000000e+00> : vector<8x8xf32>
    %56 = vector.multi_reduction <add>, %55, %cst_27 [2] : vector<8x8x8xf32> to vector<8x8xf32>
    %57 = vector.shape_cast %56 : vector<8x8xf32> to vector<8x8x1xf32>
    %58 = vector.broadcast %57 : vector<8x8x1xf32> to vector<8x8x8xf32>
    %59 = arith.divf %55, %58 : vector<8x8x8xf32>
    "tpu.trace_start"() <{level = 10 : i32, message = "glm,gmd->gld"}> : () -> ()
    %cst_28 = arith.constant dense<0.000000e+00> : vector<8x8x8xf32>
    %60 = tpu.matmul %59, %49, %cst_28 {dimension_numbers = #tpu.dot_dimension_numbers<[2], [1], [1], [2], [0, 0, 0, 1, 1, 2], [0], [0]>} : vector<8x8x8xf32>, vector<8x8x8xf32>, vector<8x8x8xf32> -> vector<8x8x8xf32>
    "tpu.trace_stop"() : () -> ()
    %61 = vector.shape_cast %60 : vector<8x8x8xf32> to vector<2x4x8x8xf32>
    %62 = tpu.transpose %61, [0, 2, 1, 3] : vector<2x4x8x8xf32> -> vector<2x8x4x8xf32>
    %63 = vector.shape_cast %62 : vector<2x8x4x8xf32> to vector<16x32xf32>
    %c0_29 = arith.constant 0 : index
    %c0_30 = arith.constant 0 : index
    %64 = vector.load %arg10[%c0_29, %c0_30] : memref<32x32xf32, #tpu.memory_space<vmem>>, vector<32x32xf32>
    %cst_31 = arith.constant dense<0.000000e+00> : vector<16x32xf32>
    %65 = tpu.matmul %63, %64, %cst_31 {dimension_numbers = #tpu.dot_dimension_numbers<[1], [0], [0], [1], [0, 0, 1, 1], [], []>} : vector<16x32xf32>, vector<32x32xf32>, vector<16x32xf32> -> vector<16x32xf32>
    %c0_32 = arith.constant 0 : index
    %c0_33 = arith.constant 0 : index
    %66 = vector.load %arg11[%c0_32, %c0_33] : memref<1x32xf32, #tpu.memory_space<vmem>>, vector<1x32xf32>
    %67 = vector.broadcast %66 : vector<1x32xf32> to vector<16x32xf32>
    %68 = arith.addf %65, %67 : vector<16x32xf32>
    %69 = arith.addf %1, %68 : vector<16x32xf32>
    %cst_34 = arith.constant dense<0.000000e+00> : vector<16xf32>
    %70 = vector.multi_reduction <add>, %69, %cst_34 [1] : vector<16x32xf32> to vector<16xf32>
    %71 = vector.shape_cast %70 : vector<16xf32> to vector<16x1xf32>
    %cst_35 = arith.constant 3.200000e+01 : f32
    %72 = vector.broadcast %cst_35 : f32 to vector<16x1xf32>
    %73 = arith.divf %71, %72 : vector<16x1xf32>
    %74 = vector.broadcast %73 : vector<16x1xf32> to vector<16x32xf32>
    %75 = arith.subf %69, %74 : vector<16x32xf32>
    %76 = arith.mulf %75, %75 : vector<16x32xf32>
    %cst_36 = arith.constant dense<0.000000e+00> : vector<16xf32>
    %77 = vector.multi_reduction <add>, %76, %cst_36 [1] : vector<16x32xf32> to vector<16xf32>
    %78 = vector.shape_cast %77 : vector<16xf32> to vector<16x1xf32>
    %cst_37 = arith.constant 3.200000e+01 : f32
    %79 = vector.broadcast %cst_37 : f32 to vector<16x1xf32>
    %80 = arith.divf %78, %79 : vector<16x1xf32>
    %81 = vector.broadcast %73 : vector<16x1xf32> to vector<16x32xf32>
    %82 = arith.subf %69, %81 : vector<16x32xf32>
    %cst_38 = arith.constant 9.99999974E-6 : f32
    %83 = vector.broadcast %cst_38 : f32 to vector<16x1xf32>
    %84 = arith.addf %80, %83 : vector<16x1xf32>
    %85 = math.rsqrt %84 : vector<16x1xf32>
    %86 = vector.broadcast %85 : vector<16x1xf32> to vector<16x32xf32>
    %87 = arith.mulf %82, %86 : vector<16x32xf32>
    %c0_39 = arith.constant 0 : index
    %c0_40 = arith.constant 0 : index
    %88 = vector.load %arg12[%c0_39, %c0_40] : memref<1x32xf32, #tpu.memory_space<vmem>>, vector<1x32xf32>
    %89 = vector.broadcast %88 : vector<1x32xf32> to vector<16x32xf32>
    %90 = arith.mulf %87, %89 : vector<16x32xf32>
    %c0_41 = arith.constant 0 : index
    %c0_42 = arith.constant 0 : index
    %91 = vector.load %arg13[%c0_41, %c0_42] : memref<1x32xf32, #tpu.memory_space<vmem>>, vector<1x32xf32>
    %92 = vector.broadcast %91 : vector<1x32xf32> to vector<16x32xf32>
    %93 = arith.addf %90, %92 : vector<16x32xf32>
    %cst_43 = arith.constant 0.000000e+00 : f32
    %94 = vector.broadcast %cst_43 : f32 to vector<16x32xf32>
    %c0_i32 = arith.constant 0 : i32
    %95 = arith.index_cast %c0_i32 : i32 to index
    %c0_44 = arith.constant 0 : index
    %c0_45 = arith.constant 0 : index
    %96 = vector.load %arg14[%95, %c0_44, %c0_45] : memref<1x32x128xf32, #tpu.memory_space<vmem>>, vector<1x32x128xf32>
    %97 = vector.shape_cast %96 : vector<1x32x128xf32> to vector<32x128xf32>
    %cst_46 = arith.constant dense<0.000000e+00> : vector<16x128xf32>
    %98 = tpu.matmul %93, %97, %cst_46 {dimension_numbers = #tpu.dot_dimension_numbers<[1], [0], [0], [1], [0, 0, 1, 1], [], []>} : vector<16x32xf32>, vector<32x128xf32>, vector<16x128xf32> -> vector<16x128xf32>
    %99 = arith.index_cast %c0_i32 : i32 to index
    %c0_47 = arith.constant 0 : index
    %c0_48 = arith.constant 0 : index
    %100 = vector.load %arg15[%99, %c0_47, %c0_48] : memref<1x1x128xf32, #tpu.memory_space<vmem>>, vector<1x1x128xf32>
    %101 = vector.shape_cast %100 : vector<1x1x128xf32> to vector<1x128xf32>
    %102 = vector.broadcast %101 : vector<1x128xf32> to vector<16x128xf32>
    %103 = arith.addf %98, %102 : vector<16x128xf32>
    %cst_49 = arith.constant 1.702000e+00 : f32
    %104 = vector.broadcast %cst_49 : f32 to vector<16x128xf32>
    %105 = arith.mulf %104, %103 : vector<16x128xf32>
    %106 = arith.negf %105 : vector<16x128xf32>
    %107 = math.exp %106 : vector<16x128xf32>
    %cst_50 = arith.constant 1.000000e+00 : f32
    %108 = vector.broadcast %cst_50 : f32 to vector<16x128xf32>
    %109 = arith.addf %108, %107 : vector<16x128xf32>
    %110 = arith.divf %108, %109 : vector<16x128xf32>
    %111 = arith.mulf %103, %110 : vector<16x128xf32>
    %112 = arith.index_cast %c0_i32 : i32 to index
    %c0_51 = arith.constant 0 : index
    %c0_52 = arith.constant 0 : index
    %113 = vector.load %arg16[%112, %c0_51, %c0_52] : memref<1x128x32xf32, #tpu.memory_space<vmem>>, vector<1x128x32xf32>
    %114 = vector.shape_cast %113 : vector<1x128x32xf32> to vector<128x32xf32>
    %cst_53 = arith.constant dense<0.000000e+00> : vector<16x32xf32>
    %115 = tpu.matmul %111, %114, %cst_53 {dimension_numbers = #tpu.dot_dimension_numbers<[1], [0], [0], [1], [0, 0, 1, 1], [], []>} : vector<16x128xf32>, vector<128x32xf32>, vector<16x32xf32> -> vector<16x32xf32>
    %116 = arith.addf %94, %115 : vector<16x32xf32>
    %c1_i32 = arith.constant 1 : i32
    %c0_54 = arith.constant 0 : index
    %c0_55 = arith.constant 0 : index
    %117 = vector.load %arg17[%c0_54, %c0_55] : memref<1x32xf32, #tpu.memory_space<vmem>>, vector<1x32xf32>
    %118 = vector.broadcast %117 : vector<1x32xf32> to vector<16x32xf32>
    %119 = arith.addf %116, %118 : vector<16x32xf32>
    %120 = arith.addf %69, %119 : vector<16x32xf32>
    %121 = vector.shape_cast %120 : vector<16x32xf32> to vector<2x8x32xf32>
    %c0_56 = arith.constant 0 : index
    %c0_57 = arith.constant 0 : index
    %c0_58 = arith.constant 0 : index
    %122 = vector.load %arg18[%c0_56, %c0_57, %c0_58] : memref<2x8x32xf32, #tpu.memory_space<vmem>>, vector<2x8x32xf32>
    tpu.vector_store %arg18[%c0_56, %c0_57, %c0_58], %121 {strides = array<i32>} : memref<2x8x32xf32, #tpu.memory_space<vmem>>, vector<2x8x32xf32>,
    return
  }
  func.func @transform_0(%arg0: i32) -> (i32, i32, i32) {
    %c0_i32 = arith.constant 0 : i32
    %c0_i32_0 = arith.constant 0 : i32
    %c0_i32_1 = arith.constant 0 : i32
    return %arg0, %c0_i32, %c0_i32_0 : i32, i32, i32
  }
  func.func @transform_1(%arg0: i32) -> (i32, i32) {
    %c0_i32 = arith.constant 0 : i32
    %c0_i32_0 = arith.constant 0 : i32
    %c0_i32_1 = arith.constant 0 : i32
    return %c0_i32, %c0_i32_0 : i32, i32
  }
  func.func @transform_2(%arg0: i32) -> (i32, i32) {
    %c0_i32 = arith.constant 0 : i32
    %c0_i32_0 = arith.constant 0 : i32
    %c0_i32_1 = arith.constant 0 : i32
    return %c0_i32, %c0_i32_0 : i32, i32
  }
  func.func @transform_3(%arg0: i32) -> (i32, i32) {
    %c0_i32 = arith.constant 0 : i32
    %c0_i32_0 = arith.constant 0 : i32
    %c0_i32_1 = arith.constant 0 : i32
    return %c0_i32, %c0_i32_0 : i32, i32
  }
  func.func @transform_4(%arg0: i32) -> (i32, i32) {
    %c0_i32 = arith.constant 0 : i32
    %c0_i32_0 = arith.constant 0 : i32
    %c0_i32_1 = arith.constant 0 : i32
    return %c0_i32, %c0_i32_0 : i32, i32
  }
  func.func @transform_5(%arg0: i32) -> (i32, i32) {
    %c0_i32 = arith.constant 0 : i32
    %c0_i32_0 = arith.constant 0 : i32
    %c0_i32_1 = arith.constant 0 : i32
    return %c0_i32, %c0_i32_0 : i32, i32
  }
  func.func @transform_6(%arg0: i32) -> (i32, i32) {
    %c0_i32 = arith.constant 0 : i32
    %c0_i32_0 = arith.constant 0 : i32
    %c0_i32_1 = arith.constant 0 : i32
    return %c0_i32, %c0_i32_0 : i32, i32
  }
  func.func @transform_7(%arg0: i32) -> (i32, i32) {
    %c0_i32 = arith.constant 0 : i32
    %c0_i32_0 = arith.constant 0 : i32
    %c0_i32_1 = arith.constant 0 : i32
    return %c0_i32, %c0_i32_0 : i32, i32
  }
  func.func @transform_8(%arg0: i32) -> (i32, i32) {
    %c0_i32 = arith.constant 0 : i32
    %c0_i32_0 = arith.constant 0 : i32
    %c0_i32_1 = arith.constant 0 : i32
    return %c0_i32, %c0_i32_0 : i32, i32
  }
  func.func @transform_9(%arg0: i32) -> (i32, i32) {
    %c0_i32 = arith.constant 0 : i32
    %c0_i32_0 = arith.constant 0 : i32
    %c0_i32_1 = arith.constant 0 : i32
    return %c0_i32, %c0_i32_0 : i32, i32
  }
  func.func @transform_10(%arg0: i32) -> (i32, i32) {
    %c0_i32 = arith.constant 0 : i32
    %c0_i32_0 = arith.constant 0 : i32
    %c0_i32_1 = arith.constant 0 : i32
    return %c0_i32, %c0_i32_0 : i32, i32
  }
  func.func @transform_11(%arg0: i32) -> (i32, i32) {
    %c0_i32 = arith.constant 0 : i32
    %c0_i32_0 = arith.constant 0 : i32
    %c0_i32_1 = arith.constant 0 : i32
    return %c0_i32, %c0_i32_0 : i32, i32
  }
  func.func @transform_12(%arg0: i32) -> (i32, i32) {
    %c0_i32 = arith.constant 0 : i32
    %c0_i32_0 = arith.constant 0 : i32
    %c0_i32_1 = arith.constant 0 : i32
    return %c0_i32, %c0_i32_0 : i32, i32
  }
  func.func @transform_13(%arg0: i32) -> (i32, i32, i32) {
    %c0_i32 = arith.constant 0 : i32
    %c0_i32_0 = arith.constant 0 : i32
    %c0_i32_1 = arith.constant 0 : i32
    %c0_i32_2 = arith.constant 0 : i32
    return %c0_i32, %c0_i32_0, %c0_i32_1 : i32, i32, i32
  }
  func.func @transform_14(%arg0: i32) -> (i32, i32, i32) {
    %c0_i32 = arith.constant 0 : i32
    %c0_i32_0 = arith.constant 0 : i32
    %c0_i32_1 = arith.constant 0 : i32
    %c0_i32_2 = arith.constant 0 : i32
    return %c0_i32, %c0_i32_0, %c0_i32_1 : i32, i32, i32
  }
  func.func @transform_15(%arg0: i32) -> (i32, i32, i32) {
    %c0_i32 = arith.constant 0 : i32
    %c0_i32_0 = arith.constant 0 : i32
    %c0_i32_1 = arith.constant 0 : i32
    %c0_i32_2 = arith.constant 0 : i32
    return %c0_i32, %c0_i32_0, %c0_i32_1 : i32, i32, i32
  }
  func.func @transform_16(%arg0: i32) -> (i32, i32) {
    %c0_i32 = arith.constant 0 : i32
    %c0_i32_0 = arith.constant 0 : i32
    %c0_i32_1 = arith.constant 0 : i32
    return %c0_i32, %c0_i32_0 : i32, i32
  }
  func.func @transform_17(%arg0: i32) -> (i32, i32, i32) {
    %c0_i32 = arith.constant 0 : i32
    %c0_i32_0 = arith.constant 0 : i32
    %c0_i32_1 = arith.constant 0 : i32
    return %arg0, %c0_i32, %c0_i32_0 : i32, i32, i32
  }
}

</mosaic_0001>

<llo_original>
// kernel: tpu_custom_call.1
$region0: #{tpu_custom_call.1}
  #allocation0 [shape = 'u32[]', space=smem, size = 0x4, offset = 0x4, fixed_abs, tag = 'smem constant byte address 0x4 - core index']
  #allocation1 [shape = 'u32[72,128]{1,0:T(1,128)}', space=vmem, size = 0x9000, scoped, tag = 'internal scratch']
  %s0 = inlined_call_operand.vmem [shape: f32[4,8,32], index: 0, kind: input, shape index: {}]
  %s1 = inlined_call_operand.hbm [shape: f32[1,32], index: 1, kind: input, shape index: {}]
  %s2 = inlined_call_operand.vmem [shape: f32[1,32], index: 2, kind: input, shape index: {}]
  %s3 = inlined_call_operand.vmem [shape: f32[32,32], index: 3, kind: input, shape index: {}]
  %s4 = inlined_call_operand.vmem [shape: f32[1,32], index: 4, kind: input, shape index: {}]
  %s5 = inlined_call_operand.vmem [shape: f32[32,32], index: 5, kind: input, shape index: {}]
  %s6 = inlined_call_operand.vmem [shape: f32[1,32], index: 6, kind: input, shape index: {}]
  %s7 = inlined_call_operand.vmem [shape: f32[32,32], index: 7, kind: input, shape index: {}]
  %s8 = inlined_call_operand.vmem [shape: f32[1,32], index: 8, kind: input, shape index: {}]
  %s9 = inlined_call_operand.vmem [shape: f32[32,32], index: 9, kind: input, shape index: {}]
  %s10 = inlined_call_operand.vmem [shape: f32[1,32], index: 10, kind: input, shape index: {}]
  %s11 = inlined_call_operand.vmem [shape: f32[1,32], index: 11, kind: input, shape index: {}]
  %s12 = inlined_call_operand.vmem [shape: f32[1,32], index: 12, kind: input, shape index: {}]
  %s13 = inlined_call_operand.hbm [shape: f32[1,32,128], index: 13, kind: input, shape index: {}]
  %s14 = inlined_call_operand.vmem [shape: f32[1,1,128], index: 14, kind: input, shape index: {}]
  %s15 = inlined_call_operand.vmem [shape: f32[1,128,32], index: 15, kind: input, shape index: {}]
  %s16 = inlined_call_operand.vmem [shape: f32[1,32], index: 16, kind: input, shape index: {}]
  %s17 = inlined_call_operand.hbm [shape: f32[4,8,32], index: 17, kind: output, shape index: {}]
  %s18 = sld [smem:[#allocation0]]
  $region109: #{tpu_custom_call.1} parent=0
    _
  %s20 = ssub.s32 1, %s18
  %s21 = scalar_select 0, %s20, %s18
  $region1: #{tpu_custom_call.1} parent=0
    #allocation2 [shape = 'u8[512]{0}', space=vmem, size = 0x400, scoped, tag = 'input window, operand 1, single buffered']
    #allocation3 [shape = 's32[2]{0}', space=sflag, size = 0x8, scoped, tag = 'scoped memory for tpu_custom_call.1']
    #allocation4 [shape = 's32[2]{0}', space=sflag, size = 0x8, scoped, tag = 'scoped memory for tpu_custom_call.1']
    #allocation5 [shape = 'u8[16384]{0}', space=vmem, size = 0x4000, scoped, tag = 'input window, operand 13, single buffered']
    #allocation6 [shape = 's32[1]{0}', space=sflag, size = 0x4, scoped, tag = 'scoped memory for tpu_custom_call.1']
    #allocation7 [shape = 'u8[16384]{0}', space=vmem, size = 0x4000, scoped, tag = 'output window, operand 0']
    %22 = vsyncpa [#allocation3], 0
    %23 = vsyncpa [#allocation6], 0
    %24 = vsyncpa [#allocation4], 0
    %s25 = scalar_lea.sflag [#allocation4], 1
    %26 = vsyncpa %s25, 0
    loop: start=0, step=1, limit=4
    $region2: #{tpu_custom_call.1} parent=1 // loop_pre_header
      _
    $region3: #{tpu_custom_call.1} parent=1 // loop_header
      %s28 = sphi 0, %s32
      %p29 = scmp.ge.s32.totalorder %s28, 4
      %s38 = sphi 0, %s40
      %s41 = sphi 0, %s38
      %s42 = sphi 0, %s41
      %s58 = sphi 0, %s42
      %s62 = sphi 0, %s62
      %s64 = sphi 0, %s62
      %s65 = sphi 0, %s64
      %s79 = sphi 0, %s65
      %s83 = sphi 0, %s83
      %s85 = sphi 0, %s83
      %s86 = sphi 0, %s85
      %s100 = sphi 0, %s86
      %s104 = sphi 0, %s104
      %s106 = sphi 0, %s104
      %s107 = sphi 0, %s106
      %s121 = sphi 0, %s107
      %s125 = sphi 0, %s125
      %s127 = sphi 0, %s125
      %s128 = sphi 0, %s127
      %s142 = sphi 0, %s128
      %s146 = sphi 0, %s146
      %s148 = sphi 0, %s146
      %s149 = sphi 0, %s148
      %s163 = sphi 0, %s149
      %s167 = sphi 0, %s167
      %s169 = sphi 0, %s167
      %s170 = sphi 0, %s169
      %s184 = sphi 0, %s170
      %s188 = sphi 0, %s188
      %s190 = sphi 0, %s188
      %s191 = sphi 0, %s190
      %s205 = sphi 0, %s191
      %s209 = sphi 0, %s209
      %s211 = sphi 0, %s209
      %s212 = sphi 0, %s211
      %s226 = sphi 0, %s212
      %s230 = sphi 0, %s230
      %s232 = sphi 0, %s230
      %s233 = sphi 0, %s232
      %s247 = sphi 0, %s233
      %s251 = sphi 0, %s251
      %s253 = sphi 0, %s251
      %s254 = sphi 0, %s253
      %s268 = sphi 0, %s254
      %s272 = sphi 0, %s272
      %s274 = sphi 0, %s272
      %s275 = sphi 0, %s274
      %s289 = sphi 0, %s275
      %s293 = sphi 0, %s293
      %s295 = sphi 0, %s293
      %s296 = sphi 0, %s295
      %s310 = sphi 0, %s296
      %s314 = sphi 0, %s314
      %s316 = sphi 0, %s314
      %s317 = sphi 0, %s316
      %s331 = sphi 0, %s317
      %s335 = sphi 0, %s335
      %s337 = sphi 0, %s335
      %s338 = sphi 0, %s337
      %s352 = sphi 0, %s338
      %s356 = sphi 0, %s356
      %s358 = sphi 0, %s356
      %s359 = sphi 0, %s358
      %s373 = sphi 0, %s359
      %s377 = sphi 0, %s377
      %s379 = sphi 0, %s377
      %s380 = sphi 0, %s379
      %s394 = sphi 0, %s380
      %s400 = sphi 0, %s402
      %s403 = sphi 0, %s400
      %s404 = sphi 0, %s403
      %s420 = sphi 0, %s404
    $region4: #{tpu_custom_call.1} parent=1 // loop_header_branch
      %31 = sbr.rel (%p29) target = $region8
    $region5: #{tpu_custom_call.1} parent=1 // loop_body
      %s33 = ssub.s32 %s28, 1
      %s34 = ssub.s32 %s28, 2
      %s35 = sadd.s32 %s28, 1
      %s36 = ssub.s32 %s28, %s35
      %p37 = scmp.eq.s32.totalorder %s36, 0
      %s39 = sadd.s32 %s38, 1
      %s40 = scalar_select %p37, %s38, %s39
      %p43 = pneg %p37
      %p44 = scmp.eq.s32.totalorder %s28, 1
      %p45 = por %p43, %p44
      %p46 = scmp.ne.s32.totalorder %s38, %s41
      %p47 = scmp.eq.s32.totalorder %s28, 0
      %p48 = por %p46, %p47
      %p49 = scmp.ne.s32.totalorder %s38, %s41
      %p50 = scmp.eq.s32.totalorder %s33, 1
      %p51 = por %p49, %p50
      %p52 = scmp.ne.s32.totalorder %s41, %s42
      %p53 = scmp.eq.s32.totalorder %s33, 0
      %p54 = por %p52, %p53
      %p55 = scmp.ne.s32.totalorder %s41, %s42
      %p56 = scmp.eq.s32.totalorder %s34, 1
      %p57 = por %p55, %p56
      %p59 = scmp.ne.s32.totalorder %s42, %s58
      %p60 = scmp.eq.s32.totalorder %s34, 0
      %p61 = por %p59, %p60
      %s63 = sadd.s32 %s62, 1
      %p66 = scmp.eq.s32.totalorder %s28, 1
      %p67 = scmp.ne.s32.totalorder %s62, %s64
      %p68 = scmp.eq.s32.totalorder %s28, 0
      %p69 = por %p67, %p68
      %p70 = scmp.ne.s32.totalorder %s62, %s64
      %p71 = scmp.eq.s32.totalorder %s33, 1
      %p72 = por %p70, %p71
      %p73 = scmp.ne.s32.totalorder %s64, %s65
      %p74 = scmp.eq.s32.totalorder %s33, 0
      %p75 = por %p73, %p74
      %p76 = scmp.ne.s32.totalorder %s64, %s65
      %p77 = scmp.eq.s32.totalorder %s34, 1
      %p78 = por %p76, %p77
      %p80 = scmp.ne.s32.totalorder %s65, %s79
      %p81 = scmp.eq.s32.totalorder %s34, 0
      %p82 = por %p80, %p81
      %s84 = sadd.s32 %s83, 1
      %p87 = scmp.eq.s32.totalorder %s28, 1
      %p88 = scmp.ne.s32.totalorder %s83, %s85
      %p89 = scmp.eq.s32.totalorder %s28, 0
      %p90 = por %p88, %p89
      %p91 = scmp.ne.s32.totalorder %s83, %s85
      %p92 = scmp.eq.s32.totalorder %s33, 1
      %p93 = por %p91, %p92
      %p94 = scmp.ne.s32.totalorder %s85, %s86
      %p95 = scmp.eq.s32.totalorder %s33, 0
      %p96 = por %p94, %p95
      %p97 = scmp.ne.s32.totalorder %s85, %s86
      %p98 = scmp.eq.s32.totalorder %s34, 1
      %p99 = por %p97, %p98
      %p101 = scmp.ne.s32.totalorder %s86, %s100
      %p102 = scmp.eq.s32.totalorder %s34, 0
      %p103 = por %p101, %p102
      %s105 = sadd.s32 %s104, 1
      %p108 = scmp.eq.s32.totalorder %s28, 1
      %p109 = scmp.ne.s32.totalorder %s104, %s106
      %p110 = scmp.eq.s32.totalorder %s28, 0
      %p111 = por %p109, %p110
      %p112 = scmp.ne.s32.totalorder %s104, %s106
      %p113 = scmp.eq.s32.totalorder %s33, 1
      %p114 = por %p112, %p113
      %p115 = scmp.ne.s32.totalorder %s106, %s107
      %p116 = scmp.eq.s32.totalorder %s33, 0
      %p117 = por %p115, %p116
      %p118 = scmp.ne.s32.totalorder %s106, %s107
      %p119 = scmp.eq.s32.totalorder %s34, 1
      %p120 = por %p118, %p119
      %p122 = scmp.ne.s32.totalorder %s107, %s121
      %p123 = scmp.eq.s32.totalorder %s34, 0
      %p124 = por %p122, %p123
      %s126 = sadd.s32 %s125, 1
      %p129 = scmp.eq.s32.totalorder %s28, 1
      %p130 = scmp.ne.s32.totalorder %s125, %s127
      %p131 = scmp.eq.s32.totalorder %s28, 0
      %p132 = por %p130, %p131
      %p133 = scmp.ne.s32.totalorder %s125, %s127
      %p134 = scmp.eq.s32.totalorder %s33, 1
      %p135 = por %p133, %p134
      %p136 = scmp.ne.s32.totalorder %s127, %s128
      %p137 = scmp.eq.s32.totalorder %s33, 0
      %p138 = por %p136, %p137
      %p139 = scmp.ne.s32.totalorder %s127, %s128
      %p140 = scmp.eq.s32.totalorder %s34, 1
      %p141 = por %p139, %p140
      %p143 = scmp.ne.s32.totalorder %s128, %s142
      %p144 = scmp.eq.s32.totalorder %s34, 0
      %p145 = por %p143, %p144
      %s147 = sadd.s32 %s146, 1
      %p150 = scmp.eq.s32.totalorder %s28, 1
      %p151 = scmp.ne.s32.totalorder %s146, %s148
      %p152 = scmp.eq.s32.totalorder %s28, 0
      %p153 = por %p151, %p152
      %p154 = scmp.ne.s32.totalorder %s146, %s148
      %p155 = scmp.eq.s32.totalorder %s33, 1
      %p156 = por %p154, %p155
      %p157 = scmp.ne.s32.totalorder %s148, %s149
      %p158 = scmp.eq.s32.totalorder %s33, 0
      %p159 = por %p157, %p158
      %p160 = scmp.ne.s32.totalorder %s148, %s149
      %p161 = scmp.eq.s32.totalorder %s34, 1
      %p162 = por %p160, %p161
      %p164 = scmp.ne.s32.totalorder %s149, %s163
      %p165 = scmp.eq.s32.totalorder %s34, 0
      %p166 = por %p164, %p165
      %s168 = sadd.s32 %s167, 1
      %p171 = scmp.eq.s32.totalorder %s28, 1
      %p172 = scmp.ne.s32.totalorder %s167, %s169
      %p173 = scmp.eq.s32.totalorder %s28, 0
      %p174 = por %p172, %p173
      %p175 = scmp.ne.s32.totalorder %s167, %s169
      %p176 = scmp.eq.s32.totalorder %s33, 1
      %p177 = por %p175, %p176
      %p178 = scmp.ne.s32.totalorder %s169, %s170
      %p179 = scmp.eq.s32.totalorder %s33, 0
      %p180 = por %p178, %p179
      %p181 = scmp.ne.s32.totalorder %s169, %s170
      %p182 = scmp.eq.s32.totalorder %s34, 1
      %p183 = por %p181, %p182
      %p185 = scmp.ne.s32.totalorder %s170, %s184
      %p186 = scmp.eq.s32.totalorder %s34, 0
      %p187 = por %p185, %p186
      %s189 = sadd.s32 %s188, 1
      %p192 = scmp.eq.s32.totalorder %s28, 1
      %p193 = scmp.ne.s32.totalorder %s188, %s190
      %p194 = scmp.eq.s32.totalorder %s28, 0
      %p195 = por %p193, %p194
      %p196 = scmp.ne.s32.totalorder %s188, %s190
      %p197 = scmp.eq.s32.totalorder %s33, 1
      %p198 = por %p196, %p197
      %p199 = scmp.ne.s32.totalorder %s190, %s191
      %p200 = scmp.eq.s32.totalorder %s33, 0
      %p201 = por %p199, %p200
      %p202 = scmp.ne.s32.totalorder %s190, %s191
      %p203 = scmp.eq.s32.totalorder %s34, 1
      %p204 = por %p202, %p203
      %p206 = scmp.ne.s32.totalorder %s191, %s205
      %p207 = scmp.eq.s32.totalorder %s34, 0
      %p208 = por %p206, %p207
      %s210 = sadd.s32 %s209, 1
      %p213 = scmp.eq.s32.totalorder %s28, 1
      %p214 = scmp.ne.s32.totalorder %s209, %s211
      %p215 = scmp.eq.s32.totalorder %s28, 0
      %p216 = por %p214, %p215
      %p217 = scmp.ne.s32.totalorder %s209, %s211
      %p218 = scmp.eq.s32.totalorder %s33, 1
      %p219 = por %p217, %p218
      %p220 = scmp.ne.s32.totalorder %s211, %s212
      %p221 = scmp.eq.s32.totalorder %s33, 0
      %p222 = por %p220, %p221
      %p223 = scmp.ne.s32.totalorder %s211, %s212
      %p224 = scmp.eq.s32.totalorder %s34, 1
      %p225 = por %p223, %p224
      %p227 = scmp.ne.s32.totalorder %s212, %s226
      %p228 = scmp.eq.s32.totalorder %s34, 0
      %p229 = por %p227, %p228
      %s231 = sadd.s32 %s230, 1
      %p234 = scmp.eq.s32.totalorder %s28, 1
      %p235 = scmp.ne.s32.totalorder %s230, %s232
      %p236 = scmp.eq.s32.totalorder %s28, 0
      %p237 = por %p235, %p236
      %p238 = scmp.ne.s32.totalorder %s230, %s232
      %p239 = scmp.eq.s32.totalorder %s33, 1
      %p240 = por %p238, %p239
      %p241 = scmp.ne.s32.totalorder %s232, %s233
      %p242 = scmp.eq.s32.totalorder %s33, 0
      %p243 = por %p241, %p242
      %p244 = scmp.ne.s32.totalorder %s232, %s233
      %p245 = scmp.eq.s32.totalorder %s34, 1
      %p246 = por %p244, %p245
      %p248 = scmp.ne.s32.totalorder %s233, %s247
      %p249 = scmp.eq.s32.totalorder %s34, 0
      %p250 = por %p248, %p249
      %s252 = sadd.s32 %s251, 1
      %p255 = scmp.eq.s32.totalorder %s28, 1
      %p256 = scmp.ne.s32.totalorder %s251, %s253
      %p257 = scmp.eq.s32.totalorder %s28, 0
      %p258 = por %p256, %p257
      %p259 = scmp.ne.s32.totalorder %s251, %s253
      %p260 = scmp.eq.s32.totalorder %s33, 1
      %p261 = por %p259, %p260
      %p262 = scmp.ne.s32.totalorder %s253, %s254
      %p263 = scmp.eq.s32.totalorder %s33, 0
      %p264 = por %p262, %p263
      %p265 = scmp.ne.s32.totalorder %s253, %s254
      %p266 = scmp.eq.s32.totalorder %s34, 1
      %p267 = por %p265, %p266
      %p269 = scmp.ne.s32.totalorder %s254, %s268
      %p270 = scmp.eq.s32.totalorder %s34, 0
      %p271 = por %p269, %p270
      %s273 = sadd.s32 %s272, 1
      %p276 = scmp.eq.s32.totalorder %s28, 1
      %p277 = scmp.ne.s32.totalorder %s272, %s274
      %p278 = scmp.eq.s32.totalorder %s28, 0
      %p279 = por %p277, %p278
      %p280 = scmp.ne.s32.totalorder %s272, %s274
      %p281 = scmp.eq.s32.totalorder %s33, 1
      %p282 = por %p280, %p281
      %p283 = scmp.ne.s32.totalorder %s274, %s275
      %p284 = scmp.eq.s32.totalorder %s33, 0
      %p285 = por %p283, %p284
      %p286 = scmp.ne.s32.totalorder %s274, %s275
      %p287 = scmp.eq.s32.totalorder %s34, 1
      %p288 = por %p286, %p287
      %p290 = scmp.ne.s32.totalorder %s275, %s289
      %p291 = scmp.eq.s32.totalorder %s34, 0
      %p292 = por %p290, %p291
      %s294 = sadd.s32 %s293, 1
      %p297 = scmp.eq.s32.totalorder %s28, 1
      %p298 = scmp.ne.s32.totalorder %s293, %s295
      %p299 = scmp.eq.s32.totalorder %s28, 0
      %p300 = por %p298, %p299
      %p301 = scmp.ne.s32.totalorder %s293, %s295
      %p302 = scmp.eq.s32.totalorder %s33, 1
      %p303 = por %p301, %p302
      %p304 = scmp.ne.s32.totalorder %s295, %s296
      %p305 = scmp.eq.s32.totalorder %s33, 0
      %p306 = por %p304, %p305
      %p307 = scmp.ne.s32.totalorder %s295, %s296
      %p308 = scmp.eq.s32.totalorder %s34, 1
      %p309 = por %p307, %p308
      %p311 = scmp.ne.s32.totalorder %s296, %s310
      %p312 = scmp.eq.s32.totalorder %s34, 0
      %p313 = por %p311, %p312
      %s315 = sadd.s32 %s314, 1
      %p318 = scmp.eq.s32.totalorder %s28, 1
      %p319 = scmp.ne.s32.totalorder %s314, %s316
      %p320 = scmp.eq.s32.totalorder %s28, 0
      %p321 = por %p319, %p320
      %p322 = scmp.ne.s32.totalorder %s314, %s316
      %p323 = scmp.eq.s32.totalorder %s33, 1
      %p324 = por %p322, %p323
      %p325 = scmp.ne.s32.totalorder %s316, %s317
      %p326 = scmp.eq.s32.totalorder %s33, 0
      %p327 = por %p325, %p326
      %p328 = scmp.ne.s32.totalorder %s316, %s317
      %p329 = scmp.eq.s32.totalorder %s34, 1
      %p330 = por %p328, %p329
      %p332 = scmp.ne.s32.totalorder %s317, %s331
      %p333 = scmp.eq.s32.totalorder %s34, 0
      %p334 = por %p332, %p333
      %s336 = sadd.s32 %s335, 1
      %p339 = scmp.eq.s32.totalorder %s28, 1
      %p340 = scmp.ne.s32.totalorder %s335, %s337
      %p341 = scmp.eq.s32.totalorder %s28, 0
      %p342 = por %p340, %p341
      %p343 = scmp.ne.s32.totalorder %s335, %s337
      %p344 = scmp.eq.s32.totalorder %s33, 1
      %p345 = por %p343, %p344
      %p346 = scmp.ne.s32.totalorder %s337, %s338
      %p347 = scmp.eq.s32.totalorder %s33, 0
      %p348 = por %p346, %p347
      %p349 = scmp.ne.s32.totalorder %s337, %s338
      %p350 = scmp.eq.s32.totalorder %s34, 1
      %p351 = por %p349, %p350
      %p353 = scmp.ne.s32.totalorder %s338, %s352
      %p354 = scmp.eq.s32.totalorder %s34, 0
      %p355 = por %p353, %p354
      %s357 = sadd.s32 %s356, 1
      %p360 = scmp.eq.s32.totalorder %s28, 1
      %p361 = scmp.ne.s32.totalorder %s356, %s358
      %p362 = scmp.eq.s32.totalorder %s28, 0
      %p363 = por %p361, %p362
      %p364 = scmp.ne.s32.totalorder %s356, %s358
      %p365 = scmp.eq.s32.totalorder %s33, 1
      %p366 = por %p364, %p365
      %p367 = scmp.ne.s32.totalorder %s358, %s359
      %p368 = scmp.eq.s32.totalorder %s33, 0
      %p369 = por %p367, %p368
      %p370 = scmp.ne.s32.totalorder %s358, %s359
      %p371 = scmp.eq.s32.totalorder %s34, 1
      %p372 = por %p370, %p371
      %p374 = scmp.ne.s32.totalorder %s359, %s373
      %p375 = scmp.eq.s32.totalorder %s34, 0
      %p376 = por %p374, %p375
      %s378 = sadd.s32 %s377, 1
      %p381 = scmp.eq.s32.totalorder %s28, 1
      %p382 = scmp.ne.s32.totalorder %s377, %s379
      %p383 = scmp.eq.s32.totalorder %s28, 0
      %p384 = por %p382, %p383
      %p385 = scmp.ne.s32.totalorder %s377, %s379
      %p386 = scmp.eq.s32.totalorder %s33, 1
      %p387 = por %p385, %p386
      %p388 = scmp.ne.s32.totalorder %s379, %s380
      %p389 = scmp.eq.s32.totalorder %s33, 0
      %p390 = por %p388, %p389
      %p391 = scmp.ne.s32.totalorder %s379, %s380
      %p392 = scmp.eq.s32.totalorder %s34, 1
      %p393 = por %p391, %p392
      %p395 = scmp.ne.s32.totalorder %s380, %s394
      %p396 = scmp.eq.s32.totalorder %s34, 0
      %p397 = por %p395, %p396
      %s398 = ssub.s32 %s28, %s35
      %p399 = scmp.eq.s32.totalorder %s398, 0
      %s401 = sadd.s32 %s400, 1
      %s402 = scalar_select %p399, %s400, %s401
      %p405 = pneg %p399
      %p406 = scmp.eq.s32.totalorder %s28, 1
      %p407 = por %p405, %p406
      %p408 = scmp.ne.s32.totalorder %s400, %s403
      %p409 = scmp.eq.s32.totalorder %s28, 0
      %p410 = por %p408, %p409
      %p411 = scmp.ne.s32.totalorder %s400, %s403
      %p412 = scmp.eq.s32.totalorder %s33, 1
      %p413 = por %p411, %p412
      %p414 = scmp.ne.s32.totalorder %s403, %s404
      %p415 = scmp.eq.s32.totalorder %s33, 0
      %p416 = por %p414, %p415
      %p417 = scmp.ne.s32.totalorder %s403, %s404
      %p418 = scmp.eq.s32.totalorder %s34, 1
      %p419 = por %p417, %p418
      %p421 = scmp.ne.s32.totalorder %s404, %s420
      %p422 = scmp.eq.s32.totalorder %s34, 0
      %p423 = por %p421, %p422
      %p424 = scmp.le.s32.totalorder 1, %s28
      %p425 = scmp.lt.s32.totalorder %s28, 3
      %p426 = pnand %p424, %p425
      %p427 = pneg %p426
      // Predicated region
      $region9: #{tpu_custom_call.1} parent=5 // pred_check
        _
      $region10: #{tpu_custom_call.1} parent=5 // pred_check_branch
        %429 = sbr.rel (%p426) target = $region12
      $region11: #{tpu_custom_call.1} parent=5 // pred_region
        %s430 = ssub.s32 %s28, 1
        // Predicated region
        $region13: #{tpu_custom_call.1} parent=11 // pred_check
          %p431 = pneg %p75
        $region14: #{tpu_custom_call.1} parent=11 // pred_check_branch
          %433 = sbr.rel (%p431) target = $region16
        $region15: #{tpu_custom_call.1} parent=11 // pred_region
          %435 = vsyncadd [#allocation3], 0
          %s437 = sshll.u32 %s1, 4
          %s438 = int_to_ptr.hbm [resolvable:$true] %s437
          %s439 = sshll.u32 [#allocation2], 4
          %s440 = int_to_ptr.vmem [resolvable:$true] %s439
          %442 = dma.hbm_to_vmem [thread:$0]  %s438, 16, %s440, [#allocation3]
        $region16: #{tpu_custom_call.1} parent=11 // pred_fallthru
          _
        // Predicated region
        $region17: #{tpu_custom_call.1} parent=11 // pred_check
          %p443 = pneg %p96
        $region18: #{tpu_custom_call.1} parent=11 // pred_check_branch
          %445 = sbr.rel (%p443) target = $region20
        $region19: #{tpu_custom_call.1} parent=11 // pred_region
          _
        $region20: #{tpu_custom_call.1} parent=11 // pred_fallthru
          _
        // Predicated region
        $region21: #{tpu_custom_call.1} parent=11 // pred_check
          %p446 = pneg %p117
        $region22: #{tpu_custom_call.1} parent=11 // pred_check_branch
          %448 = sbr.rel (%p446) target = $region24
        $region23: #{tpu_custom_call.1} parent=11 // pred_region
          _
        $region24: #{tpu_custom_call.1} parent=11 // pred_fallthru
          _
        // Predicated region
        $region25: #{tpu_custom_call.1} parent=11 // pred_check
          %p449 = pneg %p138
        $region26: #{tpu_custom_call.1} parent=11 // pred_check_branch
          %451 = sbr.rel (%p449) target = $region28
        $region27: #{tpu_custom_call.1} parent=11 // pred_region
          _
        $region28: #{tpu_custom_call.1} parent=11 // pred_fallthru
          _
        // Predicated region
        $region29: #{tpu_custom_call.1} parent=11 // pred_check
          %p452 = pneg %p159
        $region30: #{tpu_custom_call.1} parent=11 // pred_check_branch
          %454 = sbr.rel (%p452) target = $region32
        $region31: #{tpu_custom_call.1} parent=11 // pred_region
          _
        $region32: #{tpu_custom_call.1} parent=11 // pred_fallthru
          _
        // Predicated region
        $region33: #{tpu_custom_call.1} parent=11 // pred_check
          %p455 = pneg %p180
        $region34: #{tpu_custom_call.1} parent=11 // pred_check_branch
          %457 = sbr.rel (%p455) target = $region36
        $region35: #{tpu_custom_call.1} parent=11 // pred_region
          _
        $region36: #{tpu_custom_call.1} parent=11 // pred_fallthru
          _
        // Predicated region
        $region37: #{tpu_custom_call.1} parent=11 // pred_check
          %p458 = pneg %p201
        $region38: #{tpu_custom_call.1} parent=11 // pred_check_branch
          %460 = sbr.rel (%p458) target = $region40
        $region39: #{tpu_custom_call.1} parent=11 // pred_region
          _
        $region40: #{tpu_custom_call.1} parent=11 // pred_fallthru
          _
        // Predicated region
        $region41: #{tpu_custom_call.1} parent=11 // pred_check
          %p461 = pneg %p222
        $region42: #{tpu_custom_call.1} parent=11 // pred_check_branch
          %463 = sbr.rel (%p461) target = $region44
        $region43: #{tpu_custom_call.1} parent=11 // pred_region
          _
        $region44: #{tpu_custom_call.1} parent=11 // pred_fallthru
          _
        // Predicated region
        $region45: #{tpu_custom_call.1} parent=11 // pred_check
          %p464 = pneg %p243
        $region46: #{tpu_custom_call.1} parent=11 // pred_check_branch
          %466 = sbr.rel (%p464) target = $region48
        $region47: #{tpu_custom_call.1} parent=11 // pred_region
          _
        $region48: #{tpu_custom_call.1} parent=11 // pred_fallthru
          _
        // Predicated region
        $region49: #{tpu_custom_call.1} parent=11 // pred_check
          %p467 = pneg %p264
        $region50: #{tpu_custom_call.1} parent=11 // pred_check_branch
          %469 = sbr.rel (%p467) target = $region52
        $region51: #{tpu_custom_call.1} parent=11 // pred_region
          _
        $region52: #{tpu_custom_call.1} parent=11 // pred_fallthru
          _
        // Predicated region
        $region53: #{tpu_custom_call.1} parent=11 // pred_check
          %p470 = pneg %p285
        $region54: #{tpu_custom_call.1} parent=11 // pred_check_branch
          %472 = sbr.rel (%p470) target = $region56
        $region55: #{tpu_custom_call.1} parent=11 // pred_region
          _
        $region56: #{tpu_custom_call.1} parent=11 // pred_fallthru
          _
        // Predicated region
        $region57: #{tpu_custom_call.1} parent=11 // pred_check
          %p473 = pneg %p306
        $region58: #{tpu_custom_call.1} parent=11 // pred_check_branch
          %475 = sbr.rel (%p473) target = $region60
        $region59: #{tpu_custom_call.1} parent=11 // pred_region
          _
        $region60: #{tpu_custom_call.1} parent=11 // pred_fallthru
          _
        // Predicated region
        $region61: #{tpu_custom_call.1} parent=11 // pred_check
          %p476 = pneg %p327
        $region62: #{tpu_custom_call.1} parent=11 // pred_check_branch
          %478 = sbr.rel (%p476) target = $region64
        $region63: #{tpu_custom_call.1} parent=11 // pred_region
          %480 = vsyncadd [#allocation6], 0
          %s481 = sshll.u32 %s13, 4
          %s482 = int_to_ptr.hbm [resolvable:$true] %s481
          %s483 = sshll.u32 [#allocation5], 4
          %s484 = int_to_ptr.vmem [resolvable:$true] %s483
          %489 = dma.hbm_to_vmem [thread:$0]  %s482, 512, %s484, [#allocation6], 128, 128, 8
        $region64: #{tpu_custom_call.1} parent=11 // pred_fallthru
          _
        // Predicated region
        $region65: #{tpu_custom_call.1} parent=11 // pred_check
          %p490 = pneg %p348
        $region66: #{tpu_custom_call.1} parent=11 // pred_check_branch
          %492 = sbr.rel (%p490) target = $region68
        $region67: #{tpu_custom_call.1} parent=11 // pred_region
          _
        $region68: #{tpu_custom_call.1} parent=11 // pred_fallthru
          _
        // Predicated region
        $region69: #{tpu_custom_call.1} parent=11 // pred_check
          %p493 = pneg %p369
        $region70: #{tpu_custom_call.1} parent=11 // pred_check_branch
          %495 = sbr.rel (%p493) target = $region72
        $region71: #{tpu_custom_call.1} parent=11 // pred_region
          _
        $region72: #{tpu_custom_call.1} parent=11 // pred_fallthru
          _
        // Predicated region
        $region73: #{tpu_custom_call.1} parent=11 // pred_check
          %p496 = pneg %p390
        $region74: #{tpu_custom_call.1} parent=11 // pred_check_branch
          %498 = sbr.rel (%p496) target = $region76
        $region75: #{tpu_custom_call.1} parent=11 // pred_region
          _
        $region76: #{tpu_custom_call.1} parent=11 // pred_fallthru
          _
      $region12: #{tpu_custom_call.1} parent=5 // pred_fallthru
        _
      %p499 = scmp.lt.s32.totalorder %s28, 2
      // Predicated region
      $region77: #{tpu_custom_call.1} parent=5 // pred_check
        %p500 = pneg %p499
      $region78: #{tpu_custom_call.1} parent=5 // pred_check_branch
        %502 = sbr.rel (%p500) target = $region80
      $region79: #{tpu_custom_call.1} parent=5 // pred_region
        // Predicated region
        $region81: #{tpu_custom_call.1} parent=79 // pred_check
          %p503 = pneg %p48
        $region82: #{tpu_custom_call.1} parent=79 // pred_check_branch
          %505 = sbr.rel (%p503) target = $region84
        $region83: #{tpu_custom_call.1} parent=79 // pred_region
          %s506 = smul.u32 2, %s28
          %p507 = scmp.lt.s32.totalorder %s506, 3
          %s508 = scalar_select %p507, %s506, 3
          %s509 = smul.addr %s508, 8
          %s510 = scalar_lea.vmem %s0, %s509
          %s511 = smul.u32 2, %s28
        $region84: #{tpu_custom_call.1} parent=79 // pred_fallthru
          _
      $region80: #{tpu_custom_call.1} parent=5 // pred_fallthru
        _
      %p512 = scmp.le.s32.totalorder 1, %s28
      %p513 = scmp.lt.s32.totalorder %s28, 3
      %p514 = pnand %p512, %p513
      %p515 = pneg %p514
      // Predicated region
      $region85: #{tpu_custom_call.1} parent=5 // pred_check
        _
      $region86: #{tpu_custom_call.1} parent=5 // pred_check_branch
        %517 = sbr.rel (%p514) target = $region88
      $region87: #{tpu_custom_call.1} parent=5 // pred_region
        %s518 = ssub.s32 %s28, 1
        // Predicated region
        $region89: #{tpu_custom_call.1} parent=87 // pred_check
          %p519 = pneg %p75
        $region90: #{tpu_custom_call.1} parent=87 // pred_check_branch
          %521 = sbr.rel (%p519) target = $region92
        $region91: #{tpu_custom_call.1} parent=87 // pred_region
          %523 = dma.done [#allocation3], 16
        $region92: #{tpu_custom_call.1} parent=87 // pred_fallthru
          _
        // Predicated region
        $region93: #{tpu_custom_call.1} parent=87 // pred_check
          %p524 = pneg %p327
        $region94: #{tpu_custom_call.1} parent=87 // pred_check_branch
          %526 = sbr.rel (%p524) target = $region96
        $region95: #{tpu_custom_call.1} parent=87 // pred_region
          %528 = dma.done [#allocation6], 512
        $region96: #{tpu_custom_call.1} parent=87 // pred_fallthru
          _
        %s529 = smul.u32 2, %s33
        %p530 = scmp.lt.s32.totalorder %s529, 3
        %s531 = scalar_select %p530, %s529, 3
        %s532 = smul.addr %s531, 8
        %s533 = scalar_lea.vmem %s0, %s532
        %p534 = pneg %p54
        %p535 = pneg %p51
        %p536 = pneg %p75
        %p537 = pneg %p72
        %p538 = pneg %p96
        %p539 = pneg %p93
        %p540 = pneg %p117
        %p541 = pneg %p114
        %p542 = pneg %p138
        %p543 = pneg %p135
        %p544 = pneg %p159
        %p545 = pneg %p156
        %p546 = pneg %p180
        %p547 = pneg %p177
        %p548 = pneg %p201
        %p549 = pneg %p198
        %p550 = pneg %p222
        %p551 = pneg %p219
        %p552 = pneg %p243
        %p553 = pneg %p240
        %p554 = pneg %p264
        %p555 = pneg %p261
        %p556 = pneg %p285
        %p557 = pneg %p282
        %p558 = pneg %p306
        %p559 = pneg %p303
        %p560 = pneg %p327
        %p561 = pneg %p324
        %p562 = pneg %p348
        %p563 = pneg %p345
        %p564 = pneg %p369
        %p565 = pneg %p366
        %p566 = pneg %p390
        %p567 = pneg %p387
        %p568 = pneg %p416
        %p569 = pneg %p413
        %s570 = sand.u32 %s403, 1
        %s571 = scalar_lea.sflag [#allocation4], %s570
        %s572 = sand.u32 %s403, 1
        %s573 = smul.addr %s572, 16
        %s574 = scalar_lea.vmem [#allocation7], %s573
        %s575 = smul.u32 2, %s33
        %p576 = scmp.lt.s32.totalorder %s575, 3
        %s577 = scalar_select %p576, %s575, 3
        %s578 = smul.addr %s577, 8
        %s579 = scalar_lea.vmem %s0, %s578
        %s580 = smul.u32 2, %s33
        %s581 = smul.u32 2, %s33
        %v582 = vld [vmem:[%s579] sm:$0xff]
        %v583 = vld [vmem:[%s579 + $0x8] sm:$0xff]
        %vm584 = vcmask 261120
        %v585 = vsel %vm584, %v582, 0.0
        %586 = vadd.xlane.f32.xlu0 %v585
        %v587 = vpop.xlane.xlu0 %586
        %v588 = vsel %vm584, %v583, 0.0
        %589 = vadd.xlane.f32.xlu0 %v588
        %v590 = vpop.xlane.xlu0 %589
        %v591 = vrcp.pop 32.0
        %v592 = vmul.f32 32.0, %v591
        %v593 = vsub.f32 1.0, %v592
        %v594 = vmul.f32 %v591, %v593
        %v595 = vadd.f32 %v591, %v594
        %vm596 = vweird.f32 %v591
        %v597 = vsel %vm596, %v591, %v595
        %v598 = vmul.f32 %v587, %v597
        %v599 = vmul.f32 %v590, %v597
        %v600 = vsub.f32 %v582, %v598
        %v601 = vsub.f32 %v583, %v599
        %v602 = vmul.f32 %v600, %v600
        %v603 = vmul.f32 %v601, %v601
        %v604 = vsel %vm584, %v602, 0.0
        %605 = vadd.xlane.f32.xlu0 %v604
        %v606 = vpop.xlane.xlu0 %605
        %v607 = vsel %vm584, %v603, 0.0
        %608 = vadd.xlane.f32.xlu0 %v607
        %v609 = vpop.xlane.xlu0 %608
        %v610 = vmul.f32 %v606, %v597
        %v611 = vmul.f32 %v609, %v597
        %v612 = vadd.f32 %v610, 1e-05
        %v613 = vadd.f32 %v611, 1e-05
        %v614 = vrsqrt.pop %v612
        %v615 = vmul.f32 %v614, %v612
        %v616 = vmul.f32 %v615, %v614
        %v617 = vmul.f32 0.5, %v616
        %v618 = vsub.f32 1.5, %v617
        %v619 = vmul.f32 %v614, %v618
        %vm620 = vweird.f32 %v612
        %vm621 = vweird.f32 %v614
        %vm622 = vmor %vm620, %vm621
        %v623 = vsel %vm622, %v614, %v619
        %v624 = vrsqrt.pop %v613
        %v625 = vmul.f32 %v624, %v613
        %v626 = vmul.f32 %v625, %v624
        %v627 = vmul.f32 0.5, %v626
        %v628 = vsub.f32 1.5, %v627
        %v629 = vmul.f32 %v624, %v628
        %vm630 = vweird.f32 %v613
        %vm631 = vweird.f32 %v624
        %vm632 = vmor %vm630, %vm631
        %v633 = vsel %vm632, %v624, %v629
        %v634 = vmul.f32 %v600, %v623
        %v635 = vmul.f32 %v601, %v633
        %v636 = vld [vmem:[#allocation2] sm:$0x1]
        %v638 = vperm.slane %v636, 0
        %v640 = vmul.f32 %v634, %v638
        %v641 = vmul.f32 %v635, %v638
        %v642 = vld [vmem:[%s2] sm:$0x1]
        %v644 = vperm.slane %v642, 0
        %v646 = vadd.f32 %v640, %v644
        %v647 = vadd.f32 %v641, %v644
        %v648 = vld [vmem:[%s3] sm:$0xff]
        %v649 = vld [vmem:[%s3 + $0x8] sm:$0xff]
        %v650 = vld [vmem:[%s3 + $0x10] sm:$0xff]
        %v651 = vld [vmem:[%s3 + $0x18] sm:$0xff]
        %v652 = vld [vmem:[%s4] sm:$0x1]
        %v654 = vperm.slane %v652, 0
        %v657 = vsel %vm584, %v646, 0
        %v660 = vsel %vm584, %v647, 0
        %662 = vmatpush.msra.mxu0 0.0
        %663 = vmatpush.msra.mxu0 0.0
        %664 = vmatpush.msra.mxu0 0.0
        %665 = vmatpush.msra.mxu0 0.0
        %666 = vmatpush.msra.mxu0 0.0
        %667 = vmatpush.msra.mxu0 0.0
        %668 = vmatpush.msra.mxu0 0.0
        %669 = vmatpush.msra.mxu0 0.0
        %670 = vmatpush.msra.mxu0 0.0
        %671 = vmatpush.msra.mxu0 0.0
        %672 = vmatpush.msra.mxu0 0.0
        %673 = vmatpush.msra.mxu0 0.0
        %674 = vmatpush.msra.mxu0 %v651
        %675 = vmatpush.msra.mxu0 %v650
        %676 = vmatpush.msra.mxu0 %v649
        %677 = vmatpush.msra.mxu0 %v648
        %678 = vmatmul.f32.gmra.mxu0 %v657
        %v679 = vpop.f32.mrf.mxu0
        %v680 = vadd.f32 %v654, %v679
        %681 = vmatmul.f32.gmra.mxu0 %v660
        %v682 = vpop.f32.mrf.mxu0
        %v683 = vadd.f32 %v654, %v682
        %684 = vdwg.mxu0
        %v685 = vld [vmem:[%s5] sm:$0xff]
        %v686 = vld [vmem:[%s5 + $0x8] sm:$0xff]
        %v687 = vld [vmem:[%s5 + $0x10] sm:$0xff]
        %v688 = vld [vmem:[%s5 + $0x18] sm:$0xff]
        %v689 = vld [vmem:[%s6] sm:$0x1]
        %v691 = vperm.slane %v689, 0
        %693 = vmatpush.msra.mxu0 0.0
        %694 = vmatpush.msra.mxu0 0.0
        %695 = vmatpush.msra.mxu0 0.0
        %696 = vmatpush.msra.mxu0 0.0
        %697 = vmatpush.msra.mxu0 0.0
        %698 = vmatpush.msra.mxu0 0.0
        %699 = vmatpush.msra.mxu0 0.0
        %700 = vmatpush.msra.mxu0 0.0
        %701 = vmatpush.msra.mxu0 0.0
        %702 = vmatpush.msra.mxu0 0.0
        %703 = vmatpush.msra.mxu0 0.0
        %704 = vmatpush.msra.mxu0 0.0
        %705 = vmatpush.msra.mxu0 %v688
        %706 = vmatpush.msra.mxu0 %v687
        %707 = vmatpush.msra.mxu0 %v686
        %708 = vmatpush.msra.mxu0 %v685
        %709 = vmatmul.f32.gmra.mxu0 %v657
        %v710 = vpop.f32.mrf.mxu0
        %v711 = vadd.f32 %v691, %v710
        %712 = vmatmul.f32.gmra.mxu0 %v660
        %v713 = vpop.f32.mrf.mxu0
        %v714 = vadd.f32 %v691, %v713
        %715 = vdwg.mxu0
        %v716 = vld [vmem:[%s7] sm:$0xff]
        %v717 = vld [vmem:[%s7 + $0x8] sm:$0xff]
        %v718 = vld [vmem:[%s7 + $0x10] sm:$0xff]
        %v719 = vld [vmem:[%s7 + $0x18] sm:$0xff]
        %v720 = vld [vmem:[%s8] sm:$0x1]
        %v722 = vperm.slane %v720, 0
        %724 = vmatpush.msra.mxu0 0.0
        %725 = vmatpush.msra.mxu0 0.0
        %726 = vmatpush.msra.mxu0 0.0
        %727 = vmatpush.msra.mxu0 0.0
        %728 = vmatpush.msra.mxu0 0.0
        %729 = vmatpush.msra.mxu0 0.0
        %730 = vmatpush.msra.mxu0 0.0
        %731 = vmatpush.msra.mxu0 0.0
        %732 = vmatpush.msra.mxu0 0.0
        %733 = vmatpush.msra.mxu0 0.0
        %734 = vmatpush.msra.mxu0 0.0
        %735 = vmatpush.msra.mxu0 0.0
        %736 = vmatpush.msra.mxu0 %v719
        %737 = vmatpush.msra.mxu0 %v718
        %738 = vmatpush.msra.mxu0 %v717
        %739 = vmatpush.msra.mxu0 %v716
        %740 = vmatmul.f32.gmra.mxu0 %v657
        %v741 = vpop.f32.mrf.mxu0
        %v742 = vadd.f32 %v722, %v741
        %743 = vmatmul.f32.gmra.mxu0 %v660
        %v744 = vpop.f32.mrf.mxu0
        %v745 = vadd.f32 %v722, %v744
        %746 = vdwg.mxu0
        %749 = vrot.lane.b32.xlu0 %v680, 120
        %v750 = vpop.permute.xlu0 %749
        %751 = vrot.lane.b32.xlu0 %v683, 120
        %v752 = vpop.permute.xlu0 %751
        %755 = vrot.lane.b32.xlu0 %v680, 112
        %v756 = vpop.permute.xlu0 %755
        %757 = vrot.lane.b32.xlu0 %v683, 112
        %v758 = vpop.permute.xlu0 %757
        %761 = vrot.lane.b32.xlu0 %v680, 104
        %v762 = vpop.permute.xlu0 %761
        %763 = vrot.lane.b32.xlu0 %v683, 104
        %v764 = vpop.permute.xlu0 %763
        %v767 = vrot.slane %v756, 4
        %vm768 = vcmask 1047556
        %v769 = vsel %vm768, %v767, %v680
        %v770 = vrot.slane %v680, 4
        %v771 = vsel %vm768, %v756, %v770
        %v773 = vunpack.c.l.s4 1983009808
        %v774 = vunpack.c.0.s8 %v773
        %v775 = vperm.slane %v769, %v774
        %v777 = vunpack.c.l.s4 1983009808
        %v778 = vunpack.c.0.s8 %v777
        %v779 = vperm.slane %v771, %v778
        %v780 = vrot.slane %v762, 4
        %v781 = vsel %vm768, %v780, %v750
        %v782 = vrot.slane %v750, 4
        %v783 = vsel %vm768, %v762, %v782
        %v785 = vunpack.c.l.s4 1983009808
        %v786 = vunpack.c.0.s8 %v785
        %v787 = vperm.slane %v781, %v786
        %v789 = vunpack.c.l.s4 1983009808
        %v790 = vunpack.c.0.s8 %v789
        %v791 = vperm.slane %v783, %v790
        %v792 = vrot.slane %v787, 4
        %v793 = vsel %vm768, %v792, %v775
        %v794 = vrot.slane %v775, 4
        %v795 = vsel %vm768, %v787, %v794
        %v797 = vunpack.c.l.s4 1934713408
        %v798 = vunpack.c.0.s8 %v797
        %v799 = vperm.slane %v793, %v798
        %v801 = vunpack.c.l.s4 1934713408
        %v802 = vunpack.c.0.s8 %v801
        %v803 = vperm.slane %v795, %v802
        %v804 = vrot.slane %v791, 4
        %v805 = vsel %vm768, %v804, %v779
        %v806 = vrot.slane %v779, 4
        %v807 = vsel %vm768, %v791, %v806
        %v809 = vunpack.c.l.s4 1934713408
        %v810 = vunpack.c.0.s8 %v809
        %v811 = vperm.slane %v805, %v810
        %v813 = vunpack.c.l.s4 1934713408
        %v814 = vunpack.c.0.s8 %v813
        %v815 = vperm.slane %v807, %v814
        %v816 = vrot.slane %v799, 4
        %v817 = vsel %vm768, 0.0, %v816
        %v818 = vrot.slane %v803, 4
        %v819 = vsel %vm768, 0.0, %v818
        %v820 = vrot.slane %v811, 4
        %v821 = vsel %vm768, 0.0, %v820
        %v822 = vrot.slane %v815, 4
        %v823 = vsel %vm768, 0.0, %v822
        %v824 = vrot.slane %v758, 4
        %v825 = vsel %vm768, %v824, %v683
        %v826 = vrot.slane %v683, 4
        %v827 = vsel %vm768, %v758, %v826
        %v829 = vunpack.c.l.s4 1983009808
        %v830 = vunpack.c.0.s8 %v829
        %v831 = vperm.slane %v825, %v830
        %v833 = vunpack.c.l.s4 1983009808
        %v834 = vunpack.c.0.s8 %v833
        %v835 = vperm.slane %v827, %v834
        %v836 = vrot.slane %v764, 4
        %v837 = vsel %vm768, %v836, %v752
        %v838 = vrot.slane %v752, 4
        %v839 = vsel %vm768, %v764, %v838
        %v841 = vunpack.c.l.s4 1983009808
        %v842 = vunpack.c.0.s8 %v841
        %v843 = vperm.slane %v837, %v842
        %v845 = vunpack.c.l.s4 1983009808
        %v846 = vunpack.c.0.s8 %v845
        %v847 = vperm.slane %v839, %v846
        %v848 = vrot.slane %v843, 4
        %v849 = vsel %vm768, %v848, %v831
        %v850 = vrot.slane %v831, 4
        %v851 = vsel %vm768, %v843, %v850
        %v853 = vunpack.c.l.s4 1934713408
        %v854 = vunpack.c.0.s8 %v853
        %v855 = vperm.slane %v849, %v854
        %v857 = vunpack.c.l.s4 1934713408
        %v858 = vunpack.c.0.s8 %v857
        %v859 = vperm.slane %v851, %v858
        %v860 = vrot.slane %v847, 4
        %v861 = vsel %vm768, %v860, %v835
        %v862 = vrot.slane %v835, 4
        %v863 = vsel %vm768, %v847, %v862
        %v865 = vunpack.c.l.s4 1934713408
        %v866 = vunpack.c.0.s8 %v865
        %v867 = vperm.slane %v861, %v866
        %v869 = vunpack.c.l.s4 1934713408
        %v870 = vunpack.c.0.s8 %v869
        %v871 = vperm.slane %v863, %v870
        %v872 = vrot.slane %v855, 4
        %v873 = vsel %vm768, 0.0, %v872
        %v874 = vrot.slane %v859, 4
        %v875 = vsel %vm768, 0.0, %v874
        %v876 = vrot.slane %v867, 4
        %v877 = vsel %vm768, 0.0, %v876
        %v878 = vrot.slane %v871, 4
        %v879 = vsel %vm768, 0.0, %v878
        %v880 = vsel %vm768, %v818, %v799
        %v882 = vunpack.c.l.s4 1983009808
        %v883 = vunpack.c.0.s8 %v882
        %v884 = vperm.slane %v880, %v883
        %v885 = vrot.slane %v819, 4
        %v886 = vsel %vm768, %v885, %v817
        %v888 = vunpack.c.l.s4 1983009808
        %v889 = vunpack.c.0.s8 %v888
        %v890 = vperm.slane %v886, %v889
        %v891 = vsel %vm768, %v822, %v811
        %v893 = vunpack.c.l.s4 1983009808
        %v894 = vunpack.c.0.s8 %v893
        %v895 = vperm.slane %v891, %v894
        %v896 = vrot.slane %v823, 4
        %v897 = vsel %vm768, %v896, %v821
        %v899 = vunpack.c.l.s4 1983009808
        %v900 = vunpack.c.0.s8 %v899
        %v901 = vperm.slane %v897, %v900
        %v902 = vrot.slane %v890, 4
        %v903 = vsel %vm768, %v902, %v884
        %v904 = vrot.slane %v884, 4
        %v905 = vsel %vm768, %v890, %v904
        %v907 = vunpack.c.l.s4 1934713408
        %v908 = vunpack.c.0.s8 %v907
        %v909 = vperm.slane %v903, %v908
        %v911 = vunpack.c.l.s4 1934713408
        %v912 = vunpack.c.0.s8 %v911
        %v913 = vperm.slane %v905, %v912
        %v914 = vrot.slane %v901, 4
        %v915 = vsel %vm768, %v914, %v895
        %v916 = vrot.slane %v895, 4
        %v917 = vsel %vm768, %v901, %v916
        %v919 = vunpack.c.l.s4 1934713408
        %v920 = vunpack.c.0.s8 %v919
        %v921 = vperm.slane %v915, %v920
        %v923 = vunpack.c.l.s4 1934713408
        %v924 = vunpack.c.0.s8 %v923
        %v925 = vperm.slane %v917, %v924
        %v926 = vrot.slane %v921, 4
        %v927 = vsel %vm768, %v926, %v909
        %v928 = vrot.slane %v909, 4
        %v929 = vsel %vm768, %v921, %v928
        %v930 = vrot.slane %v925, 4
        %v931 = vsel %vm768, %v930, %v913
        %v932 = vrot.slane %v913, 4
        %v933 = vsel %vm768, %v925, %v932
        %v934 = vsel %vm768, %v874, %v855
        %v936 = vunpack.c.l.s4 1983009808
        %v937 = vunpack.c.0.s8 %v936
        %v938 = vperm.slane %v934, %v937
        %v939 = vrot.slane %v875, 4
        %v940 = vsel %vm768, %v939, %v873
        %v942 = vunpack.c.l.s4 1983009808
        %v943 = vunpack.c.0.s8 %v942
        %v944 = vperm.slane %v940, %v943
        %v945 = vsel %vm768, %v878, %v867
        %v947 = vunpack.c.l.s4 1983009808
        %v948 = vunpack.c.0.s8 %v947
        %v949 = vperm.slane %v945, %v948
        %v950 = vrot.slane %v879, 4
        %v951 = vsel %vm768, %v950, %v877
        %v953 = vunpack.c.l.s4 1983009808
        %v954 = vunpack.c.0.s8 %v953
        %v955 = vperm.slane %v951, %v954
        %v956 = vrot.slane %v944, 4
        %v957 = vsel %vm768, %v956, %v938
        %v958 = vrot.slane %v938, 4
        %v959 = vsel %vm768, %v944, %v958
        %v961 = vunpack.c.l.s4 1934713408
        %v962 = vunpack.c.0.s8 %v961
        %v963 = vperm.slane %v957, %v962
        %v965 = vunpack.c.l.s4 1934713408
        %v966 = vunpack.c.0.s8 %v965
        %v967 = vperm.slane %v959, %v966
        %v968 = vrot.slane %v955, 4
        %v969 = vsel %vm768, %v968, %v949
        %v970 = vrot.slane %v949, 4
        %v971 = vsel %vm768, %v955, %v970
        %v973 = vunpack.c.l.s4 1934713408
        %v974 = vunpack.c.0.s8 %v973
        %v975 = vperm.slane %v969, %v974
        %v977 = vunpack.c.l.s4 1934713408
        %v978 = vunpack.c.0.s8 %v977
        %v979 = vperm.slane %v971, %v978
        %v980 = vrot.slane %v975, 4
        %v981 = vsel %vm768, %v980, %v963
        %v982 = vrot.slane %v963, 4
        %v983 = vsel %vm768, %v975, %v982
        %v984 = vrot.slane %v979, 4
        %v985 = vsel %vm768, %v984, %v967
        %v986 = vrot.slane %v967, 4
        %v987 = vsel %vm768, %v979, %v986
        %990 = vrot.lane.b32.xlu0 %v711, 120
        %v991 = vpop.permute.xlu0 %990
        %992 = vrot.lane.b32.xlu0 %v714, 120
        %v993 = vpop.permute.xlu0 %992
        %996 = vrot.lane.b32.xlu0 %v711, 112
        %v997 = vpop.permute.xlu0 %996
        %998 = vrot.lane.b32.xlu0 %v714, 112
        %v999 = vpop.permute.xlu0 %998
        %1002 = vrot.lane.b32.xlu0 %v711, 104
        %v1003 = vpop.permute.xlu0 %1002
        %1004 = vrot.lane.b32.xlu0 %v714, 104
        %v1005 = vpop.permute.xlu0 %1004
        %v1008 = vrot.slane %v997, 4
        %v1009 = vsel %vm768, %v1008, %v711
        %v1010 = vrot.slane %v711, 4
        %v1011 = vsel %vm768, %v997, %v1010
        %v1013 = vunpack.c.l.s4 1983009808
        %v1014 = vunpack.c.0.s8 %v1013
        %v1015 = vperm.slane %v1009, %v1014
        %v1017 = vunpack.c.l.s4 1983009808
        %v1018 = vunpack.c.0.s8 %v1017
        %v1019 = vperm.slane %v1011, %v1018
        %v1020 = vrot.slane %v1003, 4
        %v1021 = vsel %vm768, %v1020, %v991
        %v1022 = vrot.slane %v991, 4
        %v1023 = vsel %vm768, %v1003, %v1022
        %v1025 = vunpack.c.l.s4 1983009808
        %v1026 = vunpack.c.0.s8 %v1025
        %v1027 = vperm.slane %v1021, %v1026
        %v1029 = vunpack.c.l.s4 1983009808
        %v1030 = vunpack.c.0.s8 %v1029
        %v1031 = vperm.slane %v1023, %v1030
        %v1032 = vrot.slane %v1027, 4
        %v1033 = vsel %vm768, %v1032, %v1015
        %v1034 = vrot.slane %v1015, 4
        %v1035 = vsel %vm768, %v1027, %v1034
        %v1037 = vunpack.c.l.s4 1934713408
        %v1038 = vunpack.c.0.s8 %v1037
        %v1039 = vperm.slane %v1033, %v1038
        %v1041 = vunpack.c.l.s4 1934713408
        %v1042 = vunpack.c.0.s8 %v1041
        %v1043 = vperm.slane %v1035, %v1042
        %v1044 = vrot.slane %v1031, 4
        %v1045 = vsel %vm768, %v1044, %v1019
        %v1046 = vrot.slane %v1019, 4
        %v1047 = vsel %vm768, %v1031, %v1046
        %v1049 = vunpack.c.l.s4 1934713408
        %v1050 = vunpack.c.0.s8 %v1049
        %v1051 = vperm.slane %v1045, %v1050
        %v1053 = vunpack.c.l.s4 1934713408
        %v1054 = vunpack.c.0.s8 %v1053
        %v1055 = vperm.slane %v1047, %v1054
        %v1056 = vrot.slane %v1039, 4
        %v1057 = vsel %vm768, 0.0, %v1056
        %v1058 = vrot.slane %v1043, 4
        %v1059 = vsel %vm768, 0.0, %v1058
        %v1060 = vrot.slane %v1051, 4
        %v1061 = vsel %vm768, 0.0, %v1060
        %v1062 = vrot.slane %v1055, 4
        %v1063 = vsel %vm768, 0.0, %v1062
        %v1064 = vrot.slane %v999, 4
        %v1065 = vsel %vm768, %v1064, %v714
        %v1066 = vrot.slane %v714, 4
        %v1067 = vsel %vm768, %v999, %v1066
        %v1069 = vunpack.c.l.s4 1983009808
        %v1070 = vunpack.c.0.s8 %v1069
        %v1071 = vperm.slane %v1065, %v1070
        %v1073 = vunpack.c.l.s4 1983009808
        %v1074 = vunpack.c.0.s8 %v1073
        %v1075 = vperm.slane %v1067, %v1074
        %v1076 = vrot.slane %v1005, 4
        %v1077 = vsel %vm768, %v1076, %v993
        %v1078 = vrot.slane %v993, 4
        %v1079 = vsel %vm768, %v1005, %v1078
        %v1081 = vunpack.c.l.s4 1983009808
        %v1082 = vunpack.c.0.s8 %v1081
        %v1083 = vperm.slane %v1077, %v1082
        %v1085 = vunpack.c.l.s4 1983009808
        %v1086 = vunpack.c.0.s8 %v1085
        %v1087 = vperm.slane %v1079, %v1086
        %v1088 = vrot.slane %v1083, 4
        %v1089 = vsel %vm768, %v1088, %v1071
        %v1090 = vrot.slane %v1071, 4
        %v1091 = vsel %vm768, %v1083, %v1090
        %v1093 = vunpack.c.l.s4 1934713408
        %v1094 = vunpack.c.0.s8 %v1093
        %v1095 = vperm.slane %v1089, %v1094
        %v1097 = vunpack.c.l.s4 1934713408
        %v1098 = vunpack.c.0.s8 %v1097
        %v1099 = vperm.slane %v1091, %v1098
        %v1100 = vrot.slane %v1087, 4
        %v1101 = vsel %vm768, %v1100, %v1075
        %v1102 = vrot.slane %v1075, 4
        %v1103 = vsel %vm768, %v1087, %v1102
        %v1105 = vunpack.c.l.s4 1934713408
        %v1106 = vunpack.c.0.s8 %v1105
        %v1107 = vperm.slane %v1101, %v1106
        %v1109 = vunpack.c.l.s4 1934713408
        %v1110 = vunpack.c.0.s8 %v1109
        %v1111 = vperm.slane %v1103, %v1110
        %v1112 = vrot.slane %v1095, 4
        %v1113 = vsel %vm768, 0.0, %v1112
        %v1114 = vrot.slane %v1099, 4
        %v1115 = vsel %vm768, 0.0, %v1114
        %v1116 = vrot.slane %v1107, 4
        %v1117 = vsel %vm768, 0.0, %v1116
        %v1118 = vrot.slane %v1111, 4
        %v1119 = vsel %vm768, 0.0, %v1118
        %v1120 = vsel %vm768, %v1058, %v1039
        %v1122 = vunpack.c.l.s4 1983009808
        %v1123 = vunpack.c.0.s8 %v1122
        %v1124 = vperm.slane %v1120, %v1123
        %v1125 = vrot.slane %v1059, 4
        %v1126 = vsel %vm768, %v1125, %v1057
        %v1128 = vunpack.c.l.s4 1983009808
        %v1129 = vunpack.c.0.s8 %v1128
        %v1130 = vperm.slane %v1126, %v1129
        %v1131 = vsel %vm768, %v1062, %v1051
        %v1133 = vunpack.c.l.s4 1983009808
        %v1134 = vunpack.c.0.s8 %v1133
        %v1135 = vperm.slane %v1131, %v1134
        %v1136 = vrot.slane %v1063, 4
        %v1137 = vsel %vm768, %v1136, %v1061
        %v1139 = vunpack.c.l.s4 1983009808
        %v1140 = vunpack.c.0.s8 %v1139
        %v1141 = vperm.slane %v1137, %v1140
        %v1142 = vrot.slane %v1130, 4
        %v1143 = vsel %vm768, %v1142, %v1124
        %v1144 = vrot.slane %v1124, 4
        %v1145 = vsel %vm768, %v1130, %v1144
        %v1147 = vunpack.c.l.s4 1934713408
        %v1148 = vunpack.c.0.s8 %v1147
        %v1149 = vperm.slane %v1143, %v1148
        %v1151 = vunpack.c.l.s4 1934713408
        %v1152 = vunpack.c.0.s8 %v1151
        %v1153 = vperm.slane %v1145, %v1152
        %v1154 = vrot.slane %v1141, 4
        %v1155 = vsel %vm768, %v1154, %v1135
        %v1156 = vrot.slane %v1135, 4
        %v1157 = vsel %vm768, %v1141, %v1156
        %v1159 = vunpack.c.l.s4 1934713408
        %v1160 = vunpack.c.0.s8 %v1159
        %v1161 = vperm.slane %v1155, %v1160
        %v1163 = vunpack.c.l.s4 1934713408
        %v1164 = vunpack.c.0.s8 %v1163
        %v1165 = vperm.slane %v1157, %v1164
        %v1166 = vrot.slane %v1161, 4
        %v1167 = vsel %vm768, %v1166, %v1149
        %v1168 = vrot.slane %v1149, 4
        %v1169 = vsel %vm768, %v1161, %v1168
        %v1170 = vrot.slane %v1165, 4
        %v1171 = vsel %vm768, %v1170, %v1153
        %v1172 = vrot.slane %v1153, 4
        %v1173 = vsel %vm768, %v1165, %v1172
        %v1174 = vsel %vm768, %v1114, %v1095
        %v1176 = vunpack.c.l.s4 1983009808
        %v1177 = vunpack.c.0.s8 %v1176
        %v1178 = vperm.slane %v1174, %v1177
        %v1179 = vrot.slane %v1115, 4
        %v1180 = vsel %vm768, %v1179, %v1113
        %v1182 = vunpack.c.l.s4 1983009808
        %v1183 = vunpack.c.0.s8 %v1182
        %v1184 = vperm.slane %v1180, %v1183
        %v1185 = vsel %vm768, %v1118, %v1107
        %v1187 = vunpack.c.l.s4 1983009808
        %v1188 = vunpack.c.0.s8 %v1187
        %v1189 = vperm.slane %v1185, %v1188
        %v1190 = vrot.slane %v1119, 4
        %v1191 = vsel %vm768, %v1190, %v1117
        %v1193 = vunpack.c.l.s4 1983009808
        %v1194 = vunpack.c.0.s8 %v1193
        %v1195 = vperm.slane %v1191, %v1194
        %v1196 = vrot.slane %v1184, 4
        %v1197 = vsel %vm768, %v1196, %v1178
        %v1198 = vrot.slane %v1178, 4
        %v1199 = vsel %vm768, %v1184, %v1198
        %v1201 = vunpack.c.l.s4 1934713408
        %v1202 = vunpack.c.0.s8 %v1201
        %v1203 = vperm.slane %v1197, %v1202
        %v1205 = vunpack.c.l.s4 1934713408
        %v1206 = vunpack.c.0.s8 %v1205
        %v1207 = vperm.slane %v1199, %v1206
        %v1208 = vrot.slane %v1195, 4
        %v1209 = vsel %vm768, %v1208, %v1189
        %v1210 = vrot.slane %v1189, 4
        %v1211 = vsel %vm768, %v1195, %v1210
        %v1213 = vunpack.c.l.s4 1934713408
        %v1214 = vunpack.c.0.s8 %v1213
        %v1215 = vperm.slane %v1209, %v1214
        %v1217 = vunpack.c.l.s4 1934713408
        %v1218 = vunpack.c.0.s8 %v1217
        %v1219 = vperm.slane %v1211, %v1218
        %v1220 = vrot.slane %v1215, 4
        %v1221 = vsel %vm768, %v1220, %v1203
        %v1222 = vrot.slane %v1203, 4
        %v1223 = vsel %vm768, %v1215, %v1222
        %v1224 = vrot.slane %v1219, 4
        %v1225 = vsel %vm768, %v1224, %v1207
        %v1226 = vrot.slane %v1207, 4
        %v1227 = vsel %vm768, %v1219, %v1226
        %1230 = vrot.lane.b32.xlu0 %v742, 120
        %v1231 = vpop.permute.xlu0 %1230
        %1232 = vrot.lane.b32.xlu0 %v745, 120
        %v1233 = vpop.permute.xlu0 %1232
        %1236 = vrot.lane.b32.xlu0 %v742, 112
        %v1237 = vpop.permute.xlu0 %1236
        %1238 = vrot.lane.b32.xlu0 %v745, 112
        %v1239 = vpop.permute.xlu0 %1238
        %1242 = vrot.lane.b32.xlu0 %v742, 104
        %v1243 = vpop.permute.xlu0 %1242
        %1244 = vrot.lane.b32.xlu0 %v745, 104
        %v1245 = vpop.permute.xlu0 %1244
        %v1248 = vrot.slane %v1237, 4
        %v1249 = vsel %vm768, %v1248, %v742
        %v1250 = vrot.slane %v742, 4
        %v1251 = vsel %vm768, %v1237, %v1250
        %v1253 = vunpack.c.l.s4 1983009808
        %v1254 = vunpack.c.0.s8 %v1253
        %v1255 = vperm.slane %v1249, %v1254
        %v1257 = vunpack.c.l.s4 1983009808
        %v1258 = vunpack.c.0.s8 %v1257
        %v1259 = vperm.slane %v1251, %v1258
        %v1260 = vrot.slane %v1243, 4
        %v1261 = vsel %vm768, %v1260, %v1231
        %v1262 = vrot.slane %v1231, 4
        %v1263 = vsel %vm768, %v1243, %v1262
        %v1265 = vunpack.c.l.s4 1983009808
        %v1266 = vunpack.c.0.s8 %v1265
        %v1267 = vperm.slane %v1261, %v1266
        %v1269 = vunpack.c.l.s4 1983009808
        %v1270 = vunpack.c.0.s8 %v1269
        %v1271 = vperm.slane %v1263, %v1270
        %v1272 = vrot.slane %v1267, 4
        %v1273 = vsel %vm768, %v1272, %v1255
        %v1274 = vrot.slane %v1255, 4
        %v1275 = vsel %vm768, %v1267, %v1274
        %v1277 = vunpack.c.l.s4 1934713408
        %v1278 = vunpack.c.0.s8 %v1277
        %v1279 = vperm.slane %v1273, %v1278
        %v1281 = vunpack.c.l.s4 1934713408
        %v1282 = vunpack.c.0.s8 %v1281
        %v1283 = vperm.slane %v1275, %v1282
        %v1284 = vrot.slane %v1271, 4
        %v1285 = vsel %vm768, %v1284, %v1259
        %v1286 = vrot.slane %v1259, 4
        %v1287 = vsel %vm768, %v1271, %v1286
        %v1289 = vunpack.c.l.s4 1934713408
        %v1290 = vunpack.c.0.s8 %v1289
        %v1291 = vperm.slane %v1285, %v1290
        %v1293 = vunpack.c.l.s4 1934713408
        %v1294 = vunpack.c.0.s8 %v1293
        %v1295 = vperm.slane %v1287, %v1294
        %v1296 = vrot.slane %v1279, 4
        %v1297 = vsel %vm768, 0.0, %v1296
        %v1298 = vrot.slane %v1283, 4
        %v1299 = vsel %vm768, 0.0, %v1298
        %v1300 = vrot.slane %v1291, 4
        %v1301 = vsel %vm768, 0.0, %v1300
        %v1302 = vrot.slane %v1295, 4
        %v1303 = vsel %vm768, 0.0, %v1302
        %v1304 = vrot.slane %v1239, 4
        %v1305 = vsel %vm768, %v1304, %v745
        %v1306 = vrot.slane %v745, 4
        %v1307 = vsel %vm768, %v1239, %v1306
        %v1309 = vunpack.c.l.s4 1983009808
        %v1310 = vunpack.c.0.s8 %v1309
        %v1311 = vperm.slane %v1305, %v1310
        %v1313 = vunpack.c.l.s4 1983009808
        %v1314 = vunpack.c.0.s8 %v1313
        %v1315 = vperm.slane %v1307, %v1314
        %v1316 = vrot.slane %v1245, 4
        %v1317 = vsel %vm768, %v1316, %v1233
        %v1318 = vrot.slane %v1233, 4
        %v1319 = vsel %vm768, %v1245, %v1318
        %v1321 = vunpack.c.l.s4 1983009808
        %v1322 = vunpack.c.0.s8 %v1321
        %v1323 = vperm.slane %v1317, %v1322
        %v1325 = vunpack.c.l.s4 1983009808
        %v1326 = vunpack.c.0.s8 %v1325
        %v1327 = vperm.slane %v1319, %v1326
        %v1328 = vrot.slane %v1323, 4
        %v1329 = vsel %vm768, %v1328, %v1311
        %v1330 = vrot.slane %v1311, 4
        %v1331 = vsel %vm768, %v1323, %v1330
        %v1333 = vunpack.c.l.s4 1934713408
        %v1334 = vunpack.c.0.s8 %v1333
        %v1335 = vperm.slane %v1329, %v1334
        %v1337 = vunpack.c.l.s4 1934713408
        %v1338 = vunpack.c.0.s8 %v1337
        %v1339 = vperm.slane %v1331, %v1338
        %v1340 = vrot.slane %v1327, 4
        %v1341 = vsel %vm768, %v1340, %v1315
        %v1342 = vrot.slane %v1315, 4
        %v1343 = vsel %vm768, %v1327, %v1342
        %v1345 = vunpack.c.l.s4 1934713408
        %v1346 = vunpack.c.0.s8 %v1345
        %v1347 = vperm.slane %v1341, %v1346
        %v1349 = vunpack.c.l.s4 1934713408
        %v1350 = vunpack.c.0.s8 %v1349
        %v1351 = vperm.slane %v1343, %v1350
        %v1352 = vrot.slane %v1335, 4
        %v1353 = vsel %vm768, 0.0, %v1352
        %v1354 = vrot.slane %v1339, 4
        %v1355 = vsel %vm768, 0.0, %v1354
        %v1356 = vrot.slane %v1347, 4
        %v1357 = vsel %vm768, 0.0, %v1356
        %v1358 = vrot.slane %v1351, 4
        %v1359 = vsel %vm768, 0.0, %v1358
        %v1360 = vsel %vm768, %v1298, %v1279
        %v1362 = vunpack.c.l.s4 1983009808
        %v1363 = vunpack.c.0.s8 %v1362
        %v1364 = vperm.slane %v1360, %v1363
        %v1365 = vrot.slane %v1299, 4
        %v1366 = vsel %vm768, %v1365, %v1297
        %v1368 = vunpack.c.l.s4 1983009808
        %v1369 = vunpack.c.0.s8 %v1368
        %v1370 = vperm.slane %v1366, %v1369
        %v1371 = vsel %vm768, %v1302, %v1291
        %v1373 = vunpack.c.l.s4 1983009808
        %v1374 = vunpack.c.0.s8 %v1373
        %v1375 = vperm.slane %v1371, %v1374
        %v1376 = vrot.slane %v1303, 4
        %v1377 = vsel %vm768, %v1376, %v1301
        %v1379 = vunpack.c.l.s4 1983009808
        %v1380 = vunpack.c.0.s8 %v1379
        %v1381 = vperm.slane %v1377, %v1380
        %v1382 = vrot.slane %v1370, 4
        %v1383 = vsel %vm768, %v1382, %v1364
        %v1384 = vrot.slane %v1364, 4
        %v1385 = vsel %vm768, %v1370, %v1384
        %v1387 = vunpack.c.l.s4 1934713408
        %v1388 = vunpack.c.0.s8 %v1387
        %v1389 = vperm.slane %v1383, %v1388
        %v1391 = vunpack.c.l.s4 1934713408
        %v1392 = vunpack.c.0.s8 %v1391
        %v1393 = vperm.slane %v1385, %v1392
        %v1394 = vrot.slane %v1381, 4
        %v1395 = vsel %vm768, %v1394, %v1375
        %v1396 = vrot.slane %v1375, 4
        %v1397 = vsel %vm768, %v1381, %v1396
        %v1399 = vunpack.c.l.s4 1934713408
        %v1400 = vunpack.c.0.s8 %v1399
        %v1401 = vperm.slane %v1395, %v1400
        %v1403 = vunpack.c.l.s4 1934713408
        %v1404 = vunpack.c.0.s8 %v1403
        %v1405 = vperm.slane %v1397, %v1404
        %v1406 = vrot.slane %v1401, 4
        %v1407 = vsel %vm768, %v1406, %v1389
        %v1408 = vrot.slane %v1389, 4
        %v1409 = vsel %vm768, %v1401, %v1408
        %v1410 = vrot.slane %v1405, 4
        %v1411 = vsel %vm768, %v1410, %v1393
        %v1412 = vrot.slane %v1393, 4
        %v1413 = vsel %vm768, %v1405, %v1412
        %v1414 = vsel %vm768, %v1354, %v1335
        %v1416 = vunpack.c.l.s4 1983009808
        %v1417 = vunpack.c.0.s8 %v1416
        %v1418 = vperm.slane %v1414, %v1417
        %v1419 = vrot.slane %v1355, 4
        %v1420 = vsel %vm768, %v1419, %v1353
        %v1422 = vunpack.c.l.s4 1983009808
        %v1423 = vunpack.c.0.s8 %v1422
        %v1424 = vperm.slane %v1420, %v1423
        %v1425 = vsel %vm768, %v1358, %v1347
        %v1427 = vunpack.c.l.s4 1983009808
        %v1428 = vunpack.c.0.s8 %v1427
        %v1429 = vperm.slane %v1425, %v1428
        %v1430 = vrot.slane %v1359, 4
        %v1431 = vsel %vm768, %v1430, %v1357
        %v1433 = vunpack.c.l.s4 1983009808
        %v1434 = vunpack.c.0.s8 %v1433
        %v1435 = vperm.slane %v1431, %v1434
        %v1436 = vrot.slane %v1424, 4
        %v1437 = vsel %vm768, %v1436, %v1418
        %v1438 = vrot.slane %v1418, 4
        %v1439 = vsel %vm768, %v1424, %v1438
        %v1441 = vunpack.c.l.s4 1934713408
        %v1442 = vunpack.c.0.s8 %v1441
        %v1443 = vperm.slane %v1437, %v1442
        %v1445 = vunpack.c.l.s4 1934713408
        %v1446 = vunpack.c.0.s8 %v1445
        %v1447 = vperm.slane %v1439, %v1446
        %v1448 = vrot.slane %v1435, 4
        %v1449 = vsel %vm768, %v1448, %v1429
        %v1450 = vrot.slane %v1429, 4
        %v1451 = vsel %vm768, %v1435, %v1450
        %v1453 = vunpack.c.l.s4 1934713408
        %v1454 = vunpack.c.0.s8 %v1453
        %v1455 = vperm.slane %v1449, %v1454
        %v1457 = vunpack.c.l.s4 1934713408
        %v1458 = vunpack.c.0.s8 %v1457
        %v1459 = vperm.slane %v1451, %v1458
        %v1460 = vrot.slane %v1455, 4
        %v1461 = vsel %vm768, %v1460, %v1443
        %v1462 = vrot.slane %v1443, 4
        %v1463 = vsel %vm768, %v1455, %v1462
        %v1464 = vrot.slane %v1459, 4
        %v1465 = vsel %vm768, %v1464, %v1447
        %v1466 = vrot.slane %v1447, 4
        %v1467 = vsel %vm768, %v1459, %v1466
        %vm1468 = vcmask 64512
        %v1470 = vsel %vm1468, %v927, 0
        %v1473 = vsel %vm1468, %v1167, 0
        %1475 = vmatpush.xpose.msra.mxu0 0.0
        %1476 = vmatpush.xpose.msra.mxu0 0.0
        %1477 = vmatpush.xpose.msra.mxu0 0.0
        %1478 = vmatpush.xpose.msra.mxu0 0.0
        %1479 = vmatpush.xpose.msra.mxu0 0.0
        %1480 = vmatpush.xpose.msra.mxu0 0.0
        %1481 = vmatpush.xpose.msra.mxu0 0.0
        %1482 = vmatpush.xpose.msra.mxu0 0.0
        %1483 = vmatpush.xpose.msra.mxu0 0.0
        %1484 = vmatpush.xpose.msra.mxu0 0.0
        %1485 = vmatpush.xpose.msra.mxu0 0.0
        %1486 = vmatpush.xpose.msra.mxu0 0.0
        %1487 = vmatpush.xpose.msra.mxu0 0.0
        %1488 = vmatpush.xpose.msra.mxu0 0.0
        %1489 = vmatpush.xpose.msra.mxu0 0.0
        %1490 = vmatpush.xpose.msra.mxu0 %v1473
        %1491 = vmatmul.f32.gmra.mxu0 %v1470
        %v1492 = vpop.f32.mrf.mxu0
        %v1493 = vadd.f32 0.0, %v1492
        %1494 = vdwg.mxu0
        %v1496 = vsel %vm1468, %v929, 0
        %v1499 = vsel %vm1468, %v1169, 0
        %1501 = vmatpush.xpose.msra.mxu0 0.0
        %1502 = vmatpush.xpose.msra.mxu0 0.0
        %1503 = vmatpush.xpose.msra.mxu0 0.0
        %1504 = vmatpush.xpose.msra.mxu0 0.0
        %1505 = vmatpush.xpose.msra.mxu0 0.0
        %1506 = vmatpush.xpose.msra.mxu0 0.0
        %1507 = vmatpush.xpose.msra.mxu0 0.0
        %1508 = vmatpush.xpose.msra.mxu0 0.0
        %1509 = vmatpush.xpose.msra.mxu0 0.0
        %1510 = vmatpush.xpose.msra.mxu0 0.0
        %1511 = vmatpush.xpose.msra.mxu0 0.0
        %1512 = vmatpush.xpose.msra.mxu0 0.0
        %1513 = vmatpush.xpose.msra.mxu0 0.0
        %1514 = vmatpush.xpose.msra.mxu0 0.0
        %1515 = vmatpush.xpose.msra.mxu0 0.0
        %1516 = vmatpush.xpose.msra.mxu0 %v1499
        %1517 = vmatmul.f32.gmra.mxu0 %v1496
        %v1518 = vpop.f32.mrf.mxu0
        %v1519 = vadd.f32 0.0, %v1518
        %1520 = vdwg.mxu0
        %v1522 = vsel %vm1468, %v931, 0
        %v1525 = vsel %vm1468, %v1171, 0
        %1527 = vmatpush.xpose.msra.mxu0 0.0
        %1528 = vmatpush.xpose.msra.mxu0 0.0
        %1529 = vmatpush.xpose.msra.mxu0 0.0
        %1530 = vmatpush.xpose.msra.mxu0 0.0
        %1531 = vmatpush.xpose.msra.mxu0 0.0
        %1532 = vmatpush.xpose.msra.mxu0 0.0
        %1533 = vmatpush.xpose.msra.mxu0 0.0
        %1534 = vmatpush.xpose.msra.mxu0 0.0
        %1535 = vmatpush.xpose.msra.mxu0 0.0
        %1536 = vmatpush.xpose.msra.mxu0 0.0
        %1537 = vmatpush.xpose.msra.mxu0 0.0
        %1538 = vmatpush.xpose.msra.mxu0 0.0
        %1539 = vmatpush.xpose.msra.mxu0 0.0
        %1540 = vmatpush.xpose.msra.mxu0 0.0
        %1541 = vmatpush.xpose.msra.mxu0 0.0
        %1542 = vmatpush.xpose.msra.mxu0 %v1525
        %1543 = vmatmul.f32.gmra.mxu0 %v1522
        %v1544 = vpop.f32.mrf.mxu0
        %v1545 = vadd.f32 0.0, %v1544
        %1546 = vdwg.mxu0
        %v1548 = vsel %vm1468, %v933, 0
        %v1551 = vsel %vm1468, %v1173, 0
        %1553 = vmatpush.xpose.msra.mxu0 0.0
        %1554 = vmatpush.xpose.msra.mxu0 0.0
        %1555 = vmatpush.xpose.msra.mxu0 0.0
        %1556 = vmatpush.xpose.msra.mxu0 0.0
        %1557 = vmatpush.xpose.msra.mxu0 0.0
        %1558 = vmatpush.xpose.msra.mxu0 0.0
        %1559 = vmatpush.xpose.msra.mxu0 0.0
        %1560 = vmatpush.xpose.msra.mxu0 0.0
        %1561 = vmatpush.xpose.msra.mxu0 0.0
        %1562 = vmatpush.xpose.msra.mxu0 0.0
        %1563 = vmatpush.xpose.msra.mxu0 0.0
        %1564 = vmatpush.xpose.msra.mxu0 0.0
        %1565 = vmatpush.xpose.msra.mxu0 0.0
        %1566 = vmatpush.xpose.msra.mxu0 0.0
        %1567 = vmatpush.xpose.msra.mxu0 0.0
        %1568 = vmatpush.xpose.msra.mxu0 %v1551
        %1569 = vmatmul.f32.gmra.mxu0 %v1548
        %v1570 = vpop.f32.mrf.mxu0
        %v1571 = vadd.f32 0.0, %v1570
        %1572 = vdwg.mxu0
        %v1574 = vsel %vm1468, %v981, 0
        %v1577 = vsel %vm1468, %v1221, 0
        %1579 = vmatpush.xpose.msra.mxu0 0.0
        %1580 = vmatpush.xpose.msra.mxu0 0.0
        %1581 = vmatpush.xpose.msra.mxu0 0.0
        %1582 = vmatpush.xpose.msra.mxu0 0.0
        %1583 = vmatpush.xpose.msra.mxu0 0.0
        %1584 = vmatpush.xpose.msra.mxu0 0.0
        %1585 = vmatpush.xpose.msra.mxu0 0.0
        %1586 = vmatpush.xpose.msra.mxu0 0.0
        %1587 = vmatpush.xpose.msra.mxu0 0.0
        %1588 = vmatpush.xpose.msra.mxu0 0.0
        %1589 = vmatpush.xpose.msra.mxu0 0.0
        %1590 = vmatpush.xpose.msra.mxu0 0.0
        %1591 = vmatpush.xpose.msra.mxu0 0.0
        %1592 = vmatpush.xpose.msra.mxu0 0.0
        %1593 = vmatpush.xpose.msra.mxu0 0.0
        %1594 = vmatpush.xpose.msra.mxu0 %v1577
        %1595 = vmatmul.f32.gmra.mxu0 %v1574
        %v1596 = vpop.f32.mrf.mxu0
        %v1597 = vadd.f32 0.0, %v1596
        %1598 = vdwg.mxu0
        %v1600 = vsel %vm1468, %v983, 0
        %v1603 = vsel %vm1468, %v1223, 0
        %1605 = vmatpush.xpose.msra.mxu0 0.0
        %1606 = vmatpush.xpose.msra.mxu0 0.0
        %1607 = vmatpush.xpose.msra.mxu0 0.0
        %1608 = vmatpush.xpose.msra.mxu0 0.0
        %1609 = vmatpush.xpose.msra.mxu0 0.0
        %1610 = vmatpush.xpose.msra.mxu0 0.0
        %1611 = vmatpush.xpose.msra.mxu0 0.0
        %1612 = vmatpush.xpose.msra.mxu0 0.0
        %1613 = vmatpush.xpose.msra.mxu0 0.0
        %1614 = vmatpush.xpose.msra.mxu0 0.0
        %1615 = vmatpush.xpose.msra.mxu0 0.0
        %1616 = vmatpush.xpose.msra.mxu0 0.0
        %1617 = vmatpush.xpose.msra.mxu0 0.0
        %1618 = vmatpush.xpose.msra.mxu0 0.0
        %1619 = vmatpush.xpose.msra.mxu0 0.0
        %1620 = vmatpush.xpose.msra.mxu0 %v1603
        %1621 = vmatmul.f32.gmra.mxu0 %v1600
        %v1622 = vpop.f32.mrf.mxu0
        %v1623 = vadd.f32 0.0, %v1622
        %1624 = vdwg.mxu0
        %v1626 = vsel %vm1468, %v985, 0
        %v1629 = vsel %vm1468, %v1225, 0
        %1631 = vmatpush.xpose.msra.mxu0 0.0
        %1632 = vmatpush.xpose.msra.mxu0 0.0
        %1633 = vmatpush.xpose.msra.mxu0 0.0
        %1634 = vmatpush.xpose.msra.mxu0 0.0
        %1635 = vmatpush.xpose.msra.mxu0 0.0
        %1636 = vmatpush.xpose.msra.mxu0 0.0
        %1637 = vmatpush.xpose.msra.mxu0 0.0
        %1638 = vmatpush.xpose.msra.mxu0 0.0
        %1639 = vmatpush.xpose.msra.mxu0 0.0
        %1640 = vmatpush.xpose.msra.mxu0 0.0
        %1641 = vmatpush.xpose.msra.mxu0 0.0
        %1642 = vmatpush.xpose.msra.mxu0 0.0
        %1643 = vmatpush.xpose.msra.mxu0 0.0
        %1644 = vmatpush.xpose.msra.mxu0 0.0
        %1645 = vmatpush.xpose.msra.mxu0 0.0
        %1646 = vmatpush.xpose.msra.mxu0 %v1629
        %1647 = vmatmul.f32.gmra.mxu0 %v1626
        %v1648 = vpop.f32.mrf.mxu0
        %v1649 = vadd.f32 0.0, %v1648
        %1650 = vdwg.mxu0
        %v1652 = vsel %vm1468, %v987, 0
        %v1655 = vsel %vm1468, %v1227, 0
        %1657 = vmatpush.xpose.msra.mxu0 0.0
        %1658 = vmatpush.xpose.msra.mxu0 0.0
        %1659 = vmatpush.xpose.msra.mxu0 0.0
        %1660 = vmatpush.xpose.msra.mxu0 0.0
        %1661 = vmatpush.xpose.msra.mxu0 0.0
        %1662 = vmatpush.xpose.msra.mxu0 0.0
        %1663 = vmatpush.xpose.msra.mxu0 0.0
        %1664 = vmatpush.xpose.msra.mxu0 0.0
        %1665 = vmatpush.xpose.msra.mxu0 0.0
        %1666 = vmatpush.xpose.msra.mxu0 0.0
        %1667 = vmatpush.xpose.msra.mxu0 0.0
        %1668 = vmatpush.xpose.msra.mxu0 0.0
        %1669 = vmatpush.xpose.msra.mxu0 0.0
        %1670 = vmatpush.xpose.msra.mxu0 0.0
        %1671 = vmatpush.xpose.msra.mxu0 0.0
        %1672 = vmatpush.xpose.msra.mxu0 %v1655
        %1673 = vmatmul.f32.gmra.mxu0 %v1652
        %v1674 = vpop.f32.mrf.mxu0
        %v1675 = vadd.f32 0.0, %v1674
        %1676 = vdwg.mxu0
        %v1677 = vsel %vm1468, %v1493, -inf
        %1678 = vmax.xlane.f32.xlu0 %v1677
        %v1679 = vpop.xlane.xlu0 %1678
        %v1680 = vsel %vm1468, %v1519, -inf
        %1681 = vmax.xlane.f32.xlu0 %v1680
        %v1682 = vpop.xlane.xlu0 %1681
        %v1683 = vsel %vm1468, %v1545, -inf
        %1684 = vmax.xlane.f32.xlu0 %v1683
        %v1685 = vpop.xlane.xlu0 %1684
        %v1686 = vsel %vm1468, %v1571, -inf
        %1687 = vmax.xlane.f32.xlu0 %v1686
        %v1688 = vpop.xlane.xlu0 %1687
        %v1689 = vsel %vm1468, %v1597, -inf
        %1690 = vmax.xlane.f32.xlu0 %v1689
        %v1691 = vpop.xlane.xlu0 %1690
        %v1692 = vsel %vm1468, %v1623, -inf
        %1693 = vmax.xlane.f32.xlu0 %v1692
        %v1694 = vpop.xlane.xlu0 %1693
        %v1695 = vsel %vm1468, %v1649, -inf
        %1696 = vmax.xlane.f32.xlu0 %v1695
        %v1697 = vpop.xlane.xlu0 %1696
        %v1698 = vsel %vm1468, %v1675, -inf
        %1699 = vmax.xlane.f32.xlu0 %v1698
        %v1700 = vpop.xlane.xlu0 %1699
        %v1701 = vsub.f32 %v1493, %v1679
        %v1702 = vsub.f32 %v1519, %v1682
        %v1703 = vsub.f32 %v1545, %v1685
        %v1704 = vsub.f32 %v1571, %v1688
        %v1705 = vsub.f32 %v1597, %v1691
        %v1706 = vsub.f32 %v1623, %v1694
        %v1707 = vsub.f32 %v1649, %v1697
        %v1708 = vsub.f32 %v1675, %v1700
        %v1709 = vmul.f32 %v1701, 1.442695
        %v1710 = vpow.pop %v1709
        %v1711 = vmul.f32 %v1702, 1.442695
        %v1712 = vpow.pop %v1711
        %v1713 = vmul.f32 %v1703, 1.442695
        %v1714 = vpow.pop %v1713
        %v1715 = vmul.f32 %v1704, 1.442695
        %v1716 = vpow.pop %v1715
        %v1717 = vmul.f32 %v1705, 1.442695
        %v1718 = vpow.pop %v1717
        %v1719 = vmul.f32 %v1706, 1.442695
        %v1720 = vpow.pop %v1719
        %v1721 = vmul.f32 %v1707, 1.442695
        %v1722 = vpow.pop %v1721
        %v1723 = vmul.f32 %v1708, 1.442695
        %v1724 = vpow.pop %v1723
        %v1725 = vsel %vm1468, %v1710, 0.0
        %1726 = vadd.xlane.f32.xlu0 %v1725
        %v1727 = vpop.xlane.xlu0 %1726
        %v1728 = vsel %vm1468, %v1712, 0.0
        %1729 = vadd.xlane.f32.xlu0 %v1728
        %v1730 = vpop.xlane.xlu0 %1729
        %v1731 = vsel %vm1468, %v1714, 0.0
        %1732 = vadd.xlane.f32.xlu0 %v1731
        %v1733 = vpop.xlane.xlu0 %1732
        %v1734 = vsel %vm1468, %v1716, 0.0
        %1735 = vadd.xlane.f32.xlu0 %v1734
        %v1736 = vpop.xlane.xlu0 %1735
        %v1737 = vsel %vm1468, %v1718, 0.0
        %1738 = vadd.xlane.f32.xlu0 %v1737
        %v1739 = vpop.xlane.xlu0 %1738
        %v1740 = vsel %vm1468, %v1720, 0.0
        %1741 = vadd.xlane.f32.xlu0 %v1740
        %v1742 = vpop.xlane.xlu0 %1741
        %v1743 = vsel %vm1468, %v1722, 0.0
        %1744 = vadd.xlane.f32.xlu0 %v1743
        %v1745 = vpop.xlane.xlu0 %1744
        %v1746 = vsel %vm1468, %v1724, 0.0
        %1747 = vadd.xlane.f32.xlu0 %v1746
        %v1748 = vpop.xlane.xlu0 %1747
        %v1749 = vrcp.pop %v1727
        %v1750 = vmul.f32 %v1727, %v1749
        %v1751 = vsub.f32 1.0, %v1750
        %v1752 = vmul.f32 %v1749, %v1751
        %v1753 = vadd.f32 %v1749, %v1752
        %vm1754 = vweird.f32 %v1727
        %vm1755 = vweird.f32 %v1749
        %vm1756 = vmor %vm1754, %vm1755
        %v1757 = vsel %vm1756, %v1749, %v1753
        %v1758 = vand.u32 2147483647, %v1727
        %vm1759 = vcmp.eq.f32.partialorder %v1758, 8.507059e+37
        %v1760 = vand.u32 %v1727, 2147483648
        %v1761 = vor.u32 1.1754944e-38, %v1760
        %v1762 = vsel %vm1759, %v1761, %v1757
        %v1763 = vmul.f32 %v1710, %v1762
        %v1764 = vrcp.pop %v1730
        %v1765 = vmul.f32 %v1730, %v1764
        %v1766 = vsub.f32 1.0, %v1765
        %v1767 = vmul.f32 %v1764, %v1766
        %v1768 = vadd.f32 %v1764, %v1767
        %vm1769 = vweird.f32 %v1730
        %vm1770 = vweird.f32 %v1764
        %vm1771 = vmor %vm1769, %vm1770
        %v1772 = vsel %vm1771, %v1764, %v1768
        %v1773 = vand.u32 2147483647, %v1730
        %vm1774 = vcmp.eq.f32.partialorder %v1773, 8.507059e+37
        %v1775 = vand.u32 %v1730, 2147483648
        %v1776 = vor.u32 1.1754944e-38, %v1775
        %v1777 = vsel %vm1774, %v1776, %v1772
        %v1778 = vmul.f32 %v1712, %v1777
        %v1779 = vrcp.pop %v1733
        %v1780 = vmul.f32 %v1733, %v1779
        %v1781 = vsub.f32 1.0, %v1780
        %v1782 = vmul.f32 %v1779, %v1781
        %v1783 = vadd.f32 %v1779, %v1782
        %vm1784 = vweird.f32 %v1733
        %vm1785 = vweird.f32 %v1779
        %vm1786 = vmor %vm1784, %vm1785
        %v1787 = vsel %vm1786, %v1779, %v1783
        %v1788 = vand.u32 2147483647, %v1733
        %vm1789 = vcmp.eq.f32.partialorder %v1788, 8.507059e+37
        %v1790 = vand.u32 %v1733, 2147483648
        %v1791 = vor.u32 1.1754944e-38, %v1790
        %v1792 = vsel %vm1789, %v1791, %v1787
        %v1793 = vmul.f32 %v1714, %v1792
        %v1794 = vrcp.pop %v1736
        %v1795 = vmul.f32 %v1736, %v1794
        %v1796 = vsub.f32 1.0, %v1795
        %v1797 = vmul.f32 %v1794, %v1796
        %v1798 = vadd.f32 %v1794, %v1797
        %vm1799 = vweird.f32 %v1736
        %vm1800 = vweird.f32 %v1794
        %vm1801 = vmor %vm1799, %vm1800
        %v1802 = vsel %vm1801, %v1794, %v1798
        %v1803 = vand.u32 2147483647, %v1736
        %vm1804 = vcmp.eq.f32.partialorder %v1803, 8.507059e+37
        %v1805 = vand.u32 %v1736, 2147483648
        %v1806 = vor.u32 1.1754944e-38, %v1805
        %v1807 = vsel %vm1804, %v1806, %v1802
        %v1808 = vmul.f32 %v1716, %v1807
        %v1809 = vrcp.pop %v1739
        %v1810 = vmul.f32 %v1739, %v1809
        %v1811 = vsub.f32 1.0, %v1810
        %v1812 = vmul.f32 %v1809, %v1811
        %v1813 = vadd.f32 %v1809, %v1812
        %vm1814 = vweird.f32 %v1739
        %vm1815 = vweird.f32 %v1809
        %vm1816 = vmor %vm1814, %vm1815
        %v1817 = vsel %vm1816, %v1809, %v1813
        %v1818 = vand.u32 2147483647, %v1739
        %vm1819 = vcmp.eq.f32.partialorder %v1818, 8.507059e+37
        %v1820 = vand.u32 %v1739, 2147483648
        %v1821 = vor.u32 1.1754944e-38, %v1820
        %v1822 = vsel %vm1819, %v1821, %v1817
        %v1823 = vmul.f32 %v1718, %v1822
        %v1824 = vrcp.pop %v1742
        %v1825 = vmul.f32 %v1742, %v1824
        %v1826 = vsub.f32 1.0, %v1825
        %v1827 = vmul.f32 %v1824, %v1826
        %v1828 = vadd.f32 %v1824, %v1827
        %vm1829 = vweird.f32 %v1742
        %vm1830 = vweird.f32 %v1824
        %vm1831 = vmor %vm1829, %vm1830
        %v1832 = vsel %vm1831, %v1824, %v1828
        %v1833 = vand.u32 2147483647, %v1742
        %vm1834 = vcmp.eq.f32.partialorder %v1833, 8.507059e+37
        %v1835 = vand.u32 %v1742, 2147483648
        %v1836 = vor.u32 1.1754944e-38, %v1835
        %v1837 = vsel %vm1834, %v1836, %v1832
        %v1838 = vmul.f32 %v1720, %v1837
        %v1839 = vrcp.pop %v1745
        %v1840 = vmul.f32 %v1745, %v1839
        %v1841 = vsub.f32 1.0, %v1840
        %v1842 = vmul.f32 %v1839, %v1841
        %v1843 = vadd.f32 %v1839, %v1842
        %vm1844 = vweird.f32 %v1745
        %vm1845 = vweird.f32 %v1839
        %vm1846 = vmor %vm1844, %vm1845
        %v1847 = vsel %vm1846, %v1839, %v1843
        %v1848 = vand.u32 2147483647, %v1745
        %vm1849 = vcmp.eq.f32.partialorder %v1848, 8.507059e+37
        %v1850 = vand.u32 %v1745, 2147483648
        %v1851 = vor.u32 1.1754944e-38, %v1850
        %v1852 = vsel %vm1849, %v1851, %v1847
        %v1853 = vmul.f32 %v1722, %v1852
        %v1854 = vrcp.pop %v1748
        %v1855 = vmul.f32 %v1748, %v1854
        %v1856 = vsub.f32 1.0, %v1855
        %v1857 = vmul.f32 %v1854, %v1856
        %v1858 = vadd.f32 %v1854, %v1857
        %vm1859 = vweird.f32 %v1748
        %vm1860 = vweird.f32 %v1854
        %vm1861 = vmor %vm1859, %vm1860
        %v1862 = vsel %vm1861, %v1854, %v1858
        %v1863 = vand.u32 2147483647, %v1748
        %vm1864 = vcmp.eq.f32.partialorder %v1863, 8.507059e+37
        %v1865 = vand.u32 %v1748, 2147483648
        %v1866 = vor.u32 1.1754944e-38, %v1865
        %v1867 = vsel %vm1864, %v1866, %v1862
        %v1868 = vmul.f32 %v1724, %v1867
        %v1870 = vsel %vm1468, %v1763, 0
        %1872 = vmatpush.msra.mxu0 0.0
        %1873 = vmatpush.msra.mxu0 0.0
        %1874 = vmatpush.msra.mxu0 0.0
        %1875 = vmatpush.msra.mxu0 0.0
        %1876 = vmatpush.msra.mxu0 0.0
        %1877 = vmatpush.msra.mxu0 0.0
        %1878 = vmatpush.msra.mxu0 0.0
        %1879 = vmatpush.msra.mxu0 0.0
        %1880 = vmatpush.msra.mxu0 0.0
        %1881 = vmatpush.msra.mxu0 0.0
        %1882 = vmatpush.msra.mxu0 0.0
        %1883 = vmatpush.msra.mxu0 0.0
        %1884 = vmatpush.msra.mxu0 0.0
        %1885 = vmatpush.msra.mxu0 0.0
        %1886 = vmatpush.msra.mxu0 0.0
        %1887 = vmatpush.msra.mxu0 %v1407
        %1888 = vmatmul.f32.gmra.mxu0 %v1870
        %v1889 = vpop.f32.mrf.mxu0
        %v1890 = vadd.f32 0.0, %v1889
        %1891 = vdwg.mxu0
        %v1893 = vsel %vm1468, %v1778, 0
        %1895 = vmatpush.msra.mxu0 0.0
        %1896 = vmatpush.msra.mxu0 0.0
        %1897 = vmatpush.msra.mxu0 0.0
        %1898 = vmatpush.msra.mxu0 0.0
        %1899 = vmatpush.msra.mxu0 0.0
        %1900 = vmatpush.msra.mxu0 0.0
        %1901 = vmatpush.msra.mxu0 0.0
        %1902 = vmatpush.msra.mxu0 0.0
        %1903 = vmatpush.msra.mxu0 0.0
        %1904 = vmatpush.msra.mxu0 0.0
        %1905 = vmatpush.msra.mxu0 0.0
        %1906 = vmatpush.msra.mxu0 0.0
        %1907 = vmatpush.msra.mxu0 0.0
        %1908 = vmatpush.msra.mxu0 0.0
        %1909 = vmatpush.msra.mxu0 0.0
        %1910 = vmatpush.msra.mxu0 %v1409
        %1911 = vmatmul.f32.gmra.mxu0 %v1893
        %v1912 = vpop.f32.mrf.mxu0
        %v1913 = vadd.f32 0.0, %v1912
        %1914 = vdwg.mxu0
        %v1916 = vsel %vm1468, %v1793, 0
        %1918 = vmatpush.msra.mxu0 0.0
        %1919 = vmatpush.msra.mxu0 0.0
        %1920 = vmatpush.msra.mxu0 0.0
        %1921 = vmatpush.msra.mxu0 0.0
        %1922 = vmatpush.msra.mxu0 0.0
        %1923 = vmatpush.msra.mxu0 0.0
        %1924 = vmatpush.msra.mxu0 0.0
        %1925 = vmatpush.msra.mxu0 0.0
        %1926 = vmatpush.msra.mxu0 0.0
        %1927 = vmatpush.msra.mxu0 0.0
        %1928 = vmatpush.msra.mxu0 0.0
        %1929 = vmatpush.msra.mxu0 0.0
        %1930 = vmatpush.msra.mxu0 0.0
        %1931 = vmatpush.msra.mxu0 0.0
        %1932 = vmatpush.msra.mxu0 0.0
        %1933 = vmatpush.msra.mxu0 %v1411
        %1934 = vmatmul.f32.gmra.mxu0 %v1916
        %v1935 = vpop.f32.mrf.mxu0
        %v1936 = vadd.f32 0.0, %v1935
        %1937 = vdwg.mxu0
        %v1939 = vsel %vm1468, %v1808, 0
        %1941 = vmatpush.msra.mxu0 0.0
        %1942 = vmatpush.msra.mxu0 0.0
        %1943 = vmatpush.msra.mxu0 0.0
        %1944 = vmatpush.msra.mxu0 0.0
        %1945 = vmatpush.msra.mxu0 0.0
        %1946 = vmatpush.msra.mxu0 0.0
        %1947 = vmatpush.msra.mxu0 0.0
        %1948 = vmatpush.msra.mxu0 0.0
        %1949 = vmatpush.msra.mxu0 0.0
        %1950 = vmatpush.msra.mxu0 0.0
        %1951 = vmatpush.msra.mxu0 0.0
        %1952 = vmatpush.msra.mxu0 0.0
        %1953 = vmatpush.msra.mxu0 0.0
        %1954 = vmatpush.msra.mxu0 0.0
        %1955 = vmatpush.msra.mxu0 0.0
        %1956 = vmatpush.msra.mxu0 %v1413
        %1957 = vmatmul.f32.gmra.mxu0 %v1939
        %v1958 = vpop.f32.mrf.mxu0
        %v1959 = vadd.f32 0.0, %v1958
        %1960 = vdwg.mxu0
        %v1962 = vsel %vm1468, %v1823, 0
        %1964 = vmatpush.msra.mxu0 0.0
        %1965 = vmatpush.msra.mxu0 0.0
        %1966 = vmatpush.msra.mxu0 0.0
        %1967 = vmatpush.msra.mxu0 0.0
        %1968 = vmatpush.msra.mxu0 0.0
        %1969 = vmatpush.msra.mxu0 0.0
        %1970 = vmatpush.msra.mxu0 0.0
        %1971 = vmatpush.msra.mxu0 0.0
        %1972 = vmatpush.msra.mxu0 0.0
        %1973 = vmatpush.msra.mxu0 0.0
        %1974 = vmatpush.msra.mxu0 0.0
        %1975 = vmatpush.msra.mxu0 0.0
        %1976 = vmatpush.msra.mxu0 0.0
        %1977 = vmatpush.msra.mxu0 0.0
        %1978 = vmatpush.msra.mxu0 0.0
        %1979 = vmatpush.msra.mxu0 %v1461
        %1980 = vmatmul.f32.gmra.mxu0 %v1962
        %v1981 = vpop.f32.mrf.mxu0
        %v1982 = vadd.f32 0.0, %v1981
        %1983 = vdwg.mxu0
        %v1985 = vsel %vm1468, %v1838, 0
        %1987 = vmatpush.msra.mxu0 0.0
        %1988 = vmatpush.msra.mxu0 0.0
        %1989 = vmatpush.msra.mxu0 0.0
        %1990 = vmatpush.msra.mxu0 0.0
        %1991 = vmatpush.msra.mxu0 0.0
        %1992 = vmatpush.msra.mxu0 0.0
        %1993 = vmatpush.msra.mxu0 0.0
        %1994 = vmatpush.msra.mxu0 0.0
        %1995 = vmatpush.msra.mxu0 0.0
        %1996 = vmatpush.msra.mxu0 0.0
        %1997 = vmatpush.msra.mxu0 0.0
        %1998 = vmatpush.msra.mxu0 0.0
        %1999 = vmatpush.msra.mxu0 0.0
        %2000 = vmatpush.msra.mxu0 0.0
        %2001 = vmatpush.msra.mxu0 0.0
        %2002 = vmatpush.msra.mxu0 %v1463
        %2003 = vmatmul.f32.gmra.mxu0 %v1985
        %v2004 = vpop.f32.mrf.mxu0
        %v2005 = vadd.f32 0.0, %v2004
        %2006 = vdwg.mxu0
        %v2008 = vsel %vm1468, %v1853, 0
        %2010 = vmatpush.msra.mxu0 0.0
        %2011 = vmatpush.msra.mxu0 0.0
        %2012 = vmatpush.msra.mxu0 0.0
        %2013 = vmatpush.msra.mxu0 0.0
        %2014 = vmatpush.msra.mxu0 0.0
        %2015 = vmatpush.msra.mxu0 0.0
        %2016 = vmatpush.msra.mxu0 0.0
        %2017 = vmatpush.msra.mxu0 0.0
        %2018 = vmatpush.msra.mxu0 0.0
        %2019 = vmatpush.msra.mxu0 0.0
        %2020 = vmatpush.msra.mxu0 0.0
        %2021 = vmatpush.msra.mxu0 0.0
        %2022 = vmatpush.msra.mxu0 0.0
        %2023 = vmatpush.msra.mxu0 0.0
        %2024 = vmatpush.msra.mxu0 0.0
        %2025 = vmatpush.msra.mxu0 %v1465
        %2026 = vmatmul.f32.gmra.mxu0 %v2008
        %v2027 = vpop.f32.mrf.mxu0
        %v2028 = vadd.f32 0.0, %v2027
        %2029 = vdwg.mxu0
        %v2031 = vsel %vm1468, %v1868, 0
        %2033 = vmatpush.msra.mxu0 0.0
        %2034 = vmatpush.msra.mxu0 0.0
        %2035 = vmatpush.msra.mxu0 0.0
        %2036 = vmatpush.msra.mxu0 0.0
        %2037 = vmatpush.msra.mxu0 0.0
        %2038 = vmatpush.msra.mxu0 0.0
        %2039 = vmatpush.msra.mxu0 0.0
        %2040 = vmatpush.msra.mxu0 0.0
        %2041 = vmatpush.msra.mxu0 0.0
        %2042 = vmatpush.msra.mxu0 0.0
        %2043 = vmatpush.msra.mxu0 0.0
        %2044 = vmatpush.msra.mxu0 0.0
        %2045 = vmatpush.msra.mxu0 0.0
        %2046 = vmatpush.msra.mxu0 0.0
        %2047 = vmatpush.msra.mxu0 0.0
        %2048 = vmatpush.msra.mxu0 %v1467
        %2049 = vmatmul.f32.gmra.mxu0 %v2031
        %v2050 = vpop.f32.mrf.mxu0
        %v2051 = vadd.f32 0.0, %v2050
        %2052 = vdwg.mxu0
        %v2053 = vrot.slane %v1936, 4
        %v2054 = vsel %vm768, %v2053, %v1890
        %v2055 = vrot.slane %v1890, 4
        %v2056 = vsel %vm768, %v1936, %v2055
        %v2058 = vunpack.c.l.s4 1983009808
        %v2059 = vunpack.c.0.s8 %v2058
        %v2060 = vperm.slane %v2054, %v2059
        %v2062 = vunpack.c.l.s4 1983009808
        %v2063 = vunpack.c.0.s8 %v2062
        %v2064 = vperm.slane %v2056, %v2063
        %v2065 = vrot.slane %v1959, 4
        %v2066 = vsel %vm768, %v2065, %v1913
        %v2067 = vrot.slane %v1913, 4
        %v2068 = vsel %vm768, %v1959, %v2067
        %v2070 = vunpack.c.l.s4 1983009808
        %v2071 = vunpack.c.0.s8 %v2070
        %v2072 = vperm.slane %v2066, %v2071
        %v2074 = vunpack.c.l.s4 1983009808
        %v2075 = vunpack.c.0.s8 %v2074
        %v2076 = vperm.slane %v2068, %v2075
        %v2077 = vrot.slane %v2072, 4
        %v2078 = vsel %vm768, %v2077, %v2060
        %v2079 = vrot.slane %v2060, 4
        %v2080 = vsel %vm768, %v2072, %v2079
        %v2082 = vunpack.c.l.s4 1934713408
        %v2083 = vunpack.c.0.s8 %v2082
        %v2084 = vperm.slane %v2078, %v2083
        %v2086 = vunpack.c.l.s4 1934713408
        %v2087 = vunpack.c.0.s8 %v2086
        %v2088 = vperm.slane %v2080, %v2087
        %v2089 = vrot.slane %v2076, 4
        %v2090 = vsel %vm768, %v2089, %v2064
        %v2091 = vrot.slane %v2064, 4
        %v2092 = vsel %vm768, %v2076, %v2091
        %v2094 = vunpack.c.l.s4 1934713408
        %v2095 = vunpack.c.0.s8 %v2094
        %v2096 = vperm.slane %v2090, %v2095
        %v2098 = vunpack.c.l.s4 1934713408
        %v2099 = vunpack.c.0.s8 %v2098
        %v2100 = vperm.slane %v2092, %v2099
        %v2101 = vrot.slane %v2084, 4
        %v2102 = vsel %vm768, 0.0, %v2101
        %v2103 = vrot.slane %v2088, 4
        %v2104 = vsel %vm768, 0.0, %v2103
        %v2105 = vrot.slane %v2096, 4
        %v2106 = vsel %vm768, 0.0, %v2105
        %v2107 = vrot.slane %v2100, 4
        %v2108 = vsel %vm768, 0.0, %v2107
        %v2109 = vrot.slane %v2028, 4
        %v2110 = vsel %vm768, %v2109, %v1982
        %v2111 = vrot.slane %v1982, 4
        %v2112 = vsel %vm768, %v2028, %v2111
        %v2114 = vunpack.c.l.s4 1983009808
        %v2115 = vunpack.c.0.s8 %v2114
        %v2116 = vperm.slane %v2110, %v2115
        %v2118 = vunpack.c.l.s4 1983009808
        %v2119 = vunpack.c.0.s8 %v2118
        %v2120 = vperm.slane %v2112, %v2119
        %v2121 = vrot.slane %v2051, 4
        %v2122 = vsel %vm768, %v2121, %v2005
        %v2123 = vrot.slane %v2005, 4
        %v2124 = vsel %vm768, %v2051, %v2123
        %v2126 = vunpack.c.l.s4 1983009808
        %v2127 = vunpack.c.0.s8 %v2126
        %v2128 = vperm.slane %v2122, %v2127
        %v2130 = vunpack.c.l.s4 1983009808
        %v2131 = vunpack.c.0.s8 %v2130
        %v2132 = vperm.slane %v2124, %v2131
        %v2133 = vrot.slane %v2128, 4
        %v2134 = vsel %vm768, %v2133, %v2116
        %v2135 = vrot.slane %v2116, 4
        %v2136 = vsel %vm768, %v2128, %v2135
        %v2138 = vunpack.c.l.s4 1934713408
        %v2139 = vunpack.c.0.s8 %v2138
        %v2140 = vperm.slane %v2134, %v2139
        %v2142 = vunpack.c.l.s4 1934713408
        %v2143 = vunpack.c.0.s8 %v2142
        %v2144 = vperm.slane %v2136, %v2143
        %v2145 = vrot.slane %v2132, 4
        %v2146 = vsel %vm768, %v2145, %v2120
        %v2147 = vrot.slane %v2120, 4
        %v2148 = vsel %vm768, %v2132, %v2147
        %v2150 = vunpack.c.l.s4 1934713408
        %v2151 = vunpack.c.0.s8 %v2150
        %v2152 = vperm.slane %v2146, %v2151
        %v2154 = vunpack.c.l.s4 1934713408
        %v2155 = vunpack.c.0.s8 %v2154
        %v2156 = vperm.slane %v2148, %v2155
        %v2157 = vrot.slane %v2140, 4
        %v2158 = vsel %vm768, 0.0, %v2157
        %v2159 = vrot.slane %v2144, 4
        %v2160 = vsel %vm768, 0.0, %v2159
        %v2161 = vrot.slane %v2152, 4
        %v2162 = vsel %vm768, 0.0, %v2161
        %v2163 = vrot.slane %v2156, 4
        %v2164 = vsel %vm768, 0.0, %v2163
        %v2165 = vsel %vm768, %v2103, %v2084
        %v2167 = vunpack.c.l.s4 1983009808
        %v2168 = vunpack.c.0.s8 %v2167
        %v2169 = vperm.slane %v2165, %v2168
        %v2170 = vrot.slane %v2104, 4
        %v2171 = vsel %vm768, %v2170, %v2102
        %v2173 = vunpack.c.l.s4 1983009808
        %v2174 = vunpack.c.0.s8 %v2173
        %v2175 = vperm.slane %v2171, %v2174
        %v2176 = vsel %vm768, %v2107, %v2096
        %v2178 = vunpack.c.l.s4 1983009808
        %v2179 = vunpack.c.0.s8 %v2178
        %v2180 = vperm.slane %v2176, %v2179
        %v2181 = vrot.slane %v2108, 4
        %v2182 = vsel %vm768, %v2181, %v2106
        %v2184 = vunpack.c.l.s4 1983009808
        %v2185 = vunpack.c.0.s8 %v2184
        %v2186 = vperm.slane %v2182, %v2185
        %v2187 = vrot.slane %v2175, 4
        %v2188 = vsel %vm768, %v2187, %v2169
        %v2189 = vrot.slane %v2169, 4
        %v2190 = vsel %vm768, %v2175, %v2189
        %v2192 = vunpack.c.l.s4 1934713408
        %v2193 = vunpack.c.0.s8 %v2192
        %v2194 = vperm.slane %v2188, %v2193
        %v2196 = vunpack.c.l.s4 1934713408
        %v2197 = vunpack.c.0.s8 %v2196
        %v2198 = vperm.slane %v2190, %v2197
        %v2199 = vrot.slane %v2186, 4
        %v2200 = vsel %vm768, %v2199, %v2180
        %v2201 = vrot.slane %v2180, 4
        %v2202 = vsel %vm768, %v2186, %v2201
        %v2204 = vunpack.c.l.s4 1934713408
        %v2205 = vunpack.c.0.s8 %v2204
        %v2206 = vperm.slane %v2200, %v2205
        %v2208 = vunpack.c.l.s4 1934713408
        %v2209 = vunpack.c.0.s8 %v2208
        %v2210 = vperm.slane %v2202, %v2209
        %v2211 = vrot.slane %v2206, 4
        %v2212 = vsel %vm768, %v2211, %v2194
        %v2213 = vrot.slane %v2194, 4
        %v2214 = vsel %vm768, %v2206, %v2213
        %v2215 = vrot.slane %v2210, 4
        %v2216 = vsel %vm768, %v2215, %v2198
        %v2217 = vrot.slane %v2198, 4
        %v2218 = vsel %vm768, %v2210, %v2217
        %v2219 = vsel %vm768, %v2159, %v2140
        %v2221 = vunpack.c.l.s4 1983009808
        %v2222 = vunpack.c.0.s8 %v2221
        %v2223 = vperm.slane %v2219, %v2222
        %v2224 = vrot.slane %v2160, 4
        %v2225 = vsel %vm768, %v2224, %v2158
        %v2227 = vunpack.c.l.s4 1983009808
        %v2228 = vunpack.c.0.s8 %v2227
        %v2229 = vperm.slane %v2225, %v2228
        %v2230 = vsel %vm768, %v2163, %v2152
        %v2232 = vunpack.c.l.s4 1983009808
        %v2233 = vunpack.c.0.s8 %v2232
        %v2234 = vperm.slane %v2230, %v2233
        %v2235 = vrot.slane %v2164, 4
        %v2236 = vsel %vm768, %v2235, %v2162
        %v2238 = vunpack.c.l.s4 1983009808
        %v2239 = vunpack.c.0.s8 %v2238
        %v2240 = vperm.slane %v2236, %v2239
        %v2241 = vrot.slane %v2229, 4
        %v2242 = vsel %vm768, %v2241, %v2223
        %v2243 = vrot.slane %v2223, 4
        %v2244 = vsel %vm768, %v2229, %v2243
        %v2246 = vunpack.c.l.s4 1934713408
        %v2247 = vunpack.c.0.s8 %v2246
        %v2248 = vperm.slane %v2242, %v2247
        %v2250 = vunpack.c.l.s4 1934713408
        %v2251 = vunpack.c.0.s8 %v2250
        %v2252 = vperm.slane %v2244, %v2251
        %v2253 = vrot.slane %v2240, 4
        %v2254 = vsel %vm768, %v2253, %v2234
        %v2255 = vrot.slane %v2234, 4
        %v2256 = vsel %vm768, %v2240, %v2255
        %v2258 = vunpack.c.l.s4 1934713408
        %v2259 = vunpack.c.0.s8 %v2258
        %v2260 = vperm.slane %v2254, %v2259
        %v2262 = vunpack.c.l.s4 1934713408
        %v2263 = vunpack.c.0.s8 %v2262
        %v2264 = vperm.slane %v2256, %v2263
        %v2265 = vrot.slane %v2260, 4
        %v2266 = vsel %vm768, %v2265, %v2248
        %v2267 = vrot.slane %v2248, 4
        %v2268 = vsel %vm768, %v2260, %v2267
        %v2269 = vrot.slane %v2264, 4
        %v2270 = vsel %vm768, %v2269, %v2252
        %v2271 = vrot.slane %v2252, 4
        %v2272 = vsel %vm768, %v2264, %v2271
        %2275 = vrot.lane.b32.xlu0 %v2214, 8
        %v2276 = vpop.permute.xlu0 %2275
        %2277 = vrot.lane.b32.xlu0 %v2268, 8
        %v2278 = vpop.permute.xlu0 %2277
        %2283 = vrot.lane.b32.xlu0 %v2216, 16
        %v2284 = vpop.permute.xlu0 %2283
        %2285 = vrot.lane.b32.xlu0 %v2270, 16
        %v2286 = vpop.permute.xlu0 %2285
        %2291 = vrot.lane.b32.xlu0 %v2218, 24
        %v2292 = vpop.permute.xlu0 %2291
        %2293 = vrot.lane.b32.xlu0 %v2272, 24
        %v2294 = vpop.permute.xlu0 %2293
        %v2297 = vsel %vm1468, %v2212, %v2276
        %v2298 = vsel %vm1468, %v2266, %v2278
        %vm2299 = vcmask 130048
        %v2300 = vsel %vm2299, %v2297, %v2284
        %v2301 = vsel %vm2299, %v2298, %v2286
        %vm2302 = vcmask 195584
        %v2303 = vsel %vm2302, %v2300, %v2292
        %v2304 = vsel %vm2302, %v2301, %v2294
        %v2305 = vld [vmem:[%s9] sm:$0xff]
        %v2306 = vld [vmem:[%s9 + $0x8] sm:$0xff]
        %v2307 = vld [vmem:[%s9 + $0x10] sm:$0xff]
        %v2308 = vld [vmem:[%s9 + $0x18] sm:$0xff]
        %v2309 = vld [vmem:[%s10] sm:$0x1]
        %v2311 = vperm.slane %v2309, 0
        %v2314 = vsel %vm584, %v2303, 0
        %v2317 = vsel %vm584, %v2304, 0
        %2319 = vmatpush.msra.mxu0 0.0
        %2320 = vmatpush.msra.mxu0 0.0
        %2321 = vmatpush.msra.mxu0 0.0
        %2322 = vmatpush.msra.mxu0 0.0
        %2323 = vmatpush.msra.mxu0 0.0
        %2324 = vmatpush.msra.mxu0 0.0
        %2325 = vmatpush.msra.mxu0 0.0
        %2326 = vmatpush.msra.mxu0 0.0
        %2327 = vmatpush.msra.mxu0 0.0
        %2328 = vmatpush.msra.mxu0 0.0
        %2329 = vmatpush.msra.mxu0 0.0
        %2330 = vmatpush.msra.mxu0 0.0
        %2331 = vmatpush.msra.mxu0 %v2308
        %2332 = vmatpush.msra.mxu0 %v2307
        %2333 = vmatpush.msra.mxu0 %v2306
        %2334 = vmatpush.msra.mxu0 %v2305
        %2335 = vmatmul.f32.gmra.mxu0 %v2314
        %v2336 = vpop.f32.mrf.mxu0
        %v2337 = vadd.f32 %v2311, %v2336
        %2338 = vmatmul.f32.gmra.mxu0 %v2317
        %v2339 = vpop.f32.mrf.mxu0
        %v2340 = vadd.f32 %v2311, %v2339
        %2341 = vdwg.mxu0
        %v2342 = vadd.f32 %v582, %v2337
        %v2343 = vadd.f32 %v583, %v2340
        %v2344 = vsel %vm584, %v2342, 0.0
        %2345 = vadd.xlane.f32.xlu0 %v2344
        %v2346 = vpop.xlane.xlu0 %2345
        %v2347 = vsel %vm584, %v2343, 0.0
        %2348 = vadd.xlane.f32.xlu0 %v2347
        %v2349 = vpop.xlane.xlu0 %2348
        %v2350 = vmul.f32 %v2346, %v597
        %v2351 = vmul.f32 %v2349, %v597
        %v2352 = vsub.f32 %v2342, %v2350
        %v2353 = vsub.f32 %v2343, %v2351
        %v2354 = vmul.f32 %v2352, %v2352
        %v2355 = vmul.f32 %v2353, %v2353
        %v2356 = vsel %vm584, %v2354, 0.0
        %2357 = vadd.xlane.f32.xlu0 %v2356
        %v2358 = vpop.xlane.xlu0 %2357
        %v2359 = vsel %vm584, %v2355, 0.0
        %2360 = vadd.xlane.f32.xlu0 %v2359
        %v2361 = vpop.xlane.xlu0 %2360
        %v2362 = vmul.f32 %v2358, %v597
        %v2363 = vmul.f32 %v2361, %v597
        %v2364 = vadd.f32 %v2362, 1e-05
        %v2365 = vadd.f32 %v2363, 1e-05
        %v2366 = vrsqrt.pop %v2364
        %v2367 = vmul.f32 %v2366, %v2364
        %v2368 = vmul.f32 %v2367, %v2366
        %v2369 = vmul.f32 0.5, %v2368
        %v2370 = vsub.f32 1.5, %v2369
        %v2371 = vmul.f32 %v2366, %v2370
        %vm2372 = vweird.f32 %v2364
        %vm2373 = vweird.f32 %v2366
        %vm2374 = vmor %vm2372, %vm2373
        %v2375 = vsel %vm2374, %v2366, %v2371
        %v2376 = vrsqrt.pop %v2365
        %v2377 = vmul.f32 %v2376, %v2365
        %v2378 = vmul.f32 %v2377, %v2376
        %v2379 = vmul.f32 0.5, %v2378
        %v2380 = vsub.f32 1.5, %v2379
        %v2381 = vmul.f32 %v2376, %v2380
        %vm2382 = vweird.f32 %v2365
        %vm2383 = vweird.f32 %v2376
        %vm2384 = vmor %vm2382, %vm2383
        %v2385 = vsel %vm2384, %v2376, %v2381
        %v2386 = vmul.f32 %v2352, %v2375
        %v2387 = vmul.f32 %v2353, %v2385
        %v2388 = vld [vmem:[%s11] sm:$0x1]
        %v2390 = vperm.slane %v2388, 0
        %v2392 = vmul.f32 %v2386, %v2390
        %v2393 = vmul.f32 %v2387, %v2390
        %v2394 = vld [vmem:[%s12] sm:$0x1]
        %v2396 = vperm.slane %v2394, 0
        %v2398 = vadd.f32 %v2392, %v2396
        %v2399 = vadd.f32 %v2393, %v2396
        %v2400 = vld [vmem:[#allocation5] sm:$0xff]
        %v2401 = vld [vmem:[#allocation5 + $0x8] sm:$0xff]
        %v2402 = vld [vmem:[#allocation5 + $0x10] sm:$0xff]
        %v2403 = vld [vmem:[#allocation5 + $0x18] sm:$0xff]
        %v2404 = vld [vmem:[%s14] sm:$0x1]
        %v2406 = vperm.slane %v2404, 0
        %v2409 = vsel %vm584, %v2398, 0
        %v2412 = vsel %vm584, %v2399, 0
        %2414 = vmatpush.msra.mxu0 0.0
        %2415 = vmatpush.msra.mxu0 0.0
        %2416 = vmatpush.msra.mxu0 0.0
        %2417 = vmatpush.msra.mxu0 0.0
        %2418 = vmatpush.msra.mxu0 0.0
        %2419 = vmatpush.msra.mxu0 0.0
        %2420 = vmatpush.msra.mxu0 0.0
        %2421 = vmatpush.msra.mxu0 0.0
        %2422 = vmatpush.msra.mxu0 0.0
        %2423 = vmatpush.msra.mxu0 0.0
        %2424 = vmatpush.msra.mxu0 0.0
        %2425 = vmatpush.msra.mxu0 0.0
        %2426 = vmatpush.msra.mxu0 %v2403
        %2427 = vmatpush.msra.mxu0 %v2402
        %2428 = vmatpush.msra.mxu0 %v2401
        %2429 = vmatpush.msra.mxu0 %v2400
        %2430 = vmatmul.f32.gmra.mxu0 %v2409
        %v2431 = vpop.f32.mrf.mxu0
        %v2432 = vadd.f32 %v2406, %v2431
        %2433 = vmatmul.f32.gmra.mxu0 %v2412
        %v2434 = vpop.f32.mrf.mxu0
        %v2435 = vadd.f32 %v2406, %v2434
        %2436 = vdwg.mxu0
        %v2437 = vmul.f32 %v2432, 1.702
        %v2438 = vmul.f32 %v2435, 1.702
        %v2439 = vxor.u32 %v2437, 2147483648
        %v2440 = vxor.u32 %v2438, 2147483648
        %v2441 = vmul.f32 %v2439, 1.442695
        %v2442 = vpow.pop %v2441
        %v2443 = vmul.f32 %v2440, 1.442695
        %v2444 = vpow.pop %v2443
        %v2445 = vadd.f32 %v2442, 1.0
        %v2446 = vadd.f32 %v2444, 1.0
        %v2447 = vrcp.pop %v2445
        %v2448 = vmul.f32 %v2445, %v2447
        %v2449 = vsub.f32 1.0, %v2448
        %v2450 = vmul.f32 %v2447, %v2449
        %v2451 = vadd.f32 %v2447, %v2450
        %vm2452 = vweird.f32 %v2445
        %vm2453 = vweird.f32 %v2447
        %vm2454 = vmor %vm2452, %vm2453
        %v2455 = vsel %vm2454, %v2447, %v2451
        %v2456 = vand.u32 2147483647, %v2445
        %vm2457 = vcmp.eq.f32.partialorder %v2456, 8.507059e+37
        %v2458 = vand.u32 %v2445, 2147483648
        %v2459 = vor.u32 1.1754944e-38, %v2458
        %v2460 = vsel %vm2457, %v2459, %v2455
        %v2461 = vmul.f32 1.0, %v2460
        %v2462 = vrcp.pop %v2446
        %v2463 = vmul.f32 %v2446, %v2462
        %v2464 = vsub.f32 1.0, %v2463
        %v2465 = vmul.f32 %v2462, %v2464
        %v2466 = vadd.f32 %v2462, %v2465
        %vm2467 = vweird.f32 %v2446
        %vm2468 = vweird.f32 %v2462
        %vm2469 = vmor %vm2467, %vm2468
        %v2470 = vsel %vm2469, %v2462, %v2466
        %v2471 = vand.u32 2147483647, %v2446
        %vm2472 = vcmp.eq.f32.partialorder %v2471, 8.507059e+37
        %v2473 = vand.u32 %v2446, 2147483648
        %v2474 = vor.u32 1.1754944e-38, %v2473
        %v2475 = vsel %vm2472, %v2474, %v2470
        %v2476 = vmul.f32 1.0, %v2475
        %v2477 = vmul.f32 %v2432, %v2461
        %v2478 = vmul.f32 %v2435, %v2476
        %v2479 = vld [vmem:[%s15] sm:$0xff]
        %v2480 = vld [vmem:[%s15 + $0x8] sm:$0xff]
        %v2481 = vld [vmem:[%s15 + $0x10] sm:$0xff]
        %v2482 = vld [vmem:[%s15 + $0x18] sm:$0xff]
        %v2483 = vld [vmem:[%s15 + $0x20] sm:$0xff]
        %v2484 = vld [vmem:[%s15 + $0x28] sm:$0xff]
        %v2485 = vld [vmem:[%s15 + $0x30] sm:$0xff]
        %v2486 = vld [vmem:[%s15 + $0x38] sm:$0xff]
        %v2487 = vld [vmem:[%s15 + $0x40] sm:$0xff]
        %v2488 = vld [vmem:[%s15 + $0x48] sm:$0xff]
        %v2489 = vld [vmem:[%s15 + $0x50] sm:$0xff]
        %v2490 = vld [vmem:[%s15 + $0x58] sm:$0xff]
        %v2491 = vld [vmem:[%s15 + $0x60] sm:$0xff]
        %v2492 = vld [vmem:[%s15 + $0x68] sm:$0xff]
        %v2493 = vld [vmem:[%s15 + $0x70] sm:$0xff]
        %v2494 = vld [vmem:[%s15 + $0x78] sm:$0xff]
        %v2495 = vld [vmem:[%s16] sm:$0x1]
        %v2497 = vperm.slane %v2495, 0
        %2499 = vmatpush.msra.mxu0 %v2494
        %2500 = vmatpush.msra.mxu0 %v2493
        %2501 = vmatpush.msra.mxu0 %v2492
        %2502 = vmatpush.msra.mxu0 %v2491
        %2503 = vmatpush.msra.mxu0 %v2490
        %2504 = vmatpush.msra.mxu0 %v2489
        %2505 = vmatpush.msra.mxu0 %v2488
        %2506 = vmatpush.msra.mxu0 %v2487
        %2507 = vmatpush.msra.mxu0 %v2486
        %2508 = vmatpush.msra.mxu0 %v2485
        %2509 = vmatpush.msra.mxu0 %v2484
        %2510 = vmatpush.msra.mxu0 %v2483
        %2511 = vmatpush.msra.mxu0 %v2482
        %2512 = vmatpush.msra.mxu0 %v2481
        %2513 = vmatpush.msra.mxu0 %v2480
        %2514 = vmatpush.msra.mxu0 %v2479
        %2515 = vmatmul.f32.gmra.mxu0 %v2477
        %v2516 = vpop.f32.mrf.mxu0
        %v2517 = vadd.f32 %v2497, %v2516
        %2518 = vmatmul.f32.gmra.mxu0 %v2478
        %v2519 = vpop.f32.mrf.mxu0
        %v2520 = vadd.f32 %v2497, %v2519
        %2521 = vdwg.mxu0
        %v2522 = vadd.f32 %v2342, %v2517
        %v2523 = vadd.f32 %v2343, %v2520
        %2524 = vst.msk [vmem:[%s574] sm:$0xff] %vm584, %v2522
        %2525 = vst.msk [vmem:[%s574 + $0x8] sm:$0xff] %vm584, %v2523
        %s2526 = sand.u32 %s403, 1
        %s2527 = scalar_lea.sflag [#allocation4], %s2526
        %s2528 = sand.u32 %s403, 1
        %s2529 = smul.addr %s2528, 16
        %s2530 = scalar_lea.vmem [#allocation7], %s2529
        // Predicated region
        $region97: #{tpu_custom_call.1} parent=87 // pred_check
          %p2531 = pneg %p413
        $region98: #{tpu_custom_call.1} parent=87 // pred_check_branch
          %2533 = sbr.rel (%p2531) target = $region100
        $region99: #{tpu_custom_call.1} parent=87 // pred_region
          %s2534 = smul.u32 2, %s33
          %2536 = vsyncadd %s2527, 0
          %s2537 = smul.addr %s2534, 8
          %s2538 = scalar_lea.hbm %s17, %s2537
          %s2539 = sshll.u32 %s2530, 4
          %s2540 = int_to_ptr.vmem [resolvable:$true] %s2539
          %s2541 = sshll.u32 %s2538, 4
          %s2542 = int_to_ptr.hbm [resolvable:$true] %s2541
          %2547 = dma.vmem_to_hbm [thread:$0]  %s2540, 256, %s2542, %s2527, 128, 128, 8
        $region100: #{tpu_custom_call.1} parent=87 // pred_fallthru
          _
      $region88: #{tpu_custom_call.1} parent=5 // pred_fallthru
        _
      %p2548 = scmp.le.s32.totalorder 2, %s28
      // Predicated region
      $region101: #{tpu_custom_call.1} parent=5 // pred_check
        %p2549 = pneg %p2548
      $region102: #{tpu_custom_call.1} parent=5 // pred_check_branch
        %2551 = sbr.rel (%p2549) target = $region104
      $region103: #{tpu_custom_call.1} parent=5 // pred_region
        %s2552 = ssub.s32 %s28, 2
        // Predicated region
        $region105: #{tpu_custom_call.1} parent=103 // pred_check
          %p2553 = pneg %p419
        $region106: #{tpu_custom_call.1} parent=103 // pred_check_branch
          %2555 = sbr.rel (%p2553) target = $region108
        $region107: #{tpu_custom_call.1} parent=103 // pred_region
          %s2556 = sand.u32 %s404, 1
          %s2557 = scalar_lea.sflag [#allocation4], %s2556
          %s2558 = sand.u32 %s404, 1
          %s2559 = smul.addr %s2558, 16
          %s2560 = scalar_lea.vmem [#allocation7], %s2559
          %2562 = dma.done %s2557, 256
        $region108: #{tpu_custom_call.1} parent=103 // pred_fallthru
          _
      $region104: #{tpu_custom_call.1} parent=5 // pred_fallthru
        _
    $region6: #{tpu_custom_call.1} parent=1 // loop_footer
      %s32 = sadd.s32 1, %s28
    $region7: #{tpu_custom_call.1} parent=1 // loop_footer_branch
      %27 = sbr.rel target = $region3
    $region8: #{tpu_custom_call.1} parent=1 // loop_exit
      _
    %2563 = vsyncpa [#allocation3], 1
    %s2564 = scalar_lea.sflag [#allocation3], 1
    %2565 = vsyncpa %s2564, 1
    %2566 = vsyncpa [#allocation6], 1
    %2567 = vsyncpa [#allocation4], 1
    %s2568 = scalar_lea.sflag [#allocation4], 1
    %2569 = vsyncpa %s2568, 1

// kernel: tpu_custom_call.1
$region0: #{tpu_custom_call.1}
  #allocation0 [shape = 'u32[]', space=smem, size = 0x4, offset = 0x4, fixed_abs, tag = 'smem constant byte address 0x4 - core index']
  #allocation1 [shape = 'u32[72,128]{1,0:T(1,128)}', space=vmem, size = 0x9000, scoped, tag = 'internal scratch']
  %s0 = inlined_call_operand.vmem [shape: f32[4,8,32], index: 0, kind: input, shape index: {}]
  %s1 = inlined_call_operand.hbm [shape: f32[1,32], index: 1, kind: input, shape index: {}]
  %s2 = inlined_call_operand.vmem [shape: f32[1,32], index: 2, kind: input, shape index: {}]
  %s3 = inlined_call_operand.vmem [shape: f32[32,32], index: 3, kind: input, shape index: {}]
  %s4 = inlined_call_operand.vmem [shape: f32[1,32], index: 4, kind: input, shape index: {}]
  %s5 = inlined_call_operand.vmem [shape: f32[32,32], index: 5, kind: input, shape index: {}]
  %s6 = inlined_call_operand.vmem [shape: f32[1,32], index: 6, kind: input, shape index: {}]
  %s7 = inlined_call_operand.vmem [shape: f32[32,32], index: 7, kind: input, shape index: {}]
  %s8 = inlined_call_operand.vmem [shape: f32[1,32], index: 8, kind: input, shape index: {}]
  %s9 = inlined_call_operand.vmem [shape: f32[32,32], index: 9, kind: input, shape index: {}]
  %s10 = inlined_call_operand.vmem [shape: f32[1,32], index: 10, kind: input, shape index: {}]
  %s11 = inlined_call_operand.vmem [shape: f32[1,32], index: 11, kind: input, shape index: {}]
  %s12 = inlined_call_operand.vmem [shape: f32[1,32], index: 12, kind: input, shape index: {}]
  %s13 = inlined_call_operand.hbm [shape: f32[1,32,128], index: 13, kind: input, shape index: {}]
  %s14 = inlined_call_operand.vmem [shape: f32[1,1,128], index: 14, kind: input, shape index: {}]
  %s15 = inlined_call_operand.vmem [shape: f32[1,128,32], index: 15, kind: input, shape index: {}]
  %s16 = inlined_call_operand.vmem [shape: f32[1,32], index: 16, kind: input, shape index: {}]
  %s17 = inlined_call_operand.hbm [shape: f32[4,8,32], index: 17, kind: output, shape index: {}]
  %s18 = sld [smem:[#allocation0]]
  $region109: #{tpu_custom_call.1} parent=0
    _
  %s20 = ssub.s32 1, %s18
  %s21 = scalar_select 0, %s20, %s18
  $region1: #{tpu_custom_call.1} parent=0
    #allocation2 [shape = 'u8[512]{0}', space=vmem, size = 0x400, scoped, tag = 'input window, operand 1, single buffered']
    #allocation3 [shape = 's32[2]{0}', space=sflag, size = 0x8, scoped, tag = 'scoped memory for tpu_custom_call.1']
    #allocation4 [shape = 's32[2]{0}', space=sflag, size = 0x8, scoped, tag = 'scoped memory for tpu_custom_call.1']
    #allocation5 [shape = 'u8[16384]{0}', space=vmem, size = 0x4000, scoped, tag = 'input window, operand 13, single buffered']
    #allocation6 [shape = 's32[1]{0}', space=sflag, size = 0x4, scoped, tag = 'scoped memory for tpu_custom_call.1']
    #allocation7 [shape = 'u8[16384]{0}', space=vmem, size = 0x4000, scoped, tag = 'output window, operand 0']
    %22 = vsyncpa [#allocation3], 0
    %23 = vsyncpa [#allocation6], 0
    %24 = vsyncpa [#allocation4], 0
    %s25 = scalar_lea.sflag [#allocation4], 1
    %26 = vsyncpa %s25, 0
    loop: start=0, step=1, limit=4
    $region2: #{tpu_custom_call.1} parent=1 // loop_pre_header
      _
    $region3: #{tpu_custom_call.1} parent=1 // loop_header
      %s28 = sphi 0, %s32
      %p29 = scmp.ge.s32.totalorder %s28, 4
      %s38 = sphi 0, %s40
      %s41 = sphi 0, %s38
      %s42 = sphi 0, %s41
      %s58 = sphi 0, %s42
      %s62 = sphi 0, %s62
      %s64 = sphi 0, %s62
      %s65 = sphi 0, %s64
      %s79 = sphi 0, %s65
      %s83 = sphi 0, %s83
      %s85 = sphi 0, %s83
      %s86 = sphi 0, %s85
      %s100 = sphi 0, %s86
      %s104 = sphi 0, %s104
      %s106 = sphi 0, %s104
      %s107 = sphi 0, %s106
      %s121 = sphi 0, %s107
      %s125 = sphi 0, %s125
      %s127 = sphi 0, %s125
      %s128 = sphi 0, %s127
      %s142 = sphi 0, %s128
      %s146 = sphi 0, %s146
      %s148 = sphi 0, %s146
      %s149 = sphi 0, %s148
      %s163 = sphi 0, %s149
      %s167 = sphi 0, %s167
      %s169 = sphi 0, %s167
      %s170 = sphi 0, %s169
      %s184 = sphi 0, %s170
      %s188 = sphi 0, %s188
      %s190 = sphi 0, %s188
      %s191 = sphi 0, %s190
      %s205 = sphi 0, %s191
      %s209 = sphi 0, %s209
      %s211 = sphi 0, %s209
      %s212 = sphi 0, %s211
      %s226 = sphi 0, %s212
      %s230 = sphi 0, %s230
      %s232 = sphi 0, %s230
      %s233 = sphi 0, %s232
      %s247 = sphi 0, %s233
      %s251 = sphi 0, %s251
      %s253 = sphi 0, %s251
      %s254 = sphi 0, %s253
      %s268 = sphi 0, %s254
      %s272 = sphi 0, %s272
      %s274 = sphi 0, %s272
      %s275 = sphi 0, %s274
      %s289 = sphi 0, %s275
      %s293 = sphi 0, %s293
      %s295 = sphi 0, %s293
      %s296 = sphi 0, %s295
      %s310 = sphi 0, %s296
      %s314 = sphi 0, %s314
      %s316 = sphi 0, %s314
      %s317 = sphi 0, %s316
      %s331 = sphi 0, %s317
      %s335 = sphi 0, %s335
      %s337 = sphi 0, %s335
      %s338 = sphi 0, %s337
      %s352 = sphi 0, %s338
      %s356 = sphi 0, %s356
      %s358 = sphi 0, %s356
      %s359 = sphi 0, %s358
      %s373 = sphi 0, %s359
      %s377 = sphi 0, %s377
      %s379 = sphi 0, %s377
      %s380 = sphi 0, %s379
      %s394 = sphi 0, %s380
      %s400 = sphi 0, %s402
      %s403 = sphi 0, %s400
      %s404 = sphi 0, %s403
      %s420 = sphi 0, %s404
    $region4: #{tpu_custom_call.1} parent=1 // loop_header_branch
      %31 = sbr.rel (%p29) target = $region8
    $region5: #{tpu_custom_call.1} parent=1 // loop_body
      %s33 = ssub.s32 %s28, 1
      %s34 = ssub.s32 %s28, 2
      %s35 = sadd.s32 %s28, 1
      %s36 = ssub.s32 %s28, %s35
      %p37 = scmp.eq.s32.totalorder %s36, 0
      %s39 = sadd.s32 %s38, 1
      %s40 = scalar_select %p37, %s38, %s39
      %p43 = pneg %p37
      %p44 = scmp.eq.s32.totalorder %s28, 1
      %p45 = por %p43, %p44
      %p46 = scmp.ne.s32.totalorder %s38, %s41
      %p47 = scmp.eq.s32.totalorder %s28, 0
      %p48 = por %p46, %p47
      %p49 = scmp.ne.s32.totalorder %s38, %s41
      %p50 = scmp.eq.s32.totalorder %s33, 1
      %p51 = por %p49, %p50
      %p52 = scmp.ne.s32.totalorder %s41, %s42
      %p53 = scmp.eq.s32.totalorder %s33, 0
      %p54 = por %p52, %p53
      %p55 = scmp.ne.s32.totalorder %s41, %s42
      %p56 = scmp.eq.s32.totalorder %s34, 1
      %p57 = por %p55, %p56
      %p59 = scmp.ne.s32.totalorder %s42, %s58
      %p60 = scmp.eq.s32.totalorder %s34, 0
      %p61 = por %p59, %p60
      %s63 = sadd.s32 %s62, 1
      %p66 = scmp.eq.s32.totalorder %s28, 1
      %p67 = scmp.ne.s32.totalorder %s62, %s64
      %p68 = scmp.eq.s32.totalorder %s28, 0
      %p69 = por %p67, %p68
      %p70 = scmp.ne.s32.totalorder %s62, %s64
      %p71 = scmp.eq.s32.totalorder %s33, 1
      %p72 = por %p70, %p71
      %p73 = scmp.ne.s32.totalorder %s64, %s65
      %p74 = scmp.eq.s32.totalorder %s33, 0
      %p75 = por %p73, %p74
      %p76 = scmp.ne.s32.totalorder %s64, %s65
      %p77 = scmp.eq.s32.totalorder %s34, 1
      %p78 = por %p76, %p77
      %p80 = scmp.ne.s32.totalorder %s65, %s79
      %p81 = scmp.eq.s32.totalorder %s34, 0
      %p82 = por %p80, %p81
      %s84 = sadd.s32 %s83, 1
      %p87 = scmp.eq.s32.totalorder %s28, 1
      %p88 = scmp.ne.s32.totalorder %s83, %s85
      %p89 = scmp.eq.s32.totalorder %s28, 0
      %p90 = por %p88, %p89
      %p91 = scmp.ne.s32.totalorder %s83, %s85
      %p92 = scmp.eq.s32.totalorder %s33, 1
      %p93 = por %p91, %p92
      %p94 = scmp.ne.s32.totalorder %s85, %s86
      %p95 = scmp.eq.s32.totalorder %s33, 0
      %p96 = por %p94, %p95
      %p97 = scmp.ne.s32.totalorder %s85, %s86
      %p98 = scmp.eq.s32.totalorder %s34, 1
      %p99 = por %p97, %p98
      %p101 = scmp.ne.s32.totalorder %s86, %s100
      %p102 = scmp.eq.s32.totalorder %s34, 0
      %p103 = por %p101, %p102
      %s105 = sadd.s32 %s104, 1
      %p108 = scmp.eq.s32.totalorder %s28, 1
      %p109 = scmp.ne.s32.totalorder %s104, %s106
      %p110 = scmp.eq.s32.totalorder %s28, 0
      %p111 = por %p109, %p110
      %p112 = scmp.ne.s32.totalorder %s104, %s106
      %p113 = scmp.eq.s32.totalorder %s33, 1
      %p114 = por %p112, %p113
      %p115 = scmp.ne.s32.totalorder %s106, %s107
      %p116 = scmp.eq.s32.totalorder %s33, 0
      %p117 = por %p115, %p116
      %p118 = scmp.ne.s32.totalorder %s106, %s107
      %p119 = scmp.eq.s32.totalorder %s34, 1
      %p120 = por %p118, %p119
      %p122 = scmp.ne.s32.totalorder %s107, %s121
      %p123 = scmp.eq.s32.totalorder %s34, 0
      %p124 = por %p122, %p123
      %s126 = sadd.s32 %s125, 1
      %p129 = scmp.eq.s32.totalorder %s28, 1
      %p130 = scmp.ne.s32.totalorder %s125, %s127
      %p131 = scmp.eq.s32.totalorder %s28, 0
      %p132 = por %p130, %p131
      %p133 = scmp.ne.s32.totalorder %s125, %s127
      %p134 = scmp.eq.s32.totalorder %s33, 1
      %p135 = por %p133, %p134
      %p136 = scmp.ne.s32.totalorder %s127, %s128
      %p137 = scmp.eq.s32.totalorder %s33, 0
      %p138 = por %p136, %p137
      %p139 = scmp.ne.s32.totalorder %s127, %s128
      %p140 = scmp.eq.s32.totalorder %s34, 1
      %p141 = por %p139, %p140
      %p143 = scmp.ne.s32.totalorder %s128, %s142
      %p144 = scmp.eq.s32.totalorder %s34, 0
      %p145 = por %p143, %p144
      %s147 = sadd.s32 %s146, 1
      %p150 = scmp.eq.s32.totalorder %s28, 1
      %p151 = scmp.ne.s32.totalorder %s146, %s148
      %p152 = scmp.eq.s32.totalorder %s28, 0
      %p153 = por %p151, %p152
      %p154 = scmp.ne.s32.totalorder %s146, %s148
      %p155 = scmp.eq.s32.totalorder %s33, 1
      %p156 = por %p154, %p155
      %p157 = scmp.ne.s32.totalorder %s148, %s149
      %p158 = scmp.eq.s32.totalorder %s33, 0
      %p159 = por %p157, %p158
      %p160 = scmp.ne.s32.totalorder %s148, %s149
      %p161 = scmp.eq.s32.totalorder %s34, 1
      %p162 = por %p160, %p161
      %p164 = scmp.ne.s32.totalorder %s149, %s163
      %p165 = scmp.eq.s32.totalorder %s34, 0
      %p166 = por %p164, %p165
      %s168 = sadd.s32 %s167, 1
      %p171 = scmp.eq.s32.totalorder %s28, 1
      %p172 = scmp.ne.s32.totalorder %s167, %s169
      %p173 = scmp.eq.s32.totalorder %s28, 0
      %p174 = por %p172, %p173
      %p175 = scmp.ne.s32.totalorder %s167, %s169
      %p176 = scmp.eq.s32.totalorder %s33, 1
      %p177 = por %p175, %p176
      %p178 = scmp.ne.s32.totalorder %s169, %s170
      %p179 = scmp.eq.s32.totalorder %s33, 0
      %p180 = por %p178, %p179
      %p181 = scmp.ne.s32.totalorder %s169, %s170
      %p182 = scmp.eq.s32.totalorder %s34, 1
      %p183 = por %p181, %p182
      %p185 = scmp.ne.s32.totalorder %s170, %s184
      %p186 = scmp.eq.s32.totalorder %s34, 0
      %p187 = por %p185, %p186
      %s189 = sadd.s32 %s188, 1
      %p192 = scmp.eq.s32.totalorder %s28, 1
      %p193 = scmp.ne.s32.totalorder %s188, %s190
      %p194 = scmp.eq.s32.totalorder %s28, 0
      %p195 = por %p193, %p194
      %p196 = scmp.ne.s32.totalorder %s188, %s190
      %p197 = scmp.eq.s32.totalorder %s33, 1
      %p198 = por %p196, %p197
      %p199 = scmp.ne.s32.totalorder %s190, %s191
      %p200 = scmp.eq.s32.totalorder %s33, 0
      %p201 = por %p199, %p200
      %p202 = scmp.ne.s32.totalorder %s190, %s191
      %p203 = scmp.eq.s32.totalorder %s34, 1
      %p204 = por %p202, %p203
      %p206 = scmp.ne.s32.totalorder %s191, %s205
      %p207 = scmp.eq.s32.totalorder %s34, 0
      %p208 = por %p206, %p207
      %s210 = sadd.s32 %s209, 1
      %p213 = scmp.eq.s32.totalorder %s28, 1
      %p214 = scmp.ne.s32.totalorder %s209, %s211
      %p215 = scmp.eq.s32.totalorder %s28, 0
      %p216 = por %p214, %p215
      %p217 = scmp.ne.s32.totalorder %s209, %s211
      %p218 = scmp.eq.s32.totalorder %s33, 1
      %p219 = por %p217, %p218
      %p220 = scmp.ne.s32.totalorder %s211, %s212
      %p221 = scmp.eq.s32.totalorder %s33, 0
      %p222 = por %p220, %p221
      %p223 = scmp.ne.s32.totalorder %s211, %s212
      %p224 = scmp.eq.s32.totalorder %s34, 1
      %p225 = por %p223, %p224
      %p227 = scmp.ne.s32.totalorder %s212, %s226
      %p228 = scmp.eq.s32.totalorder %s34, 0
      %p229 = por %p227, %p228
      %s231 = sadd.s32 %s230, 1
      %p234 = scmp.eq.s32.totalorder %s28, 1
      %p235 = scmp.ne.s32.totalorder %s230, %s232
      %p236 = scmp.eq.s32.totalorder %s28, 0
      %p237 = por %p235, %p236
      %p238 = scmp.ne.s32.totalorder %s230, %s232
      %p239 = scmp.eq.s32.totalorder %s33, 1
      %p240 = por %p238, %p239
      %p241 = scmp.ne.s32.totalorder %s232, %s233
      %p242 = scmp.eq.s32.totalorder %s33, 0
      %p243 = por %p241, %p242
      %p244 = scmp.ne.s32.totalorder %s232, %s233
      %p245 = scmp.eq.s32.totalorder %s34, 1
      %p246 = por %p244, %p245
      %p248 = scmp.ne.s32.totalorder %s233, %s247
      %p249 = scmp.eq.s32.totalorder %s34, 0
      %p250 = por %p248, %p249
      %s252 = sadd.s32 %s251, 1
      %p255 = scmp.eq.s32.totalorder %s28, 1
      %p256 = scmp.ne.s32.totalorder %s251, %s253
      %p257 = scmp.eq.s32.totalorder %s28, 0
      %p258 = por %p256, %p257
      %p259 = scmp.ne.s32.totalorder %s251, %s253
      %p260 = scmp.eq.s32.totalorder %s33, 1
      %p261 = por %p259, %p260
      %p262 = scmp.ne.s32.totalorder %s253, %s254
      %p263 = scmp.eq.s32.totalorder %s33, 0
      %p264 = por %p262, %p263
      %p265 = scmp.ne.s32.totalorder %s253, %s254
      %p266 = scmp.eq.s32.totalorder %s34, 1
      %p267 = por %p265, %p266
      %p269 = scmp.ne.s32.totalorder %s254, %s268
      %p270 = scmp.eq.s32.totalorder %s34, 0
      %p271 = por %p269, %p270
      %s273 = sadd.s32 %s272, 1
      %p276 = scmp.eq.s32.totalorder %s28, 1
      %p277 = scmp.ne.s32.totalorder %s272, %s274
      %p278 = scmp.eq.s32.totalorder %s28, 0
      %p279 = por %p277, %p278
      %p280 = scmp.ne.s32.totalorder %s272, %s274
      %p281 = scmp.eq.s32.totalorder %s33, 1
      %p282 = por %p280, %p281
      %p283 = scmp.ne.s32.totalorder %s274, %s275
      %p284 = scmp.eq.s32.totalorder %s33, 0
      %p285 = por %p283, %p284
      %p286 = scmp.ne.s32.totalorder %s274, %s275
      %p287 = scmp.eq.s32.totalorder %s34, 1
      %p288 = por %p286, %p287
      %p290 = scmp.ne.s32.totalorder %s275, %s289
      %p291 = scmp.eq.s32.totalorder %s34, 0
      %p292 = por %p290, %p291
      %s294 = sadd.s32 %s293, 1
      %p297 = scmp.eq.s32.totalorder %s28, 1
      %p298 = scmp.ne.s32.totalorder %s293, %s295
      %p299 = scmp.eq.s32.totalorder %s28, 0
      %p300 = por %p298, %p299
      %p301 = scmp.ne.s32.totalorder %s293, %s295
      %p302 = scmp.eq.s32.totalorder %s33, 1
      %p303 = por %p301, %p302
      %p304 = scmp.ne.s32.totalorder %s295, %s296
      %p305 = scmp.eq.s32.totalorder %s33, 0
      %p306 = por %p304, %p305
      %p307 = scmp.ne.s32.totalorder %s295, %s296
      %p308 = scmp.eq.s32.totalorder %s34, 1
      %p309 = por %p307, %p308
      %p311 = scmp.ne.s32.totalorder %s296, %s310
      %p312 = scmp.eq.s32.totalorder %s34, 0
      %p313 = por %p311, %p312
      %s315 = sadd.s32 %s314, 1
      %p318 = scmp.eq.s32.totalorder %s28, 1
      %p319 = scmp.ne.s32.totalorder %s314, %s316
      %p320 = scmp.eq.s32.totalorder %s28, 0
      %p321 = por %p319, %p320
      %p322 = scmp.ne.s32.totalorder %s314, %s316
      %p323 = scmp.eq.s32.totalorder %s33, 1
      %p324 = por %p322, %p323
      %p325 = scmp.ne.s32.totalorder %s316, %s317
      %p326 = scmp.eq.s32.totalorder %s33, 0
      %p327 = por %p325, %p326
      %p328 = scmp.ne.s32.totalorder %s316, %s317
      %p329 = scmp.eq.s32.totalorder %s34, 1
      %p330 = por %p328, %p329
      %p332 = scmp.ne.s32.totalorder %s317, %s331
      %p333 = scmp.eq.s32.totalorder %s34, 0
      %p334 = por %p332, %p333
      %s336 = sadd.s32 %s335, 1
      %p339 = scmp.eq.s32.totalorder %s28, 1
      %p340 = scmp.ne.s32.totalorder %s335, %s337
      %p341 = scmp.eq.s32.totalorder %s28, 0
      %p342 = por %p340, %p341
      %p343 = scmp.ne.s32.totalorder %s335, %s337
      %p344 = scmp.eq.s32.totalorder %s33, 1
      %p345 = por %p343, %p344
      %p346 = scmp.ne.s32.totalorder %s337, %s338
      %p347 = scmp.eq.s32.totalorder %s33, 0
      %p348 = por %p346, %p347
      %p349 = scmp.ne.s32.totalorder %s337, %s338
      %p350 = scmp.eq.s32.totalorder %s34, 1
      %p351 = por %p349, %p350
      %p353 = scmp.ne.s32.totalorder %s338, %s352
      %p354 = scmp.eq.s32.totalorder %s34, 0
      %p355 = por %p353, %p354
      %s357 = sadd.s32 %s356, 1
      %p360 = scmp.eq.s32.totalorder %s28, 1
      %p361 = scmp.ne.s32.totalorder %s356, %s358
      %p362 = scmp.eq.s32.totalorder %s28, 0
      %p363 = por %p361, %p362
      %p364 = scmp.ne.s32.totalorder %s356, %s358
      %p365 = scmp.eq.s32.totalorder %s33, 1
      %p366 = por %p364, %p365
      %p367 = scmp.ne.s32.totalorder %s358, %s359
      %p368 = scmp.eq.s32.totalorder %s33, 0
      %p369 = por %p367, %p368
      %p370 = scmp.ne.s32.totalorder %s358, %s359
      %p371 = scmp.eq.s32.totalorder %s34, 1
      %p372 = por %p370, %p371
      %p374 = scmp.ne.s32.totalorder %s359, %s373
      %p375 = scmp.eq.s32.totalorder %s34, 0
      %p376 = por %p374, %p375
      %s378 = sadd.s32 %s377, 1
      %p381 = scmp.eq.s32.totalorder %s28, 1
      %p382 = scmp.ne.s32.totalorder %s377, %s379
      %p383 = scmp.eq.s32.totalorder %s28, 0
      %p384 = por %p382, %p383
      %p385 = scmp.ne.s32.totalorder %s377, %s379
      %p386 = scmp.eq.s32.totalorder %s33, 1
      %p387 = por %p385, %p386
      %p388 = scmp.ne.s32.totalorder %s379, %s380
      %p389 = scmp.eq.s32.totalorder %s33, 0
      %p390 = por %p388, %p389
      %p391 = scmp.ne.s32.totalorder %s379, %s380
      %p392 = scmp.eq.s32.totalorder %s34, 1
      %p393 = por %p391, %p392
      %p395 = scmp.ne.s32.totalorder %s380, %s394
      %p396 = scmp.eq.s32.totalorder %s34, 0
      %p397 = por %p395, %p396
      %s398 = ssub.s32 %s28, %s35
      %p399 = scmp.eq.s32.totalorder %s398, 0
      %s401 = sadd.s32 %s400, 1
      %s402 = scalar_select %p399, %s400, %s401
      %p405 = pneg %p399
      %p406 = scmp.eq.s32.totalorder %s28, 1
      %p407 = por %p405, %p406
      %p408 = scmp.ne.s32.totalorder %s400, %s403
      %p409 = scmp.eq.s32.totalorder %s28, 0
      %p410 = por %p408, %p409
      %p411 = scmp.ne.s32.totalorder %s400, %s403
      %p412 = scmp.eq.s32.totalorder %s33, 1
      %p413 = por %p411, %p412
      %p414 = scmp.ne.s32.totalorder %s403, %s404
      %p415 = scmp.eq.s32.totalorder %s33, 0
      %p416 = por %p414, %p415
      %p417 = scmp.ne.s32.totalorder %s403, %s404
      %p418 = scmp.eq.s32.totalorder %s34, 1
      %p419 = por %p417, %p418
      %p421 = scmp.ne.s32.totalorder %s404, %s420
      %p422 = scmp.eq.s32.totalorder %s34, 0
      %p423 = por %p421, %p422
      %p424 = scmp.le.s32.totalorder 1, %s28
      %p425 = scmp.lt.s32.totalorder %s28, 3
      %p426 = pnand %p424, %p425
      %p427 = pneg %p426
      // Predicated region
      $region9: #{tpu_custom_call.1} parent=5 // pred_check
        _
      $region10: #{tpu_custom_call.1} parent=5 // pred_check_branch
        %429 = sbr.rel (%p426) target = $region12
      $region11: #{tpu_custom_call.1} parent=5 // pred_region
        %s430 = ssub.s32 %s28, 1
        // Predicated region
        $region13: #{tpu_custom_call.1} parent=11 // pred_check
          %p431 = pneg %p75
        $region14: #{tpu_custom_call.1} parent=11 // pred_check_branch
          %433 = sbr.rel (%p431) target = $region16
        $region15: #{tpu_custom_call.1} parent=11 // pred_region
          %435 = vsyncadd [#allocation3], 0
          %s437 = sshll.u32 %s1, 4
          %s438 = int_to_ptr.hbm [resolvable:$true] %s437
          %s439 = sshll.u32 [#allocation2], 4
          %s440 = int_to_ptr.vmem [resolvable:$true] %s439
          %442 = dma.hbm_to_vmem [thread:$0]  %s438, 16, %s440, [#allocation3]
        $region16: #{tpu_custom_call.1} parent=11 // pred_fallthru
          _
        // Predicated region
        $region17: #{tpu_custom_call.1} parent=11 // pred_check
          %p443 = pneg %p96
        $region18: #{tpu_custom_call.1} parent=11 // pred_check_branch
          %445 = sbr.rel (%p443) target = $region20
        $region19: #{tpu_custom_call.1} parent=11 // pred_region
          _
        $region20: #{tpu_custom_call.1} parent=11 // pred_fallthru
          _
        // Predicated region
        $region21: #{tpu_custom_call.1} parent=11 // pred_check
          %p446 = pneg %p117
        $region22: #{tpu_custom_call.1} parent=11 // pred_check_branch
          %448 = sbr.rel (%p446) target = $region24
        $region23: #{tpu_custom_call.1} parent=11 // pred_region
          _
        $region24: #{tpu_custom_call.1} parent=11 // pred_fallthru
          _
        // Predicated region
        $region25: #{tpu_custom_call.1} parent=11 // pred_check
          %p449 = pneg %p138
        $region26: #{tpu_custom_call.1} parent=11 // pred_check_branch
          %451 = sbr.rel (%p449) target = $region28
        $region27: #{tpu_custom_call.1} parent=11 // pred_region
          _
        $region28: #{tpu_custom_call.1} parent=11 // pred_fallthru
          _
        // Predicated region
        $region29: #{tpu_custom_call.1} parent=11 // pred_check
          %p452 = pneg %p159
        $region30: #{tpu_custom_call.1} parent=11 // pred_check_branch
          %454 = sbr.rel (%p452) target = $region32
        $region31: #{tpu_custom_call.1} parent=11 // pred_region
          _
        $region32: #{tpu_custom_call.1} parent=11 // pred_fallthru
          _
        // Predicated region
        $region33: #{tpu_custom_call.1} parent=11 // pred_check
          %p455 = pneg %p180
        $region34: #{tpu_custom_call.1} parent=11 // pred_check_branch
          %457 = sbr.rel (%p455) target = $region36
        $region35: #{tpu_custom_call.1} parent=11 // pred_region
          _
        $region36: #{tpu_custom_call.1} parent=11 // pred_fallthru
          _
        // Predicated region
        $region37: #{tpu_custom_call.1} parent=11 // pred_check
          %p458 = pneg %p201
        $region38: #{tpu_custom_call.1} parent=11 // pred_check_branch
          %460 = sbr.rel (%p458) target = $region40
        $region39: #{tpu_custom_call.1} parent=11 // pred_region
          _
        $region40: #{tpu_custom_call.1} parent=11 // pred_fallthru
          _
        // Predicated region
        $region41: #{tpu_custom_call.1} parent=11 // pred_check
          %p461 = pneg %p222
        $region42: #{tpu_custom_call.1} parent=11 // pred_check_branch
          %463 = sbr.rel (%p461) target = $region44
        $region43: #{tpu_custom_call.1} parent=11 // pred_region
          _
        $region44: #{tpu_custom_call.1} parent=11 // pred_fallthru
          _
        // Predicated region
        $region45: #{tpu_custom_call.1} parent=11 // pred_check
          %p464 = pneg %p243
        $region46: #{tpu_custom_call.1} parent=11 // pred_check_branch
          %466 = sbr.rel (%p464) target = $region48
        $region47: #{tpu_custom_call.1} parent=11 // pred_region
          _
        $region48: #{tpu_custom_call.1} parent=11 // pred_fallthru
          _
        // Predicated region
        $region49: #{tpu_custom_call.1} parent=11 // pred_check
          %p467 = pneg %p264
        $region50: #{tpu_custom_call.1} parent=11 // pred_check_branch
          %469 = sbr.rel (%p467) target = $region52
        $region51: #{tpu_custom_call.1} parent=11 // pred_region
          _
        $region52: #{tpu_custom_call.1} parent=11 // pred_fallthru
          _
        // Predicated region
        $region53: #{tpu_custom_call.1} parent=11 // pred_check
          %p470 = pneg %p285
        $region54: #{tpu_custom_call.1} parent=11 // pred_check_branch
          %472 = sbr.rel (%p470) target = $region56
        $region55: #{tpu_custom_call.1} parent=11 // pred_region
          _
        $region56: #{tpu_custom_call.1} parent=11 // pred_fallthru
          _
        // Predicated region
        $region57: #{tpu_custom_call.1} parent=11 // pred_check
          %p473 = pneg %p306
        $region58: #{tpu_custom_call.1} parent=11 // pred_check_branch
          %475 = sbr.rel (%p473) target = $region60
        $region59: #{tpu_custom_call.1} parent=11 // pred_region
          _
        $region60: #{tpu_custom_call.1} parent=11 // pred_fallthru
          _
        // Predicated region
        $region61: #{tpu_custom_call.1} parent=11 // pred_check
          %p476 = pneg %p327
        $region62: #{tpu_custom_call.1} parent=11 // pred_check_branch
          %478 = sbr.rel (%p476) target = $region64
        $region63: #{tpu_custom_call.1} parent=11 // pred_region
          %480 = vsyncadd [#allocation6], 0
          %s481 = sshll.u32 %s13, 4
          %s482 = int_to_ptr.hbm [resolvable:$true] %s481
          %s483 = sshll.u32 [#allocation5], 4
          %s484 = int_to_ptr.vmem [resolvable:$true] %s483
          %489 = dma.hbm_to_vmem [thread:$0]  %s482, 512, %s484, [#allocation6], 128, 128, 8
        $region64: #{tpu_custom_call.1} parent=11 // pred_fallthru
          _
        // Predicated region
        $region65: #{tpu_custom_call.1} parent=11 // pred_check
          %p490 = pneg %p348
        $region66: #{tpu_custom_call.1} parent=11 // pred_check_branch
          %492 = sbr.rel (%p490) target = $region68
        $region67: #{tpu_custom_call.1} parent=11 // pred_region
          _
        $region68: #{tpu_custom_call.1} parent=11 // pred_fallthru
          _
        // Predicated region
        $region69: #{tpu_custom_call.1} parent=11 // pred_check
          %p493 = pneg %p369
        $region70: #{tpu_custom_call.1} parent=11 // pred_check_branch
          %495 = sbr.rel (%p493) target = $region72
        $region71: #{tpu_custom_call.1} parent=11 // pred_region
          _
        $region72: #{tpu_custom_call.1} parent=11 // pred_fallthru
          _
        // Predicated region
        $region73: #{tpu_custom_call.1} parent=11 // pred_check
          %p496 = pneg %p390
        $region74: #{tpu_custom_call.1} parent=11 // pred_check_branch
          %498 = sbr.rel (%p496) target = $region76
        $region75: #{tpu_custom_call.1} parent=11 // pred_region
          _
        $region76: #{tpu_custom_call.1} parent=11 // pred_fallthru
          _
      $region12: #{tpu_custom_call.1} parent=5 // pred_fallthru
        _
      %p499 = scmp.lt.s32.totalorder %s28, 2
      // Predicated region
      $region77: #{tpu_custom_call.1} parent=5 // pred_check
        %p500 = pneg %p499
      $region78: #{tpu_custom_call.1} parent=5 // pred_check_branch
        %502 = sbr.rel (%p500) target = $region80
      $region79: #{tpu_custom_call.1} parent=5 // pred_region
        // Predicated region
        $region81: #{tpu_custom_call.1} parent=79 // pred_check
          %p503 = pneg %p48
        $region82: #{tpu_custom_call.1} parent=79 // pred_check_branch
          %505 = sbr.rel (%p503) target = $region84
        $region83: #{tpu_custom_call.1} parent=79 // pred_region
          %s506 = smul.u32 2, %s28
          %p507 = scmp.lt.s32.totalorder %s506, 3
          %s508 = scalar_select %p507, %s506, 3
          %s509 = smul.addr %s508, 8
          %s510 = scalar_lea.vmem %s0, %s509
          %s511 = smul.u32 2, %s28
        $region84: #{tpu_custom_call.1} parent=79 // pred_fallthru
          _
      $region80: #{tpu_custom_call.1} parent=5 // pred_fallthru
        _
      %p512 = scmp.le.s32.totalorder 1, %s28
      %p513 = scmp.lt.s32.totalorder %s28, 3
      %p514 = pnand %p512, %p513
      %p515 = pneg %p514
      // Predicated region
      $region85: #{tpu_custom_call.1} parent=5 // pred_check
        _
      $region86: #{tpu_custom_call.1} parent=5 // pred_check_branch
        %517 = sbr.rel (%p514) target = $region88
      $region87: #{tpu_custom_call.1} parent=5 // pred_region
        %s518 = ssub.s32 %s28, 1
        // Predicated region
        $region89: #{tpu_custom_call.1} parent=87 // pred_check
          %p519 = pneg %p75
        $region90: #{tpu_custom_call.1} parent=87 // pred_check_branch
          %521 = sbr.rel (%p519) target = $region92
        $region91: #{tpu_custom_call.1} parent=87 // pred_region
          %523 = dma.done [#allocation3], 16
        $region92: #{tpu_custom_call.1} parent=87 // pred_fallthru
          _
        // Predicated region
        $region93: #{tpu_custom_call.1} parent=87 // pred_check
          %p524 = pneg %p327
        $region94: #{tpu_custom_call.1} parent=87 // pred_check_branch
          %526 = sbr.rel (%p524) target = $region96
        $region95: #{tpu_custom_call.1} parent=87 // pred_region
          %528 = dma.done [#allocation6], 512
        $region96: #{tpu_custom_call.1} parent=87 // pred_fallthru
          _
        %s529 = smul.u32 2, %s33
        %p530 = scmp.lt.s32.totalorder %s529, 3
        %s531 = scalar_select %p530, %s529, 3
        %s532 = smul.addr %s531, 8
        %s533 = scalar_lea.vmem %s0, %s532
        %p534 = pneg %p54
        %p535 = pneg %p51
        %p536 = pneg %p75
        %p537 = pneg %p72
        %p538 = pneg %p96
        %p539 = pneg %p93
        %p540 = pneg %p117
        %p541 = pneg %p114
        %p542 = pneg %p138
        %p543 = pneg %p135
        %p544 = pneg %p159
        %p545 = pneg %p156
        %p546 = pneg %p180
        %p547 = pneg %p177
        %p548 = pneg %p201
        %p549 = pneg %p198
        %p550 = pneg %p222
        %p551 = pneg %p219
        %p552 = pneg %p243
        %p553 = pneg %p240
        %p554 = pneg %p264
        %p555 = pneg %p261
        %p556 = pneg %p285
        %p557 = pneg %p282
        %p558 = pneg %p306
        %p559 = pneg %p303
        %p560 = pneg %p327
        %p561 = pneg %p324
        %p562 = pneg %p348
        %p563 = pneg %p345
        %p564 = pneg %p369
        %p565 = pneg %p366
        %p566 = pneg %p390
        %p567 = pneg %p387
        %p568 = pneg %p416
        %p569 = pneg %p413
        %s570 = sand.u32 %s403, 1
        %s571 = scalar_lea.sflag [#allocation4], %s570
        %s572 = sand.u32 %s403, 1
        %s573 = smul.addr %s572, 16
        %s574 = scalar_lea.vmem [#allocation7], %s573
        %s575 = smul.u32 2, %s33
        %p576 = scmp.lt.s32.totalorder %s575, 3
        %s577 = scalar_select %p576, %s575, 3
        %s578 = smul.addr %s577, 8
        %s579 = scalar_lea.vmem %s0, %s578
        %s580 = smul.u32 2, %s33
        %s581 = smul.u32 2, %s33
        %v582 = vld [vmem:[%s579] sm:$0xff]
        %v583 = vld [vmem:[%s579 + $0x8] sm:$0xff]
        %vm584 = vcmask 261120
        %v585 = vsel %vm584, %v582, 0.0
        %586 = vadd.xlane.f32.xlu0 %v585
        %v587 = vpop.xlane.xlu0 %586
        %v588 = vsel %vm584, %v583, 0.0
        %589 = vadd.xlane.f32.xlu0 %v588
        %v590 = vpop.xlane.xlu0 %589
        %v591 = vrcp.pop 32.0
        %v592 = vmul.f32 32.0, %v591
        %v593 = vsub.f32 1.0, %v592
        %v594 = vmul.f32 %v591, %v593
        %v595 = vadd.f32 %v591, %v594
        %vm596 = vweird.f32 %v591
        %v597 = vsel %vm596, %v591, %v595
        %v598 = vmul.f32 %v587, %v597
        %v599 = vmul.f32 %v590, %v597
        %v600 = vsub.f32 %v582, %v598
        %v601 = vsub.f32 %v583, %v599
        %v602 = vmul.f32 %v600, %v600
        %v603 = vmul.f32 %v601, %v601
        %v604 = vsel %vm584, %v602, 0.0
        %605 = vadd.xlane.f32.xlu0 %v604
        %v606 = vpop.xlane.xlu0 %605
        %v607 = vsel %vm584, %v603, 0.0
        %608 = vadd.xlane.f32.xlu0 %v607
        %v609 = vpop.xlane.xlu0 %608
        %v610 = vmul.f32 %v606, %v597
        %v611 = vmul.f32 %v609, %v597
        %v612 = vadd.f32 %v610, 1e-05
        %v613 = vadd.f32 %v611, 1e-05
        %v614 = vrsqrt.pop %v612
        %v615 = vmul.f32 %v614, %v612
        %v616 = vmul.f32 %v615, %v614
        %v617 = vmul.f32 0.5, %v616
        %v618 = vsub.f32 1.5, %v617
        %v619 = vmul.f32 %v614, %v618
        %vm620 = vweird.f32 %v612
        %vm621 = vweird.f32 %v614
        %vm622 = vmor %vm620, %vm621
        %v623 = vsel %vm622, %v614, %v619
        %v624 = vrsqrt.pop %v613
        %v625 = vmul.f32 %v624, %v613
        %v626 = vmul.f32 %v625, %v624
        %v627 = vmul.f32 0.5, %v626
        %v628 = vsub.f32 1.5, %v627
        %v629 = vmul.f32 %v624, %v628
        %vm630 = vweird.f32 %v613
        %vm631 = vweird.f32 %v624
        %vm632 = vmor %vm630, %vm631
        %v633 = vsel %vm632, %v624, %v629
        %v634 = vmul.f32 %v600, %v623
        %v635 = vmul.f32 %v601, %v633
        %v636 = vld [vmem:[#allocation2] sm:$0x1]
        %v638 = vperm.slane %v636, 0
        %v640 = vmul.f32 %v634, %v638
        %v641 = vmul.f32 %v635, %v638
        %v642 = vld [vmem:[%s2] sm:$0x1]
        %v644 = vperm.slane %v642, 0
        %v646 = vadd.f32 %v640, %v644
        %v647 = vadd.f32 %v641, %v644
        %v648 = vld [vmem:[%s3] sm:$0xff]
        %v649 = vld [vmem:[%s3 + $0x8] sm:$0xff]
        %v650 = vld [vmem:[%s3 + $0x10] sm:$0xff]
        %v651 = vld [vmem:[%s3 + $0x18] sm:$0xff]
        %v652 = vld [vmem:[%s4] sm:$0x1]
        %v654 = vperm.slane %v652, 0
        %v657 = vsel %vm584, %v646, 0
        %v660 = vsel %vm584, %v647, 0
        %662 = vmatpush.msra.mxu0 0.0
        %663 = vmatpush.msra.mxu0 0.0
        %664 = vmatpush.msra.mxu0 0.0
        %665 = vmatpush.msra.mxu0 0.0
        %666 = vmatpush.msra.mxu0 0.0
        %667 = vmatpush.msra.mxu0 0.0
        %668 = vmatpush.msra.mxu0 0.0
        %669 = vmatpush.msra.mxu0 0.0
        %670 = vmatpush.msra.mxu0 0.0
        %671 = vmatpush.msra.mxu0 0.0
        %672 = vmatpush.msra.mxu0 0.0
        %673 = vmatpush.msra.mxu0 0.0
        %674 = vmatpush.msra.mxu0 %v651
        %675 = vmatpush.msra.mxu0 %v650
        %676 = vmatpush.msra.mxu0 %v649
        %677 = vmatpush.msra.mxu0 %v648
        %678 = vmatmul.f32.gmra.mxu0 %v657
        %v679 = vpop.f32.mrf.mxu0
        %v680 = vadd.f32 %v654, %v679
        %681 = vmatmul.f32.gmra.mxu0 %v660
        %v682 = vpop.f32.mrf.mxu0
        %v683 = vadd.f32 %v654, %v682
        %684 = vdwg.mxu0
        %v685 = vld [vmem:[%s5] sm:$0xff]
        %v686 = vld [vmem:[%s5 + $0x8] sm:$0xff]
        %v687 = vld [vmem:[%s5 + $0x10] sm:$0xff]
        %v688 = vld [vmem:[%s5 + $0x18] sm:$0xff]
        %v689 = vld [vmem:[%s6] sm:$0x1]
        %v691 = vperm.slane %v689, 0
        %693 = vmatpush.msra.mxu0 0.0
        %694 = vmatpush.msra.mxu0 0.0
        %695 = vmatpush.msra.mxu0 0.0
        %696 = vmatpush.msra.mxu0 0.0
        %697 = vmatpush.msra.mxu0 0.0
        %698 = vmatpush.msra.mxu0 0.0
        %699 = vmatpush.msra.mxu0 0.0
        %700 = vmatpush.msra.mxu0 0.0
        %701 = vmatpush.msra.mxu0 0.0
        %702 = vmatpush.msra.mxu0 0.0
        %703 = vmatpush.msra.mxu0 0.0
        %704 = vmatpush.msra.mxu0 0.0
        %705 = vmatpush.msra.mxu0 %v688
        %706 = vmatpush.msra.mxu0 %v687
        %707 = vmatpush.msra.mxu0 %v686
        %708 = vmatpush.msra.mxu0 %v685
        %709 = vmatmul.f32.gmra.mxu0 %v657
        %v710 = vpop.f32.mrf.mxu0
        %v711 = vadd.f32 %v691, %v710
        %712 = vmatmul.f32.gmra.mxu0 %v660
        %v713 = vpop.f32.mrf.mxu0
        %v714 = vadd.f32 %v691, %v713
        %715 = vdwg.mxu0
        %v716 = vld [vmem:[%s7] sm:$0xff]
        %v717 = vld [vmem:[%s7 + $0x8] sm:$0xff]
        %v718 = vld [vmem:[%s7 + $0x10] sm:$0xff]
        %v719 = vld [vmem:[%s7 + $0x18] sm:$0xff]
        %v720 = vld [vmem:[%s8] sm:$0x1]
        %v722 = vperm.slane %v720, 0
        %724 = vmatpush.msra.mxu0 0.0
        %725 = vmatpush.msra.mxu0 0.0
        %726 = vmatpush.msra.mxu0 0.0
        %727 = vmatpush.msra.mxu0 0.0
        %728 = vmatpush.msra.mxu0 0.0
        %729 = vmatpush.msra.mxu0 0.0
        %730 = vmatpush.msra.mxu0 0.0
        %731 = vmatpush.msra.mxu0 0.0
        %732 = vmatpush.msra.mxu0 0.0
        %733 = vmatpush.msra.mxu0 0.0
        %734 = vmatpush.msra.mxu0 0.0
        %735 = vmatpush.msra.mxu0 0.0
        %736 = vmatpush.msra.mxu0 %v719
        %737 = vmatpush.msra.mxu0 %v718
        %738 = vmatpush.msra.mxu0 %v717
        %739 = vmatpush.msra.mxu0 %v716
        %740 = vmatmul.f32.gmra.mxu0 %v657
        %v741 = vpop.f32.mrf.mxu0
        %v742 = vadd.f32 %v722, %v741
        %743 = vmatmul.f32.gmra.mxu0 %v660
        %v744 = vpop.f32.mrf.mxu0
        %v745 = vadd.f32 %v722, %v744
        %746 = vdwg.mxu0
        %749 = vrot.lane.b32.xlu0 %v680, 120
        %v750 = vpop.permute.xlu0 %749
        %751 = vrot.lane.b32.xlu0 %v683, 120
        %v752 = vpop.permute.xlu0 %751
        %755 = vrot.lane.b32.xlu0 %v680, 112
        %v756 = vpop.permute.xlu0 %755
        %757 = vrot.lane.b32.xlu0 %v683, 112
        %v758 = vpop.permute.xlu0 %757
        %761 = vrot.lane.b32.xlu0 %v680, 104
        %v762 = vpop.permute.xlu0 %761
        %763 = vrot.lane.b32.xlu0 %v683, 104
        %v764 = vpop.permute.xlu0 %763
        %v767 = vrot.slane %v756, 4
        %vm768 = vcmask 1047556
        %v769 = vsel %vm768, %v767, %v680
        %v770 = vrot.slane %v680, 4
        %v771 = vsel %vm768, %v756, %v770
        %v773 = vunpack.c.l.s4 1983009808
        %v774 = vunpack.c.0.s8 %v773
        %v775 = vperm.slane %v769, %v774
        %v777 = vunpack.c.l.s4 1983009808
        %v778 = vunpack.c.0.s8 %v777
        %v779 = vperm.slane %v771, %v778
        %v780 = vrot.slane %v762, 4
        %v781 = vsel %vm768, %v780, %v750
        %v782 = vrot.slane %v750, 4
        %v783 = vsel %vm768, %v762, %v782
        %v785 = vunpack.c.l.s4 1983009808
        %v786 = vunpack.c.0.s8 %v785
        %v787 = vperm.slane %v781, %v786
        %v789 = vunpack.c.l.s4 1983009808
        %v790 = vunpack.c.0.s8 %v789
        %v791 = vperm.slane %v783, %v790
        %v792 = vrot.slane %v787, 4
        %v793 = vsel %vm768, %v792, %v775
        %v794 = vrot.slane %v775, 4
        %v795 = vsel %vm768, %v787, %v794
        %v797 = vunpack.c.l.s4 1934713408
        %v798 = vunpack.c.0.s8 %v797
        %v799 = vperm.slane %v793, %v798
        %v801 = vunpack.c.l.s4 1934713408
        %v802 = vunpack.c.0.s8 %v801
        %v803 = vperm.slane %v795, %v802
        %v804 = vrot.slane %v791, 4
        %v805 = vsel %vm768, %v804, %v779
        %v806 = vrot.slane %v779, 4
        %v807 = vsel %vm768, %v791, %v806
        %v809 = vunpack.c.l.s4 1934713408
        %v810 = vunpack.c.0.s8 %v809
        %v811 = vperm.slane %v805, %v810
        %v813 = vunpack.c.l.s4 1934713408
        %v814 = vunpack.c.0.s8 %v813
        %v815 = vperm.slane %v807, %v814
        %v816 = vrot.slane %v799, 4
        %v817 = vsel %vm768, 0.0, %v816
        %v818 = vrot.slane %v803, 4
        %v819 = vsel %vm768, 0.0, %v818
        %v820 = vrot.slane %v811, 4
        %v821 = vsel %vm768, 0.0, %v820
        %v822 = vrot.slane %v815, 4
        %v823 = vsel %vm768, 0.0, %v822
        %v824 = vrot.slane %v758, 4
        %v825 = vsel %vm768, %v824, %v683
        %v826 = vrot.slane %v683, 4
        %v827 = vsel %vm768, %v758, %v826
        %v829 = vunpack.c.l.s4 1983009808
        %v830 = vunpack.c.0.s8 %v829
        %v831 = vperm.slane %v825, %v830
        %v833 = vunpack.c.l.s4 1983009808
        %v834 = vunpack.c.0.s8 %v833
        %v835 = vperm.slane %v827, %v834
        %v836 = vrot.slane %v764, 4
        %v837 = vsel %vm768, %v836, %v752
        %v838 = vrot.slane %v752, 4
        %v839 = vsel %vm768, %v764, %v838
        %v841 = vunpack.c.l.s4 1983009808
        %v842 = vunpack.c.0.s8 %v841
        %v843 = vperm.slane %v837, %v842
        %v845 = vunpack.c.l.s4 1983009808
        %v846 = vunpack.c.0.s8 %v845
        %v847 = vperm.slane %v839, %v846
        %v848 = vrot.slane %v843, 4
        %v849 = vsel %vm768, %v848, %v831
        %v850 = vrot.slane %v831, 4
        %v851 = vsel %vm768, %v843, %v850
        %v853 = vunpack.c.l.s4 1934713408
        %v854 = vunpack.c.0.s8 %v853
        %v855 = vperm.slane %v849, %v854
        %v857 = vunpack.c.l.s4 1934713408
        %v858 = vunpack.c.0.s8 %v857
        %v859 = vperm.slane %v851, %v858
        %v860 = vrot.slane %v847, 4
        %v861 = vsel %vm768, %v860, %v835
        %v862 = vrot.slane %v835, 4
        %v863 = vsel %vm768, %v847, %v862
        %v865 = vunpack.c.l.s4 1934713408
        %v866 = vunpack.c.0.s8 %v865
        %v867 = vperm.slane %v861, %v866
        %v869 = vunpack.c.l.s4 1934713408
        %v870 = vunpack.c.0.s8 %v869
        %v871 = vperm.slane %v863, %v870
        %v872 = vrot.slane %v855, 4
        %v873 = vsel %vm768, 0.0, %v872
        %v874 = vrot.slane %v859, 4
        %v875 = vsel %vm768, 0.0, %v874
        %v876 = vrot.slane %v867, 4
        %v877 = vsel %vm768, 0.0, %v876
        %v878 = vrot.slane %v871, 4
        %v879 = vsel %vm768, 0.0, %v878
        %v880 = vsel %vm768, %v818, %v799
        %v882 = vunpack.c.l.s4 1983009808
        %v883 = vunpack.c.0.s8 %v882
        %v884 = vperm.slane %v880, %v883
        %v885 = vrot.slane %v819, 4
        %v886 = vsel %vm768, %v885, %v817
        %v888 = vunpack.c.l.s4 1983009808
        %v889 = vunpack.c.0.s8 %v888
        %v890 = vperm.slane %v886, %v889
        %v891 = vsel %vm768, %v822, %v811
        %v893 = vunpack.c.l.s4 1983009808
        %v894 = vunpack.c.0.s8 %v893
        %v895 = vperm.slane %v891, %v894
        %v896 = vrot.slane %v823, 4
        %v897 = vsel %vm768, %v896, %v821
        %v899 = vunpack.c.l.s4 1983009808
        %v900 = vunpack.c.0.s8 %v899
        %v901 = vperm.slane %v897, %v900
        %v902 = vrot.slane %v890, 4
        %v903 = vsel %vm768, %v902, %v884
        %v904 = vrot.slane %v884, 4
        %v905 = vsel %vm768, %v890, %v904
        %v907 = vunpack.c.l.s4 1934713408
        %v908 = vunpack.c.0.s8 %v907
        %v909 = vperm.slane %v903, %v908
        %v911 = vunpack.c.l.s4 1934713408
        %v912 = vunpack.c.0.s8 %v911
        %v913 = vperm.slane %v905, %v912
        %v914 = vrot.slane %v901, 4
        %v915 = vsel %vm768, %v914, %v895
        %v916 = vrot.slane %v895, 4
        %v917 = vsel %vm768, %v901, %v916
        %v919 = vunpack.c.l.s4 1934713408
        %v920 = vunpack.c.0.s8 %v919
        %v921 = vperm.slane %v915, %v920
        %v923 = vunpack.c.l.s4 1934713408
        %v924 = vunpack.c.0.s8 %v923
        %v925 = vperm.slane %v917, %v924
        %v926 = vrot.slane %v921, 4
        %v927 = vsel %vm768, %v926, %v909
        %v928 = vrot.slane %v909, 4
        %v929 = vsel %vm768, %v921, %v928
        %v930 = vrot.slane %v925, 4
        %v931 = vsel %vm768, %v930, %v913
        %v932 = vrot.slane %v913, 4
        %v933 = vsel %vm768, %v925, %v932
        %v934 = vsel %vm768, %v874, %v855
        %v936 = vunpack.c.l.s4 1983009808
        %v937 = vunpack.c.0.s8 %v936
        %v938 = vperm.slane %v934, %v937
        %v939 = vrot.slane %v875, 4
        %v940 = vsel %vm768, %v939, %v873
        %v942 = vunpack.c.l.s4 1983009808
        %v943 = vunpack.c.0.s8 %v942
        %v944 = vperm.slane %v940, %v943
        %v945 = vsel %vm768, %v878, %v867
        %v947 = vunpack.c.l.s4 1983009808
        %v948 = vunpack.c.0.s8 %v947
        %v949 = vperm.slane %v945, %v948
        %v950 = vrot.slane %v879, 4
        %v951 = vsel %vm768, %v950, %v877
        %v953 = vunpack.c.l.s4 1983009808
        %v954 = vunpack.c.0.s8 %v953
        %v955 = vperm.slane %v951, %v954
        %v956 = vrot.slane %v944, 4
        %v957 = vsel %vm768, %v956, %v938
        %v958 = vrot.slane %v938, 4
        %v959 = vsel %vm768, %v944, %v958
        %v961 = vunpack.c.l.s4 1934713408
        %v962 = vunpack.c.0.s8 %v961
        %v963 = vperm.slane %v957, %v962
        %v965 = vunpack.c.l.s4 1934713408
        %v966 = vunpack.c.0.s8 %v965
        %v967 = vperm.slane %v959, %v966
        %v968 = vrot.slane %v955, 4
        %v969 = vsel %vm768, %v968, %v949
        %v970 = vrot.slane %v949, 4
        %v971 = vsel %vm768, %v955, %v970
        %v973 = vunpack.c.l.s4 1934713408
        %v974 = vunpack.c.0.s8 %v973
        %v975 = vperm.slane %v969, %v974
        %v977 = vunpack.c.l.s4 1934713408
        %v978 = vunpack.c.0.s8 %v977
        %v979 = vperm.slane %v971, %v978
        %v980 = vrot.slane %v975, 4
        %v981 = vsel %vm768, %v980, %v963
        %v982 = vrot.slane %v963, 4
        %v983 = vsel %vm768, %v975, %v982
        %v984 = vrot.slane %v979, 4
        %v985 = vsel %vm768, %v984, %v967
        %v986 = vrot.slane %v967, 4
        %v987 = vsel %vm768, %v979, %v986
        %990 = vrot.lane.b32.xlu0 %v711, 120
        %v991 = vpop.permute.xlu0 %990
        %992 = vrot.lane.b32.xlu0 %v714, 120
        %v993 = vpop.permute.xlu0 %992
        %996 = vrot.lane.b32.xlu0 %v711, 112
        %v997 = vpop.permute.xlu0 %996
        %998 = vrot.lane.b32.xlu0 %v714, 112
        %v999 = vpop.permute.xlu0 %998
        %1002 = vrot.lane.b32.xlu0 %v711, 104
        %v1003 = vpop.permute.xlu0 %1002
        %1004 = vrot.lane.b32.xlu0 %v714, 104
        %v1005 = vpop.permute.xlu0 %1004
        %v1008 = vrot.slane %v997, 4
        %v1009 = vsel %vm768, %v1008, %v711
        %v1010 = vrot.slane %v711, 4
        %v1011 = vsel %vm768, %v997, %v1010
        %v1013 = vunpack.c.l.s4 1983009808
        %v1014 = vunpack.c.0.s8 %v1013
        %v1015 = vperm.slane %v1009, %v1014
        %v1017 = vunpack.c.l.s4 1983009808
        %v1018 = vunpack.c.0.s8 %v1017
        %v1019 = vperm.slane %v1011, %v1018
        %v1020 = vrot.slane %v1003, 4
        %v1021 = vsel %vm768, %v1020, %v991
        %v1022 = vrot.slane %v991, 4
        %v1023 = vsel %vm768, %v1003, %v1022
        %v1025 = vunpack.c.l.s4 1983009808
        %v1026 = vunpack.c.0.s8 %v1025
        %v1027 = vperm.slane %v1021, %v1026
        %v1029 = vunpack.c.l.s4 1983009808
        %v1030 = vunpack.c.0.s8 %v1029
        %v1031 = vperm.slane %v1023, %v1030
        %v1032 = vrot.slane %v1027, 4
        %v1033 = vsel %vm768, %v1032, %v1015
        %v1034 = vrot.slane %v1015, 4
        %v1035 = vsel %vm768, %v1027, %v1034
        %v1037 = vunpack.c.l.s4 1934713408
        %v1038 = vunpack.c.0.s8 %v1037
        %v1039 = vperm.slane %v1033, %v1038
        %v1041 = vunpack.c.l.s4 1934713408
        %v1042 = vunpack.c.0.s8 %v1041
        %v1043 = vperm.slane %v1035, %v1042
        %v1044 = vrot.slane %v1031, 4
        %v1045 = vsel %vm768, %v1044, %v1019
        %v1046 = vrot.slane %v1019, 4
        %v1047 = vsel %vm768, %v1031, %v1046
        %v1049 = vunpack.c.l.s4 1934713408
        %v1050 = vunpack.c.0.s8 %v1049
        %v1051 = vperm.slane %v1045, %v1050
        %v1053 = vunpack.c.l.s4 1934713408
        %v1054 = vunpack.c.0.s8 %v1053
        %v1055 = vperm.slane %v1047, %v1054
        %v1056 = vrot.slane %v1039, 4
        %v1057 = vsel %vm768, 0.0, %v1056
        %v1058 = vrot.slane %v1043, 4
        %v1059 = vsel %vm768, 0.0, %v1058
        %v1060 = vrot.slane %v1051, 4
        %v1061 = vsel %vm768, 0.0, %v1060
        %v1062 = vrot.slane %v1055, 4
        %v1063 = vsel %vm768, 0.0, %v1062
        %v1064 = vrot.slane %v999, 4
        %v1065 = vsel %vm768, %v1064, %v714
        %v1066 = vrot.slane %v714, 4
        %v1067 = vsel %vm768, %v999, %v1066
        %v1069 = vunpack.c.l.s4 1983009808
        %v1070 = vunpack.c.0.s8 %v1069
        %v1071 = vperm.slane %v1065, %v1070
        %v1073 = vunpack.c.l.s4 1983009808
        %v1074 = vunpack.c.0.s8 %v1073
        %v1075 = vperm.slane %v1067, %v1074
        %v1076 = vrot.slane %v1005, 4
        %v1077 = vsel %vm768, %v1076, %v993
        %v1078 = vrot.slane %v993, 4
        %v1079 = vsel %vm768, %v1005, %v1078
        %v1081 = vunpack.c.l.s4 1983009808
        %v1082 = vunpack.c.0.s8 %v1081
        %v1083 = vperm.slane %v1077, %v1082
        %v1085 = vunpack.c.l.s4 1983009808
        %v1086 = vunpack.c.0.s8 %v1085
        %v1087 = vperm.slane %v1079, %v1086
        %v1088 = vrot.slane %v1083, 4
        %v1089 = vsel %vm768, %v1088, %v1071
        %v1090 = vrot.slane %v1071, 4
        %v1091 = vsel %vm768, %v1083, %v1090
        %v1093 = vunpack.c.l.s4 1934713408
        %v1094 = vunpack.c.0.s8 %v1093
        %v1095 = vperm.slane %v1089, %v1094
        %v1097 = vunpack.c.l.s4 1934713408
        %v1098 = vunpack.c.0.s8 %v1097
        %v1099 = vperm.slane %v1091, %v1098
        %v1100 = vrot.slane %v1087, 4
        %v1101 = vsel %vm768, %v1100, %v1075
        %v1102 = vrot.slane %v1075, 4
        %v1103 = vsel %vm768, %v1087, %v1102
        %v1105 = vunpack.c.l.s4 1934713408
        %v1106 = vunpack.c.0.s8 %v1105
        %v1107 = vperm.slane %v1101, %v1106
        %v1109 = vunpack.c.l.s4 1934713408
        %v1110 = vunpack.c.0.s8 %v1109
        %v1111 = vperm.slane %v1103, %v1110
        %v1112 = vrot.slane %v1095, 4
        %v1113 = vsel %vm768, 0.0, %v1112
        %v1114 = vrot.slane %v1099, 4
        %v1115 = vsel %vm768, 0.0, %v1114
        %v1116 = vrot.slane %v1107, 4
        %v1117 = vsel %vm768, 0.0, %v1116
        %v1118 = vrot.slane %v1111, 4
        %v1119 = vsel %vm768, 0.0, %v1118
        %v1120 = vsel %vm768, %v1058, %v1039
        %v1122 = vunpack.c.l.s4 1983009808
        %v1123 = vunpack.c.0.s8 %v1122
        %v1124 = vperm.slane %v1120, %v1123
        %v1125 = vrot.slane %v1059, 4
        %v1126 = vsel %vm768, %v1125, %v1057
        %v1128 = vunpack.c.l.s4 1983009808
        %v1129 = vunpack.c.0.s8 %v1128
        %v1130 = vperm.slane %v1126, %v1129
        %v1131 = vsel %vm768, %v1062, %v1051
        %v1133 = vunpack.c.l.s4 1983009808
        %v1134 = vunpack.c.0.s8 %v1133
        %v1135 = vperm.slane %v1131, %v1134
        %v1136 = vrot.slane %v1063, 4
        %v1137 = vsel %vm768, %v1136, %v1061
        %v1139 = vunpack.c.l.s4 1983009808
        %v1140 = vunpack.c.0.s8 %v1139
        %v1141 = vperm.slane %v1137, %v1140
        %v1142 = vrot.slane %v1130, 4
        %v1143 = vsel %vm768, %v1142, %v1124
        %v1144 = vrot.slane %v1124, 4
        %v1145 = vsel %vm768, %v1130, %v1144
        %v1147 = vunpack.c.l.s4 1934713408
        %v1148 = vunpack.c.0.s8 %v1147
        %v1149 = vperm.slane %v1143, %v1148
        %v1151 = vunpack.c.l.s4 1934713408
        %v1152 = vunpack.c.0.s8 %v1151
        %v1153 = vperm.slane %v1145, %v1152
        %v1154 = vrot.slane %v1141, 4
        %v1155 = vsel %vm768, %v1154, %v1135
        %v1156 = vrot.slane %v1135, 4
        %v1157 = vsel %vm768, %v1141, %v1156
        %v1159 = vunpack.c.l.s4 1934713408
        %v1160 = vunpack.c.0.s8 %v1159
        %v1161 = vperm.slane %v1155, %v1160
        %v1163 = vunpack.c.l.s4 1934713408
        %v1164 = vunpack.c.0.s8 %v1163
        %v1165 = vperm.slane %v1157, %v1164
        %v1166 = vrot.slane %v1161, 4
        %v1167 = vsel %vm768, %v1166, %v1149
        %v1168 = vrot.slane %v1149, 4
        %v1169 = vsel %vm768, %v1161, %v1168
        %v1170 = vrot.slane %v1165, 4
        %v1171 = vsel %vm768, %v1170, %v1153
        %v1172 = vrot.slane %v1153, 4
        %v1173 = vsel %vm768, %v1165, %v1172
        %v1174 = vsel %vm768, %v1114, %v1095
        %v1176 = vunpack.c.l.s4 1983009808
        %v1177 = vunpack.c.0.s8 %v1176
        %v1178 = vperm.slane %v1174, %v1177
        %v1179 = vrot.slane %v1115, 4
        %v1180 = vsel %vm768, %v1179, %v1113
        %v1182 = vunpack.c.l.s4 1983009808
        %v1183 = vunpack.c.0.s8 %v1182
        %v1184 = vperm.slane %v1180, %v1183
        %v1185 = vsel %vm768, %v1118, %v1107
        %v1187 = vunpack.c.l.s4 1983009808
        %v1188 = vunpack.c.0.s8 %v1187
        %v1189 = vperm.slane %v1185, %v1188
        %v1190 = vrot.slane %v1119, 4
        %v1191 = vsel %vm768, %v1190, %v1117
        %v1193 = vunpack.c.l.s4 1983009808
        %v1194 = vunpack.c.0.s8 %v1193
        %v1195 = vperm.slane %v1191, %v1194
        %v1196 = vrot.slane %v1184, 4
        %v1197 = vsel %vm768, %v1196, %v1178
        %v1198 = vrot.slane %v1178, 4
        %v1199 = vsel %vm768, %v1184, %v1198
        %v1201 = vunpack.c.l.s4 1934713408
        %v1202 = vunpack.c.0.s8 %v1201
        %v1203 = vperm.slane %v1197, %v1202
        %v1205 = vunpack.c.l.s4 1934713408
        %v1206 = vunpack.c.0.s8 %v1205
        %v1207 = vperm.slane %v1199, %v1206
        %v1208 = vrot.slane %v1195, 4
        %v1209 = vsel %vm768, %v1208, %v1189
        %v1210 = vrot.slane %v1189, 4
        %v1211 = vsel %vm768, %v1195, %v1210
        %v1213 = vunpack.c.l.s4 1934713408
        %v1214 = vunpack.c.0.s8 %v1213
        %v1215 = vperm.slane %v1209, %v1214
        %v1217 = vunpack.c.l.s4 1934713408
        %v1218 = vunpack.c.0.s8 %v1217
        %v1219 = vperm.slane %v1211, %v1218
        %v1220 = vrot.slane %v1215, 4
        %v1221 = vsel %vm768, %v1220, %v1203
        %v1222 = vrot.slane %v1203, 4
        %v1223 = vsel %vm768, %v1215, %v1222
        %v1224 = vrot.slane %v1219, 4
        %v1225 = vsel %vm768, %v1224, %v1207
        %v1226 = vrot.slane %v1207, 4
        %v1227 = vsel %vm768, %v1219, %v1226
        %1230 = vrot.lane.b32.xlu0 %v742, 120
        %v1231 = vpop.permute.xlu0 %1230
        %1232 = vrot.lane.b32.xlu0 %v745, 120
        %v1233 = vpop.permute.xlu0 %1232
        %1236 = vrot.lane.b32.xlu0 %v742, 112
        %v1237 = vpop.permute.xlu0 %1236
        %1238 = vrot.lane.b32.xlu0 %v745, 112
        %v1239 = vpop.permute.xlu0 %1238
        %1242 = vrot.lane.b32.xlu0 %v742, 104
        %v1243 = vpop.permute.xlu0 %1242
        %1244 = vrot.lane.b32.xlu0 %v745, 104
        %v1245 = vpop.permute.xlu0 %1244
        %v1248 = vrot.slane %v1237, 4
        %v1249 = vsel %vm768, %v1248, %v742
        %v1250 = vrot.slane %v742, 4
        %v1251 = vsel %vm768, %v1237, %v1250
        %v1253 = vunpack.c.l.s4 1983009808
        %v1254 = vunpack.c.0.s8 %v1253
        %v1255 = vperm.slane %v1249, %v1254
        %v1257 = vunpack.c.l.s4 1983009808
        %v1258 = vunpack.c.0.s8 %v1257
        %v1259 = vperm.slane %v1251, %v1258
        %v1260 = vrot.slane %v1243, 4
        %v1261 = vsel %vm768, %v1260, %v1231
        %v1262 = vrot.slane %v1231, 4
        %v1263 = vsel %vm768, %v1243, %v1262
        %v1265 = vunpack.c.l.s4 1983009808
        %v1266 = vunpack.c.0.s8 %v1265
        %v1267 = vperm.slane %v1261, %v1266
        %v1269 = vunpack.c.l.s4 1983009808
        %v1270 = vunpack.c.0.s8 %v1269
        %v1271 = vperm.slane %v1263, %v1270
        %v1272 = vrot.slane %v1267, 4
        %v1273 = vsel %vm768, %v1272, %v1255
        %v1274 = vrot.slane %v1255, 4
        %v1275 = vsel %vm768, %v1267, %v1274
        %v1277 = vunpack.c.l.s4 1934713408
        %v1278 = vunpack.c.0.s8 %v1277
        %v1279 = vperm.slane %v1273, %v1278
        %v1281 = vunpack.c.l.s4 1934713408
        %v1282 = vunpack.c.0.s8 %v1281
        %v1283 = vperm.slane %v1275, %v1282
        %v1284 = vrot.slane %v1271, 4
        %v1285 = vsel %vm768, %v1284, %v1259
        %v1286 = vrot.slane %v1259, 4
        %v1287 = vsel %vm768, %v1271, %v1286
        %v1289 = vunpack.c.l.s4 1934713408
        %v1290 = vunpack.c.0.s8 %v1289
        %v1291 = vperm.slane %v1285, %v1290
        %v1293 = vunpack.c.l.s4 1934713408
        %v1294 = vunpack.c.0.s8 %v1293
        %v1295 = vperm.slane %v1287, %v1294
        %v1296 = vrot.slane %v1279, 4
        %v1297 = vsel %vm768, 0.0, %v1296
        %v1298 = vrot.slane %v1283, 4
        %v1299 = vsel %vm768, 0.0, %v1298
        %v1300 = vrot.slane %v1291, 4
        %v1301 = vsel %vm768, 0.0, %v1300
        %v1302 = vrot.slane %v1295, 4
        %v1303 = vsel %vm768, 0.0, %v1302
        %v1304 = vrot.slane %v1239, 4
        %v1305 = vsel %vm768, %v1304, %v745
        %v1306 = vrot.slane %v745, 4
        %v1307 = vsel %vm768, %v1239, %v1306
        %v1309 = vunpack.c.l.s4 1983009808
        %v1310 = vunpack.c.0.s8 %v1309
        %v1311 = vperm.slane %v1305, %v1310
        %v1313 = vunpack.c.l.s4 1983009808
        %v1314 = vunpack.c.0.s8 %v1313
        %v1315 = vperm.slane %v1307, %v1314
        %v1316 = vrot.slane %v1245, 4
        %v1317 = vsel %vm768, %v1316, %v1233
        %v1318 = vrot.slane %v1233, 4
        %v1319 = vsel %vm768, %v1245, %v1318
        %v1321 = vunpack.c.l.s4 1983009808
        %v1322 = vunpack.c.0.s8 %v1321
        %v1323 = vperm.slane %v1317, %v1322
        %v1325 = vunpack.c.l.s4 1983009808
        %v1326 = vunpack.c.0.s8 %v1325
        %v1327 = vperm.slane %v1319, %v1326
        %v1328 = vrot.slane %v1323, 4
        %v1329 = vsel %vm768, %v1328, %v1311
        %v1330 = vrot.slane %v1311, 4
        %v1331 = vsel %vm768, %v1323, %v1330
        %v1333 = vunpack.c.l.s4 1934713408
        %v1334 = vunpack.c.0.s8 %v1333
        %v1335 = vperm.slane %v1329, %v1334
        %v1337 = vunpack.c.l.s4 1934713408
        %v1338 = vunpack.c.0.s8 %v1337
        %v1339 = vperm.slane %v1331, %v1338
        %v1340 = vrot.slane %v1327, 4
        %v1341 = vsel %vm768, %v1340, %v1315
        %v1342 = vrot.slane %v1315, 4
        %v1343 = vsel %vm768, %v1327, %v1342
        %v1345 = vunpack.c.l.s4 1934713408
        %v1346 = vunpack.c.0.s8 %v1345
        %v1347 = vperm.slane %v1341, %v1346
        %v1349 = vunpack.c.l.s4 1934713408
        %v1350 = vunpack.c.0.s8 %v1349
        %v1351 = vperm.slane %v1343, %v1350
        %v1352 = vrot.slane %v1335, 4
        %v1353 = vsel %vm768, 0.0, %v1352
        %v1354 = vrot.slane %v1339, 4
        %v1355 = vsel %vm768, 0.0, %v1354
        %v1356 = vrot.slane %v1347, 4
        %v1357 = vsel %vm768, 0.0, %v1356
        %v1358 = vrot.slane %v1351, 4
        %v1359 = vsel %vm768, 0.0, %v1358
        %v1360 = vsel %vm768, %v1298, %v1279
        %v1362 = vunpack.c.l.s4 1983009808
        %v1363 = vunpack.c.0.s8 %v1362
        %v1364 = vperm.slane %v1360, %v1363
        %v1365 = vrot.slane %v1299, 4
        %v1366 = vsel %vm768, %v1365, %v1297
        %v1368 = vunpack.c.l.s4 1983009808
        %v1369 = vunpack.c.0.s8 %v1368
        %v1370 = vperm.slane %v1366, %v1369
        %v1371 = vsel %vm768, %v1302, %v1291
        %v1373 = vunpack.c.l.s4 1983009808
        %v1374 = vunpack.c.0.s8 %v1373
        %v1375 = vperm.slane %v1371, %v1374
        %v1376 = vrot.slane %v1303, 4
        %v1377 = vsel %vm768, %v1376, %v1301
        %v1379 = vunpack.c.l.s4 1983009808
        %v1380 = vunpack.c.0.s8 %v1379
        %v1381 = vperm.slane %v1377, %v1380
        %v1382 = vrot.slane %v1370, 4
        %v1383 = vsel %vm768, %v1382, %v1364
        %v1384 = vrot.slane %v1364, 4
        %v1385 = vsel %vm768, %v1370, %v1384
        %v1387 = vunpack.c.l.s4 1934713408
        %v1388 = vunpack.c.0.s8 %v1387
        %v1389 = vperm.slane %v1383, %v1388
        %v1391 = vunpack.c.l.s4 1934713408
        %v1392 = vunpack.c.0.s8 %v1391
        %v1393 = vperm.slane %v1385, %v1392
        %v1394 = vrot.slane %v1381, 4
        %v1395 = vsel %vm768, %v1394, %v1375
        %v1396 = vrot.slane %v1375, 4
        %v1397 = vsel %vm768, %v1381, %v1396
        %v1399 = vunpack.c.l.s4 1934713408
        %v1400 = vunpack.c.0.s8 %v1399
        %v1401 = vperm.slane %v1395, %v1400
        %v1403 = vunpack.c.l.s4 1934713408
        %v1404 = vunpack.c.0.s8 %v1403
        %v1405 = vperm.slane %v1397, %v1404
        %v1406 = vrot.slane %v1401, 4
        %v1407 = vsel %vm768, %v1406, %v1389
        %v1408 = vrot.slane %v1389, 4
        %v1409 = vsel %vm768, %v1401, %v1408
        %v1410 = vrot.slane %v1405, 4
        %v1411 = vsel %vm768, %v1410, %v1393
        %v1412 = vrot.slane %v1393, 4
        %v1413 = vsel %vm768, %v1405, %v1412
        %v1414 = vsel %vm768, %v1354, %v1335
        %v1416 = vunpack.c.l.s4 1983009808
        %v1417 = vunpack.c.0.s8 %v1416
        %v1418 = vperm.slane %v1414, %v1417
        %v1419 = vrot.slane %v1355, 4
        %v1420 = vsel %vm768, %v1419, %v1353
        %v1422 = vunpack.c.l.s4 1983009808
        %v1423 = vunpack.c.0.s8 %v1422
        %v1424 = vperm.slane %v1420, %v1423
        %v1425 = vsel %vm768, %v1358, %v1347
        %v1427 = vunpack.c.l.s4 1983009808
        %v1428 = vunpack.c.0.s8 %v1427
        %v1429 = vperm.slane %v1425, %v1428
        %v1430 = vrot.slane %v1359, 4
        %v1431 = vsel %vm768, %v1430, %v1357
        %v1433 = vunpack.c.l.s4 1983009808
        %v1434 = vunpack.c.0.s8 %v1433
        %v1435 = vperm.slane %v1431, %v1434
        %v1436 = vrot.slane %v1424, 4
        %v1437 = vsel %vm768, %v1436, %v1418
        %v1438 = vrot.slane %v1418, 4
        %v1439 = vsel %vm768, %v1424, %v1438
        %v1441 = vunpack.c.l.s4 1934713408
        %v1442 = vunpack.c.0.s8 %v1441
        %v1443 = vperm.slane %v1437, %v1442
        %v1445 = vunpack.c.l.s4 1934713408
        %v1446 = vunpack.c.0.s8 %v1445
        %v1447 = vperm.slane %v1439, %v1446
        %v1448 = vrot.slane %v1435, 4
        %v1449 = vsel %vm768, %v1448, %v1429
        %v1450 = vrot.slane %v1429, 4
        %v1451 = vsel %vm768, %v1435, %v1450
        %v1453 = vunpack.c.l.s4 1934713408
        %v1454 = vunpack.c.0.s8 %v1453
        %v1455 = vperm.slane %v1449, %v1454
        %v1457 = vunpack.c.l.s4 1934713408
        %v1458 = vunpack.c.0.s8 %v1457
        %v1459 = vperm.slane %v1451, %v1458
        %v1460 = vrot.slane %v1455, 4
        %v1461 = vsel %vm768, %v1460, %v1443
        %v1462 = vrot.slane %v1443, 4
        %v1463 = vsel %vm768, %v1455, %v1462
        %v1464 = vrot.slane %v1459, 4
        %v1465 = vsel %vm768, %v1464, %v1447
        %v1466 = vrot.slane %v1447, 4
        %v1467 = vsel %vm768, %v1459, %v1466
        %vm1468 = vcmask 64512
        %v1470 = vsel %vm1468, %v927, 0
        %v1473 = vsel %vm1468, %v1167, 0
        %1475 = vmatpush.xpose.msra.mxu0 0.0
        %1476 = vmatpush.xpose.msra.mxu0 0.0
        %1477 = vmatpush.xpose.msra.mxu0 0.0
        %1478 = vmatpush.xpose.msra.mxu0 0.0
        %1479 = vmatpush.xpose.msra.mxu0 0.0
        %1480 = vmatpush.xpose.msra.mxu0 0.0
        %1481 = vmatpush.xpose.msra.mxu0 0.0
        %1482 = vmatpush.xpose.msra.mxu0 0.0
        %1483 = vmatpush.xpose.msra.mxu0 0.0
        %1484 = vmatpush.xpose.msra.mxu0 0.0
        %1485 = vmatpush.xpose.msra.mxu0 0.0
        %1486 = vmatpush.xpose.msra.mxu0 0.0
        %1487 = vmatpush.xpose.msra.mxu0 0.0
        %1488 = vmatpush.xpose.msra.mxu0 0.0
        %1489 = vmatpush.xpose.msra.mxu0 0.0
        %1490 = vmatpush.xpose.msra.mxu0 %v1473
        %1491 = vmatmul.f32.gmra.mxu0 %v1470
        %v1492 = vpop.f32.mrf.mxu0
        %v1493 = vadd.f32 0.0, %v1492
        %1494 = vdwg.mxu0
        %v1496 = vsel %vm1468, %v929, 0
        %v1499 = vsel %vm1468, %v1169, 0
        %1501 = vmatpush.xpose.msra.mxu0 0.0
        %1502 = vmatpush.xpose.msra.mxu0 0.0
        %1503 = vmatpush.xpose.msra.mxu0 0.0
        %1504 = vmatpush.xpose.msra.mxu0 0.0
        %1505 = vmatpush.xpose.msra.mxu0 0.0
        %1506 = vmatpush.xpose.msra.mxu0 0.0
        %1507 = vmatpush.xpose.msra.mxu0 0.0
        %1508 = vmatpush.xpose.msra.mxu0 0.0
        %1509 = vmatpush.xpose.msra.mxu0 0.0
        %1510 = vmatpush.xpose.msra.mxu0 0.0
        %1511 = vmatpush.xpose.msra.mxu0 0.0
        %1512 = vmatpush.xpose.msra.mxu0 0.0
        %1513 = vmatpush.xpose.msra.mxu0 0.0
        %1514 = vmatpush.xpose.msra.mxu0 0.0
        %1515 = vmatpush.xpose.msra.mxu0 0.0
        %1516 = vmatpush.xpose.msra.mxu0 %v1499
        %1517 = vmatmul.f32.gmra.mxu0 %v1496
        %v1518 = vpop.f32.mrf.mxu0
        %v1519 = vadd.f32 0.0, %v1518
        %1520 = vdwg.mxu0
        %v1522 = vsel %vm1468, %v931, 0
        %v1525 = vsel %vm1468, %v1171, 0
        %1527 = vmatpush.xpose.msra.mxu0 0.0
        %1528 = vmatpush.xpose.msra.mxu0 0.0
        %1529 = vmatpush.xpose.msra.mxu0 0.0
        %1530 = vmatpush.xpose.msra.mxu0 0.0
        %1531 = vmatpush.xpose.msra.mxu0 0.0
        %1532 = vmatpush.xpose.msra.mxu0 0.0
        %1533 = vmatpush.xpose.msra.mxu0 0.0
        %1534 = vmatpush.xpose.msra.mxu0 0.0
        %1535 = vmatpush.xpose.msra.mxu0 0.0
        %1536 = vmatpush.xpose.msra.mxu0 0.0
        %1537 = vmatpush.xpose.msra.mxu0 0.0
        %1538 = vmatpush.xpose.msra.mxu0 0.0
        %1539 = vmatpush.xpose.msra.mxu0 0.0
        %1540 = vmatpush.xpose.msra.mxu0 0.0
        %1541 = vmatpush.xpose.msra.mxu0 0.0
        %1542 = vmatpush.xpose.msra.mxu0 %v1525
        %1543 = vmatmul.f32.gmra.mxu0 %v1522
        %v1544 = vpop.f32.mrf.mxu0
        %v1545 = vadd.f32 0.0, %v1544
        %1546 = vdwg.mxu0
        %v1548 = vsel %vm1468, %v933, 0
        %v1551 = vsel %vm1468, %v1173, 0
        %1553 = vmatpush.xpose.msra.mxu0 0.0
        %1554 = vmatpush.xpose.msra.mxu0 0.0
        %1555 = vmatpush.xpose.msra.mxu0 0.0
        %1556 = vmatpush.xpose.msra.mxu0 0.0
        %1557 = vmatpush.xpose.msra.mxu0 0.0
        %1558 = vmatpush.xpose.msra.mxu0 0.0
        %1559 = vmatpush.xpose.msra.mxu0 0.0
        %1560 = vmatpush.xpose.msra.mxu0 0.0
        %1561 = vmatpush.xpose.msra.mxu0 0.0
        %1562 = vmatpush.xpose.msra.mxu0 0.0
        %1563 = vmatpush.xpose.msra.mxu0 0.0
        %1564 = vmatpush.xpose.msra.mxu0 0.0
        %1565 = vmatpush.xpose.msra.mxu0 0.0
        %1566 = vmatpush.xpose.msra.mxu0 0.0
        %1567 = vmatpush.xpose.msra.mxu0 0.0
        %1568 = vmatpush.xpose.msra.mxu0 %v1551
        %1569 = vmatmul.f32.gmra.mxu0 %v1548
        %v1570 = vpop.f32.mrf.mxu0
        %v1571 = vadd.f32 0.0, %v1570
        %1572 = vdwg.mxu0
        %v1574 = vsel %vm1468, %v981, 0
        %v1577 = vsel %vm1468, %v1221, 0
        %1579 = vmatpush.xpose.msra.mxu0 0.0
        %1580 = vmatpush.xpose.msra.mxu0 0.0
        %1581 = vmatpush.xpose.msra.mxu0 0.0
        %1582 = vmatpush.xpose.msra.mxu0 0.0
        %1583 = vmatpush.xpose.msra.mxu0 0.0
        %1584 = vmatpush.xpose.msra.mxu0 0.0
        %1585 = vmatpush.xpose.msra.mxu0 0.0
        %1586 = vmatpush.xpose.msra.mxu0 0.0
        %1587 = vmatpush.xpose.msra.mxu0 0.0
        %1588 = vmatpush.xpose.msra.mxu0 0.0
        %1589 = vmatpush.xpose.msra.mxu0 0.0
        %1590 = vmatpush.xpose.msra.mxu0 0.0
        %1591 = vmatpush.xpose.msra.mxu0 0.0
        %1592 = vmatpush.xpose.msra.mxu0 0.0
        %1593 = vmatpush.xpose.msra.mxu0 0.0
        %1594 = vmatpush.xpose.msra.mxu0 %v1577
        %1595 = vmatmul.f32.gmra.mxu0 %v1574
        %v1596 = vpop.f32.mrf.mxu0
        %v1597 = vadd.f32 0.0, %v1596
        %1598 = vdwg.mxu0
        %v1600 = vsel %vm1468, %v983, 0
        %v1603 = vsel %vm1468, %v1223, 0
        %1605 = vmatpush.xpose.msra.mxu0 0.0
        %1606 = vmatpush.xpose.msra.mxu0 0.0
        %1607 = vmatpush.xpose.msra.mxu0 0.0
        %1608 = vmatpush.xpose.msra.mxu0 0.0
        %1609 = vmatpush.xpose.msra.mxu0 0.0
        %1610 = vmatpush.xpose.msra.mxu0 0.0
        %1611 = vmatpush.xpose.msra.mxu0 0.0
        %1612 = vmatpush.xpose.msra.mxu0 0.0
        %1613 = vmatpush.xpose.msra.mxu0 0.0
        %1614 = vmatpush.xpose.msra.mxu0 0.0
        %1615 = vmatpush.xpose.msra.mxu0 0.0
        %1616 = vmatpush.xpose.msra.mxu0 0.0
        %1617 = vmatpush.xpose.msra.mxu0 0.0
        %1618 = vmatpush.xpose.msra.mxu0 0.0
        %1619 = vmatpush.xpose.msra.mxu0 0.0
        %1620 = vmatpush.xpose.msra.mxu0 %v1603
        %1621 = vmatmul.f32.gmra.mxu0 %v1600
        %v1622 = vpop.f32.mrf.mxu0
        %v1623 = vadd.f32 0.0, %v1622
        %1624 = vdwg.mxu0
        %v1626 = vsel %vm1468, %v985, 0
        %v1629 = vsel %vm1468, %v1225, 0
        %1631 = vmatpush.xpose.msra.mxu0 0.0
        %1632 = vmatpush.xpose.msra.mxu0 0.0
        %1633 = vmatpush.xpose.msra.mxu0 0.0
        %1634 = vmatpush.xpose.msra.mxu0 0.0
        %1635 = vmatpush.xpose.msra.mxu0 0.0
        %1636 = vmatpush.xpose.msra.mxu0 0.0
        %1637 = vmatpush.xpose.msra.mxu0 0.0
        %1638 = vmatpush.xpose.msra.mxu0 0.0
        %1639 = vmatpush.xpose.msra.mxu0 0.0
        %1640 = vmatpush.xpose.msra.mxu0 0.0
        %1641 = vmatpush.xpose.msra.mxu0 0.0
        %1642 = vmatpush.xpose.msra.mxu0 0.0
        %1643 = vmatpush.xpose.msra.mxu0 0.0
        %1644 = vmatpush.xpose.msra.mxu0 0.0
        %1645 = vmatpush.xpose.msra.mxu0 0.0
        %1646 = vmatpush.xpose.msra.mxu0 %v1629
        %1647 = vmatmul.f32.gmra.mxu0 %v1626
        %v1648 = vpop.f32.mrf.mxu0
        %v1649 = vadd.f32 0.0, %v1648
        %1650 = vdwg.mxu0
        %v1652 = vsel %vm1468, %v987, 0
        %v1655 = vsel %vm1468, %v1227, 0
        %1657 = vmatpush.xpose.msra.mxu0 0.0
        %1658 = vmatpush.xpose.msra.mxu0 0.0
        %1659 = vmatpush.xpose.msra.mxu0 0.0
        %1660 = vmatpush.xpose.msra.mxu0 0.0
        %1661 = vmatpush.xpose.msra.mxu0 0.0
        %1662 = vmatpush.xpose.msra.mxu0 0.0
        %1663 = vmatpush.xpose.msra.mxu0 0.0
        %1664 = vmatpush.xpose.msra.mxu0 0.0
        %1665 = vmatpush.xpose.msra.mxu0 0.0
        %1666 = vmatpush.xpose.msra.mxu0 0.0
        %1667 = vmatpush.xpose.msra.mxu0 0.0
        %1668 = vmatpush.xpose.msra.mxu0 0.0
        %1669 = vmatpush.xpose.msra.mxu0 0.0
        %1670 = vmatpush.xpose.msra.mxu0 0.0
        %1671 = vmatpush.xpose.msra.mxu0 0.0
        %1672 = vmatpush.xpose.msra.mxu0 %v1655
        %1673 = vmatmul.f32.gmra.mxu0 %v1652
        %v1674 = vpop.f32.mrf.mxu0
        %v1675 = vadd.f32 0.0, %v1674
        %1676 = vdwg.mxu0
        %v1677 = vsel %vm1468, %v1493, -inf
        %1678 = vmax.xlane.f32.xlu0 %v1677
        %v1679 = vpop.xlane.xlu0 %1678
        %v1680 = vsel %vm1468, %v1519, -inf
        %1681 = vmax.xlane.f32.xlu0 %v1680
        %v1682 = vpop.xlane.xlu0 %1681
        %v1683 = vsel %vm1468, %v1545, -inf
        %1684 = vmax.xlane.f32.xlu0 %v1683
        %v1685 = vpop.xlane.xlu0 %1684
        %v1686 = vsel %vm1468, %v1571, -inf
        %1687 = vmax.xlane.f32.xlu0 %v1686
        %v1688 = vpop.xlane.xlu0 %1687
        %v1689 = vsel %vm1468, %v1597, -inf
        %1690 = vmax.xlane.f32.xlu0 %v1689
        %v1691 = vpop.xlane.xlu0 %1690
        %v1692 = vsel %vm1468, %v1623, -inf
        %1693 = vmax.xlane.f32.xlu0 %v1692
        %v1694 = vpop.xlane.xlu0 %1693
        %v1695 = vsel %vm1468, %v1649, -inf
        %1696 = vmax.xlane.f32.xlu0 %v1695
        %v1697 = vpop.xlane.xlu0 %1696
        %v1698 = vsel %vm1468, %v1675, -inf
        %1699 = vmax.xlane.f32.xlu0 %v1698
        %v1700 = vpop.xlane.xlu0 %1699
        %v1701 = vsub.f32 %v1493, %v1679
        %v1702 = vsub.f32 %v1519, %v1682
        %v1703 = vsub.f32 %v1545, %v1685
        %v1704 = vsub.f32 %v1571, %v1688
        %v1705 = vsub.f32 %v1597, %v1691
        %v1706 = vsub.f32 %v1623, %v1694
        %v1707 = vsub.f32 %v1649, %v1697
        %v1708 = vsub.f32 %v1675, %v1700
        %v1709 = vmul.f32 %v1701, 1.442695
        %v1710 = vpow.pop %v1709
        %v1711 = vmul.f32 %v1702, 1.442695
        %v1712 = vpow.pop %v1711
        %v1713 = vmul.f32 %v1703, 1.442695
        %v1714 = vpow.pop %v1713
        %v1715 = vmul.f32 %v1704, 1.442695
        %v1716 = vpow.pop %v1715
        %v1717 = vmul.f32 %v1705, 1.442695
        %v1718 = vpow.pop %v1717
        %v1719 = vmul.f32 %v1706, 1.442695
        %v1720 = vpow.pop %v1719
        %v1721 = vmul.f32 %v1707, 1.442695
        %v1722 = vpow.pop %v1721
        %v1723 = vmul.f32 %v1708, 1.442695
        %v1724 = vpow.pop %v1723
        %v1725 = vsel %vm1468, %v1710, 0.0
        %1726 = vadd.xlane.f32.xlu0 %v1725
        %v1727 = vpop.xlane.xlu0 %1726
        %v1728 = vsel %vm1468, %v1712, 0.0
        %1729 = vadd.xlane.f32.xlu0 %v1728
        %v1730 = vpop.xlane.xlu0 %1729
        %v1731 = vsel %vm1468, %v1714, 0.0
        %1732 = vadd.xlane.f32.xlu0 %v1731
        %v1733 = vpop.xlane.xlu0 %1732
        %v1734 = vsel %vm1468, %v1716, 0.0
        %1735 = vadd.xlane.f32.xlu0 %v1734
        %v1736 = vpop.xlane.xlu0 %1735
        %v1737 = vsel %vm1468, %v1718, 0.0
        %1738 = vadd.xlane.f32.xlu0 %v1737
        %v1739 = vpop.xlane.xlu0 %1738
        %v1740 = vsel %vm1468, %v1720, 0.0
        %1741 = vadd.xlane.f32.xlu0 %v1740
        %v1742 = vpop.xlane.xlu0 %1741
        %v1743 = vsel %vm1468, %v1722, 0.0
        %1744 = vadd.xlane.f32.xlu0 %v1743
        %v1745 = vpop.xlane.xlu0 %1744
        %v1746 = vsel %vm1468, %v1724, 0.0
        %1747 = vadd.xlane.f32.xlu0 %v1746
        %v1748 = vpop.xlane.xlu0 %1747
        %v1749 = vrcp.pop %v1727
        %v1750 = vmul.f32 %v1727, %v1749
        %v1751 = vsub.f32 1.0, %v1750
        %v1752 = vmul.f32 %v1749, %v1751
        %v1753 = vadd.f32 %v1749, %v1752
        %vm1754 = vweird.f32 %v1727
        %vm1755 = vweird.f32 %v1749
        %vm1756 = vmor %vm1754, %vm1755
        %v1757 = vsel %vm1756, %v1749, %v1753
        %v1758 = vand.u32 2147483647, %v1727
        %vm1759 = vcmp.eq.f32.partialorder %v1758, 8.507059e+37
        %v1760 = vand.u32 %v1727, 2147483648
        %v1761 = vor.u32 1.1754944e-38, %v1760
        %v1762 = vsel %vm1759, %v1761, %v1757
        %v1763 = vmul.f32 %v1710, %v1762
        %v1764 = vrcp.pop %v1730
        %v1765 = vmul.f32 %v1730, %v1764
        %v1766 = vsub.f32 1.0, %v1765
        %v1767 = vmul.f32 %v1764, %v1766
        %v1768 = vadd.f32 %v1764, %v1767
        %vm1769 = vweird.f32 %v1730
        %vm1770 = vweird.f32 %v1764
        %vm1771 = vmor %vm1769, %vm1770
        %v1772 = vsel %vm1771, %v1764, %v1768
        %v1773 = vand.u32 2147483647, %v1730
        %vm1774 = vcmp.eq.f32.partialorder %v1773, 8.507059e+37
        %v1775 = vand.u32 %v1730, 2147483648
        %v1776 = vor.u32 1.1754944e-38, %v1775
        %v1777 = vsel %vm1774, %v1776, %v1772
        %v1778 = vmul.f32 %v1712, %v1777
        %v1779 = vrcp.pop %v1733
        %v1780 = vmul.f32 %v1733, %v1779
        %v1781 = vsub.f32 1.0, %v1780
        %v1782 = vmul.f32 %v1779, %v1781
        %v1783 = vadd.f32 %v1779, %v1782
        %vm1784 = vweird.f32 %v1733
        %vm1785 = vweird.f32 %v1779
        %vm1786 = vmor %vm1784, %vm1785
        %v1787 = vsel %vm1786, %v1779, %v1783
        %v1788 = vand.u32 2147483647, %v1733
        %vm1789 = vcmp.eq.f32.partialorder %v1788, 8.507059e+37
        %v1790 = vand.u32 %v1733, 2147483648
        %v1791 = vor.u32 1.1754944e-38, %v1790
        %v1792 = vsel %vm1789, %v1791, %v1787
        %v1793 = vmul.f32 %v1714, %v1792
        %v1794 = vrcp.pop %v1736
        %v1795 = vmul.f32 %v1736, %v1794
        %v1796 = vsub.f32 1.0, %v1795
        %v1797 = vmul.f32 %v1794, %v1796
        %v1798 = vadd.f32 %v1794, %v1797
        %vm1799 = vweird.f32 %v1736
        %vm1800 = vweird.f32 %v1794
        %vm1801 = vmor %vm1799, %vm1800
        %v1802 = vsel %vm1801, %v1794, %v1798
        %v1803 = vand.u32 2147483647, %v1736
        %vm1804 = vcmp.eq.f32.partialorder %v1803, 8.507059e+37
        %v1805 = vand.u32 %v1736, 2147483648
        %v1806 = vor.u32 1.1754944e-38, %v1805
        %v1807 = vsel %vm1804, %v1806, %v1802
        %v1808 = vmul.f32 %v1716, %v1807
        %v1809 = vrcp.pop %v1739
        %v1810 = vmul.f32 %v1739, %v1809
        %v1811 = vsub.f32 1.0, %v1810
        %v1812 = vmul.f32 %v1809, %v1811
        %v1813 = vadd.f32 %v1809, %v1812
        %vm1814 = vweird.f32 %v1739
        %vm1815 = vweird.f32 %v1809
        %vm1816 = vmor %vm1814, %vm1815
        %v1817 = vsel %vm1816, %v1809, %v1813
        %v1818 = vand.u32 2147483647, %v1739
        %vm1819 = vcmp.eq.f32.partialorder %v1818, 8.507059e+37
        %v1820 = vand.u32 %v1739, 2147483648
        %v1821 = vor.u32 1.1754944e-38, %v1820
        %v1822 = vsel %vm1819, %v1821, %v1817
        %v1823 = vmul.f32 %v1718, %v1822
        %v1824 = vrcp.pop %v1742
        %v1825 = vmul.f32 %v1742, %v1824
        %v1826 = vsub.f32 1.0, %v1825
        %v1827 = vmul.f32 %v1824, %v1826
        %v1828 = vadd.f32 %v1824, %v1827
        %vm1829 = vweird.f32 %v1742
        %vm1830 = vweird.f32 %v1824
        %vm1831 = vmor %vm1829, %vm1830
        %v1832 = vsel %vm1831, %v1824, %v1828
        %v1833 = vand.u32 2147483647, %v1742
        %vm1834 = vcmp.eq.f32.partialorder %v1833, 8.507059e+37
        %v1835 = vand.u32 %v1742, 2147483648
        %v1836 = vor.u32 1.1754944e-38, %v1835
        %v1837 = vsel %vm1834, %v1836, %v1832
        %v1838 = vmul.f32 %v1720, %v1837
        %v1839 = vrcp.pop %v1745
        %v1840 = vmul.f32 %v1745, %v1839
        %v1841 = vsub.f32 1.0, %v1840
        %v1842 = vmul.f32 %v1839, %v1841
        %v1843 = vadd.f32 %v1839, %v1842
        %vm1844 = vweird.f32 %v1745
        %vm1845 = vweird.f32 %v1839
        %vm1846 = vmor %vm1844, %vm1845
        %v1847 = vsel %vm1846, %v1839, %v1843
        %v1848 = vand.u32 2147483647, %v1745
        %vm1849 = vcmp.eq.f32.partialorder %v1848, 8.507059e+37
        %v1850 = vand.u32 %v1745, 2147483648
        %v1851 = vor.u32 1.1754944e-38, %v1850
        %v1852 = vsel %vm1849, %v1851, %v1847
        %v1853 = vmul.f32 %v1722, %v1852
        %v1854 = vrcp.pop %v1748
        %v1855 = vmul.f32 %v1748, %v1854
        %v1856 = vsub.f32 1.0, %v1855
        %v1857 = vmul.f32 %v1854, %v1856
        %v1858 = vadd.f32 %v1854, %v1857
        %vm1859 = vweird.f32 %v1748
        %vm1860 = vweird.f32 %v1854
        %vm1861 = vmor %vm1859, %vm1860
        %v1862 = vsel %vm1861, %v1854, %v1858
        %v1863 = vand.u32 2147483647, %v1748
        %vm1864 = vcmp.eq.f32.partialorder %v1863, 8.507059e+37
        %v1865 = vand.u32 %v1748, 2147483648
        %v1866 = vor.u32 1.1754944e-38, %v1865
        %v1867 = vsel %vm1864, %v1866, %v1862
        %v1868 = vmul.f32 %v1724, %v1867
        %v1870 = vsel %vm1468, %v1763, 0
        %1872 = vmatpush.msra.mxu0 0.0
        %1873 = vmatpush.msra.mxu0 0.0
        %1874 = vmatpush.msra.mxu0 0.0
        %1875 = vmatpush.msra.mxu0 0.0
        %1876 = vmatpush.msra.mxu0 0.0
        %1877 = vmatpush.msra.mxu0 0.0
        %1878 = vmatpush.msra.mxu0 0.0
        %1879 = vmatpush.msra.mxu0 0.0
        %1880 = vmatpush.msra.mxu0 0.0
        %1881 = vmatpush.msra.mxu0 0.0
        %1882 = vmatpush.msra.mxu0 0.0
        %1883 = vmatpush.msra.mxu0 0.0
        %1884 = vmatpush.msra.mxu0 0.0
        %1885 = vmatpush.msra.mxu0 0.0
        %1886 = vmatpush.msra.mxu0 0.0
        %1887 = vmatpush.msra.mxu0 %v1407
        %1888 = vmatmul.f32.gmra.mxu0 %v1870
        %v1889 = vpop.f32.mrf.mxu0
        %v1890 = vadd.f32 0.0, %v1889
        %1891 = vdwg.mxu0
        %v1893 = vsel %vm1468, %v1778, 0
        %1895 = vmatpush.msra.mxu0 0.0
        %1896 = vmatpush.msra.mxu0 0.0
        %1897 = vmatpush.msra.mxu0 0.0
        %1898 = vmatpush.msra.mxu0 0.0
        %1899 = vmatpush.msra.mxu0 0.0
        %1900 = vmatpush.msra.mxu0 0.0
        %1901 = vmatpush.msra.mxu0 0.0
        %1902 = vmatpush.msra.mxu0 0.0
        %1903 = vmatpush.msra.mxu0 0.0
        %1904 = vmatpush.msra.mxu0 0.0
        %1905 = vmatpush.msra.mxu0 0.0
        %1906 = vmatpush.msra.mxu0 0.0
        %1907 = vmatpush.msra.mxu0 0.0
        %1908 = vmatpush.msra.mxu0 0.0
        %1909 = vmatpush.msra.mxu0 0.0
        %1910 = vmatpush.msra.mxu0 %v1409
        %1911 = vmatmul.f32.gmra.mxu0 %v1893
        %v1912 = vpop.f32.mrf.mxu0
        %v1913 = vadd.f32 0.0, %v1912
        %1914 = vdwg.mxu0
        %v1916 = vsel %vm1468, %v1793, 0
        %1918 = vmatpush.msra.mxu0 0.0
        %1919 = vmatpush.msra.mxu0 0.0
        %1920 = vmatpush.msra.mxu0 0.0
        %1921 = vmatpush.msra.mxu0 0.0
        %1922 = vmatpush.msra.mxu0 0.0
        %1923 = vmatpush.msra.mxu0 0.0
        %1924 = vmatpush.msra.mxu0 0.0
        %1925 = vmatpush.msra.mxu0 0.0
        %1926 = vmatpush.msra.mxu0 0.0
        %1927 = vmatpush.msra.mxu0 0.0
        %1928 = vmatpush.msra.mxu0 0.0
        %1929 = vmatpush.msra.mxu0 0.0
        %1930 = vmatpush.msra.mxu0 0.0
        %1931 = vmatpush.msra.mxu0 0.0
        %1932 = vmatpush.msra.mxu0 0.0
        %1933 = vmatpush.msra.mxu0 %v1411
        %1934 = vmatmul.f32.gmra.mxu0 %v1916
        %v1935 = vpop.f32.mrf.mxu0
        %v1936 = vadd.f32 0.0, %v1935
        %1937 = vdwg.mxu0
        %v1939 = vsel %vm1468, %v1808, 0
        %1941 = vmatpush.msra.mxu0 0.0
        %1942 = vmatpush.msra.mxu0 0.0
        %1943 = vmatpush.msra.mxu0 0.0
        %1944 = vmatpush.msra.mxu0 0.0
        %1945 = vmatpush.msra.mxu0 0.0
        %1946 = vmatpush.msra.mxu0 0.0
        %1947 = vmatpush.msra.mxu0 0.0
        %1948 = vmatpush.msra.mxu0 0.0
        %1949 = vmatpush.msra.mxu0 0.0
        %1950 = vmatpush.msra.mxu0 0.0
        %1951 = vmatpush.msra.mxu0 0.0
        %1952 = vmatpush.msra.mxu0 0.0
        %1953 = vmatpush.msra.mxu0 0.0
        %1954 = vmatpush.msra.mxu0 0.0
        %1955 = vmatpush.msra.mxu0 0.0
        %1956 = vmatpush.msra.mxu0 %v1413
        %1957 = vmatmul.f32.gmra.mxu0 %v1939
        %v1958 = vpop.f32.mrf.mxu0
        %v1959 = vadd.f32 0.0, %v1958
        %1960 = vdwg.mxu0
        %v1962 = vsel %vm1468, %v1823, 0
        %1964 = vmatpush.msra.mxu0 0.0
        %1965 = vmatpush.msra.mxu0 0.0
        %1966 = vmatpush.msra.mxu0 0.0
        %1967 = vmatpush.msra.mxu0 0.0
        %1968 = vmatpush.msra.mxu0 0.0
        %1969 = vmatpush.msra.mxu0 0.0
        %1970 = vmatpush.msra.mxu0 0.0
        %1971 = vmatpush.msra.mxu0 0.0
        %1972 = vmatpush.msra.mxu0 0.0
        %1973 = vmatpush.msra.mxu0 0.0
        %1974 = vmatpush.msra.mxu0 0.0
        %1975 = vmatpush.msra.mxu0 0.0
        %1976 = vmatpush.msra.mxu0 0.0
        %1977 = vmatpush.msra.mxu0 0.0
        %1978 = vmatpush.msra.mxu0 0.0
        %1979 = vmatpush.msra.mxu0 %v1461
        %1980 = vmatmul.f32.gmra.mxu0 %v1962
        %v1981 = vpop.f32.mrf.mxu0
        %v1982 = vadd.f32 0.0, %v1981
        %1983 = vdwg.mxu0
        %v1985 = vsel %vm1468, %v1838, 0
        %1987 = vmatpush.msra.mxu0 0.0
        %1988 = vmatpush.msra.mxu0 0.0
        %1989 = vmatpush.msra.mxu0 0.0
        %1990 = vmatpush.msra.mxu0 0.0
        %1991 = vmatpush.msra.mxu0 0.0
        %1992 = vmatpush.msra.mxu0 0.0
        %1993 = vmatpush.msra.mxu0 0.0
        %1994 = vmatpush.msra.mxu0 0.0
        %1995 = vmatpush.msra.mxu0 0.0
        %1996 = vmatpush.msra.mxu0 0.0
        %1997 = vmatpush.msra.mxu0 0.0
        %1998 = vmatpush.msra.mxu0 0.0
        %1999 = vmatpush.msra.mxu0 0.0
        %2000 = vmatpush.msra.mxu0 0.0
        %2001 = vmatpush.msra.mxu0 0.0
        %2002 = vmatpush.msra.mxu0 %v1463
        %2003 = vmatmul.f32.gmra.mxu0 %v1985
        %v2004 = vpop.f32.mrf.mxu0
        %v2005 = vadd.f32 0.0, %v2004
        %2006 = vdwg.mxu0
        %v2008 = vsel %vm1468, %v1853, 0
        %2010 = vmatpush.msra.mxu0 0.0
        %2011 = vmatpush.msra.mxu0 0.0
        %2012 = vmatpush.msra.mxu0 0.0
        %2013 = vmatpush.msra.mxu0 0.0
        %2014 = vmatpush.msra.mxu0 0.0
        %2015 = vmatpush.msra.mxu0 0.0
        %2016 = vmatpush.msra.mxu0 0.0
        %2017 = vmatpush.msra.mxu0 0.0
        %2018 = vmatpush.msra.mxu0 0.0
        %2019 = vmatpush.msra.mxu0 0.0
        %2020 = vmatpush.msra.mxu0 0.0
        %2021 = vmatpush.msra.mxu0 0.0
        %2022 = vmatpush.msra.mxu0 0.0
        %2023 = vmatpush.msra.mxu0 0.0
        %2024 = vmatpush.msra.mxu0 0.0
        %2025 = vmatpush.msra.mxu0 %v1465
        %2026 = vmatmul.f32.gmra.mxu0 %v2008
        %v2027 = vpop.f32.mrf.mxu0
        %v2028 = vadd.f32 0.0, %v2027
        %2029 = vdwg.mxu0
        %v2031 = vsel %vm1468, %v1868, 0
        %2033 = vmatpush.msra.mxu0 0.0
        %2034 = vmatpush.msra.mxu0 0.0
        %2035 = vmatpush.msra.mxu0 0.0
        %2036 = vmatpush.msra.mxu0 0.0
        %2037 = vmatpush.msra.mxu0 0.0
        %2038 = vmatpush.msra.mxu0 0.0
        %2039 = vmatpush.msra.mxu0 0.0
        %2040 = vmatpush.msra.mxu0 0.0
        %2041 = vmatpush.msra.mxu0 0.0
        %2042 = vmatpush.msra.mxu0 0.0
        %2043 = vmatpush.msra.mxu0 0.0
        %2044 = vmatpush.msra.mxu0 0.0
        %2045 = vmatpush.msra.mxu0 0.0
        %2046 = vmatpush.msra.mxu0 0.0
        %2047 = vmatpush.msra.mxu0 0.0
        %2048 = vmatpush.msra.mxu0 %v1467
        %2049 = vmatmul.f32.gmra.mxu0 %v2031
        %v2050 = vpop.f32.mrf.mxu0
        %v2051 = vadd.f32 0.0, %v2050
        %2052 = vdwg.mxu0
        %v2053 = vrot.slane %v1936, 4
        %v2054 = vsel %vm768, %v2053, %v1890
        %v2055 = vrot.slane %v1890, 4
        %v2056 = vsel %vm768, %v1936, %v2055
        %v2058 = vunpack.c.l.s4 1983009808
        %v2059 = vunpack.c.0.s8 %v2058
        %v2060 = vperm.slane %v2054, %v2059
        %v2062 = vunpack.c.l.s4 1983009808
        %v2063 = vunpack.c.0.s8 %v2062
        %v2064 = vperm.slane %v2056, %v2063
        %v2065 = vrot.slane %v1959, 4
        %v2066 = vsel %vm768, %v2065, %v1913
        %v2067 = vrot.slane %v1913, 4
        %v2068 = vsel %vm768, %v1959, %v2067
        %v2070 = vunpack.c.l.s4 1983009808
        %v2071 = vunpack.c.0.s8 %v2070
        %v2072 = vperm.slane %v2066, %v2071
        %v2074 = vunpack.c.l.s4 1983009808
        %v2075 = vunpack.c.0.s8 %v2074
        %v2076 = vperm.slane %v2068, %v2075
        %v2077 = vrot.slane %v2072, 4
        %v2078 = vsel %vm768, %v2077, %v2060
        %v2079 = vrot.slane %v2060, 4
        %v2080 = vsel %vm768, %v2072, %v2079
        %v2082 = vunpack.c.l.s4 1934713408
        %v2083 = vunpack.c.0.s8 %v2082
        %v2084 = vperm.slane %v2078, %v2083
        %v2086 = vunpack.c.l.s4 1934713408
        %v2087 = vunpack.c.0.s8 %v2086
        %v2088 = vperm.slane %v2080, %v2087
        %v2089 = vrot.slane %v2076, 4
        %v2090 = vsel %vm768, %v2089, %v2064
        %v2091 = vrot.slane %v2064, 4
        %v2092 = vsel %vm768, %v2076, %v2091
        %v2094 = vunpack.c.l.s4 1934713408
        %v2095 = vunpack.c.0.s8 %v2094
        %v2096 = vperm.slane %v2090, %v2095
        %v2098 = vunpack.c.l.s4 1934713408
        %v2099 = vunpack.c.0.s8 %v2098
        %v2100 = vperm.slane %v2092, %v2099
        %v2101 = vrot.slane %v2084, 4
        %v2102 = vsel %vm768, 0.0, %v2101
        %v2103 = vrot.slane %v2088, 4
        %v2104 = vsel %vm768, 0.0, %v2103
        %v2105 = vrot.slane %v2096, 4
        %v2106 = vsel %vm768, 0.0, %v2105
        %v2107 = vrot.slane %v2100, 4
        %v2108 = vsel %vm768, 0.0, %v2107
        %v2109 = vrot.slane %v2028, 4
        %v2110 = vsel %vm768, %v2109, %v1982
        %v2111 = vrot.slane %v1982, 4
        %v2112 = vsel %vm768, %v2028, %v2111
        %v2114 = vunpack.c.l.s4 1983009808
        %v2115 = vunpack.c.0.s8 %v2114
        %v2116 = vperm.slane %v2110, %v2115
        %v2118 = vunpack.c.l.s4 1983009808
        %v2119 = vunpack.c.0.s8 %v2118
        %v2120 = vperm.slane %v2112, %v2119
        %v2121 = vrot.slane %v2051, 4
        %v2122 = vsel %vm768, %v2121, %v2005
        %v2123 = vrot.slane %v2005, 4
        %v2124 = vsel %vm768, %v2051, %v2123
        %v2126 = vunpack.c.l.s4 1983009808
        %v2127 = vunpack.c.0.s8 %v2126
        %v2128 = vperm.slane %v2122, %v2127
        %v2130 = vunpack.c.l.s4 1983009808
        %v2131 = vunpack.c.0.s8 %v2130
        %v2132 = vperm.slane %v2124, %v2131
        %v2133 = vrot.slane %v2128, 4
        %v2134 = vsel %vm768, %v2133, %v2116
        %v2135 = vrot.slane %v2116, 4
        %v2136 = vsel %vm768, %v2128, %v2135
        %v2138 = vunpack.c.l.s4 1934713408
        %v2139 = vunpack.c.0.s8 %v2138
        %v2140 = vperm.slane %v2134, %v2139
        %v2142 = vunpack.c.l.s4 1934713408
        %v2143 = vunpack.c.0.s8 %v2142
        %v2144 = vperm.slane %v2136, %v2143
        %v2145 = vrot.slane %v2132, 4
        %v2146 = vsel %vm768, %v2145, %v2120
        %v2147 = vrot.slane %v2120, 4
        %v2148 = vsel %vm768, %v2132, %v2147
        %v2150 = vunpack.c.l.s4 1934713408
        %v2151 = vunpack.c.0.s8 %v2150
        %v2152 = vperm.slane %v2146, %v2151
        %v2154 = vunpack.c.l.s4 1934713408
        %v2155 = vunpack.c.0.s8 %v2154
        %v2156 = vperm.slane %v2148, %v2155
        %v2157 = vrot.slane %v2140, 4
        %v2158 = vsel %vm768, 0.0, %v2157
        %v2159 = vrot.slane %v2144, 4
        %v2160 = vsel %vm768, 0.0, %v2159
        %v2161 = vrot.slane %v2152, 4
        %v2162 = vsel %vm768, 0.0, %v2161
        %v2163 = vrot.slane %v2156, 4
        %v2164 = vsel %vm768, 0.0, %v2163
        %v2165 = vsel %vm768, %v2103, %v2084
        %v2167 = vunpack.c.l.s4 1983009808
        %v2168 = vunpack.c.0.s8 %v2167
        %v2169 = vperm.slane %v2165, %v2168
        %v2170 = vrot.slane %v2104, 4
        %v2171 = vsel %vm768, %v2170, %v2102
        %v2173 = vunpack.c.l.s4 1983009808
        %v2174 = vunpack.c.0.s8 %v2173
        %v2175 = vperm.slane %v2171, %v2174
        %v2176 = vsel %vm768, %v2107, %v2096
        %v2178 = vunpack.c.l.s4 1983009808
        %v2179 = vunpack.c.0.s8 %v2178
        %v2180 = vperm.slane %v2176, %v2179
        %v2181 = vrot.slane %v2108, 4
        %v2182 = vsel %vm768, %v2181, %v2106
        %v2184 = vunpack.c.l.s4 1983009808
        %v2185 = vunpack.c.0.s8 %v2184
        %v2186 = vperm.slane %v2182, %v2185
        %v2187 = vrot.slane %v2175, 4
        %v2188 = vsel %vm768, %v2187, %v2169
        %v2189 = vrot.slane %v2169, 4
        %v2190 = vsel %vm768, %v2175, %v2189
        %v2192 = vunpack.c.l.s4 1934713408
        %v2193 = vunpack.c.0.s8 %v2192
        %v2194 = vperm.slane %v2188, %v2193
        %v2196 = vunpack.c.l.s4 1934713408
        %v2197 = vunpack.c.0.s8 %v2196
        %v2198 = vperm.slane %v2190, %v2197
        %v2199 = vrot.slane %v2186, 4
        %v2200 = vsel %vm768, %v2199, %v2180
        %v2201 = vrot.slane %v2180, 4
        %v2202 = vsel %vm768, %v2186, %v2201
        %v2204 = vunpack.c.l.s4 1934713408
        %v2205 = vunpack.c.0.s8 %v2204
        %v2206 = vperm.slane %v2200, %v2205
        %v2208 = vunpack.c.l.s4 1934713408
        %v2209 = vunpack.c.0.s8 %v2208
        %v2210 = vperm.slane %v2202, %v2209
        %v2211 = vrot.slane %v2206, 4
        %v2212 = vsel %vm768, %v2211, %v2194
        %v2213 = vrot.slane %v2194, 4
        %v2214 = vsel %vm768, %v2206, %v2213
        %v2215 = vrot.slane %v2210, 4
        %v2216 = vsel %vm768, %v2215, %v2198
        %v2217 = vrot.slane %v2198, 4
        %v2218 = vsel %vm768, %v2210, %v2217
        %v2219 = vsel %vm768, %v2159, %v2140
        %v2221 = vunpack.c.l.s4 1983009808
        %v2222 = vunpack.c.0.s8 %v2221
        %v2223 = vperm.slane %v2219, %v2222
        %v2224 = vrot.slane %v2160, 4
        %v2225 = vsel %vm768, %v2224, %v2158
        %v2227 = vunpack.c.l.s4 1983009808
        %v2228 = vunpack.c.0.s8 %v2227
        %v2229 = vperm.slane %v2225, %v2228
        %v2230 = vsel %vm768, %v2163, %v2152
        %v2232 = vunpack.c.l.s4 1983009808
        %v2233 = vunpack.c.0.s8 %v2232
        %v2234 = vperm.slane %v2230, %v2233
        %v2235 = vrot.slane %v2164, 4
        %v2236 = vsel %vm768, %v2235, %v2162
        %v2238 = vunpack.c.l.s4 1983009808
        %v2239 = vunpack.c.0.s8 %v2238
        %v2240 = vperm.slane %v2236, %v2239
        %v2241 = vrot.slane %v2229, 4
        %v2242 = vsel %vm768, %v2241, %v2223
        %v2243 = vrot.slane %v2223, 4
        %v2244 = vsel %vm768, %v2229, %v2243
        %v2246 = vunpack.c.l.s4 1934713408
        %v2247 = vunpack.c.0.s8 %v2246
        %v2248 = vperm.slane %v2242, %v2247
        %v2250 = vunpack.c.l.s4 1934713408
        %v2251 = vunpack.c.0.s8 %v2250
        %v2252 = vperm.slane %v2244, %v2251
        %v2253 = vrot.slane %v2240, 4
        %v2254 = vsel %vm768, %v2253, %v2234
        %v2255 = vrot.slane %v2234, 4
        %v2256 = vsel %vm768, %v2240, %v2255
        %v2258 = vunpack.c.l.s4 1934713408
        %v2259 = vunpack.c.0.s8 %v2258
        %v2260 = vperm.slane %v2254, %v2259
        %v2262 = vunpack.c.l.s4 1934713408
        %v2263 = vunpack.c.0.s8 %v2262
        %v2264 = vperm.slane %v2256, %v2263
        %v2265 = vrot.slane %v2260, 4
        %v2266 = vsel %vm768, %v2265, %v2248
        %v2267 = vrot.slane %v2248, 4
        %v2268 = vsel %vm768, %v2260, %v2267
        %v2269 = vrot.slane %v2264, 4
        %v2270 = vsel %vm768, %v2269, %v2252
        %v2271 = vrot.slane %v2252, 4
        %v2272 = vsel %vm768, %v2264, %v2271
        %2275 = vrot.lane.b32.xlu0 %v2214, 8
        %v2276 = vpop.permute.xlu0 %2275
        %2277 = vrot.lane.b32.xlu0 %v2268, 8
        %v2278 = vpop.permute.xlu0 %2277
        %2283 = vrot.lane.b32.xlu0 %v2216, 16
        %v2284 = vpop.permute.xlu0 %2283
        %2285 = vrot.lane.b32.xlu0 %v2270, 16
        %v2286 = vpop.permute.xlu0 %2285
        %2291 = vrot.lane.b32.xlu0 %v2218, 24
        %v2292 = vpop.permute.xlu0 %2291
        %2293 = vrot.lane.b32.xlu0 %v2272, 24
        %v2294 = vpop.permute.xlu0 %2293
        %v2297 = vsel %vm1468, %v2212, %v2276
        %v2298 = vsel %vm1468, %v2266, %v2278
        %vm2299 = vcmask 130048
        %v2300 = vsel %vm2299, %v2297, %v2284
        %v2301 = vsel %vm2299, %v2298, %v2286
        %vm2302 = vcmask 195584
        %v2303 = vsel %vm2302, %v2300, %v2292
        %v2304 = vsel %vm2302, %v2301, %v2294
        %v2305 = vld [vmem:[%s9] sm:$0xff]
        %v2306 = vld [vmem:[%s9 + $0x8] sm:$0xff]
        %v2307 = vld [vmem:[%s9 + $0x10] sm:$0xff]
        %v2308 = vld [vmem:[%s9 + $0x18] sm:$0xff]
        %v2309 = vld [vmem:[%s10] sm:$0x1]
        %v2311 = vperm.slane %v2309, 0
        %v2314 = vsel %vm584, %v2303, 0
        %v2317 = vsel %vm584, %v2304, 0
        %2319 = vmatpush.msra.mxu0 0.0
        %2320 = vmatpush.msra.mxu0 0.0
        %2321 = vmatpush.msra.mxu0 0.0
        %2322 = vmatpush.msra.mxu0 0.0
        %2323 = vmatpush.msra.mxu0 0.0
        %2324 = vmatpush.msra.mxu0 0.0
        %2325 = vmatpush.msra.mxu0 0.0
        %2326 = vmatpush.msra.mxu0 0.0
        %2327 = vmatpush.msra.mxu0 0.0
        %2328 = vmatpush.msra.mxu0 0.0
        %2329 = vmatpush.msra.mxu0 0.0
        %2330 = vmatpush.msra.mxu0 0.0
        %2331 = vmatpush.msra.mxu0 %v2308
        %2332 = vmatpush.msra.mxu0 %v2307
        %2333 = vmatpush.msra.mxu0 %v2306
        %2334 = vmatpush.msra.mxu0 %v2305
        %2335 = vmatmul.f32.gmra.mxu0 %v2314
        %v2336 = vpop.f32.mrf.mxu0
        %v2337 = vadd.f32 %v2311, %v2336
        %2338 = vmatmul.f32.gmra.mxu0 %v2317
        %v2339 = vpop.f32.mrf.mxu0
        %v2340 = vadd.f32 %v2311, %v2339
        %2341 = vdwg.mxu0
        %v2342 = vadd.f32 %v582, %v2337
        %v2343 = vadd.f32 %v583, %v2340
        %v2344 = vsel %vm584, %v2342, 0.0
        %2345 = vadd.xlane.f32.xlu0 %v2344
        %v2346 = vpop.xlane.xlu0 %2345
        %v2347 = vsel %vm584, %v2343, 0.0
        %2348 = vadd.xlane.f32.xlu0 %v2347
        %v2349 = vpop.xlane.xlu0 %2348
        %v2350 = vmul.f32 %v2346, %v597
        %v2351 = vmul.f32 %v2349, %v597
        %v2352 = vsub.f32 %v2342, %v2350
        %v2353 = vsub.f32 %v2343, %v2351
        %v2354 = vmul.f32 %v2352, %v2352
        %v2355 = vmul.f32 %v2353, %v2353
        %v2356 = vsel %vm584, %v2354, 0.0
        %2357 = vadd.xlane.f32.xlu0 %v2356
        %v2358 = vpop.xlane.xlu0 %2357
        %v2359 = vsel %vm584, %v2355, 0.0
        %2360 = vadd.xlane.f32.xlu0 %v2359
        %v2361 = vpop.xlane.xlu0 %2360
        %v2362 = vmul.f32 %v2358, %v597
        %v2363 = vmul.f32 %v2361, %v597
        %v2364 = vadd.f32 %v2362, 1e-05
        %v2365 = vadd.f32 %v2363, 1e-05
        %v2366 = vrsqrt.pop %v2364
        %v2367 = vmul.f32 %v2366, %v2364
        %v2368 = vmul.f32 %v2367, %v2366
        %v2369 = vmul.f32 0.5, %v2368
        %v2370 = vsub.f32 1.5, %v2369
        %v2371 = vmul.f32 %v2366, %v2370
        %vm2372 = vweird.f32 %v2364
        %vm2373 = vweird.f32 %v2366
        %vm2374 = vmor %vm2372, %vm2373
        %v2375 = vsel %vm2374, %v2366, %v2371
        %v2376 = vrsqrt.pop %v2365
        %v2377 = vmul.f32 %v2376, %v2365
        %v2378 = vmul.f32 %v2377, %v2376
        %v2379 = vmul.f32 0.5, %v2378
        %v2380 = vsub.f32 1.5, %v2379
        %v2381 = vmul.f32 %v2376, %v2380
        %vm2382 = vweird.f32 %v2365
        %vm2383 = vweird.f32 %v2376
        %vm2384 = vmor %vm2382, %vm2383
        %v2385 = vsel %vm2384, %v2376, %v2381
        %v2386 = vmul.f32 %v2352, %v2375
        %v2387 = vmul.f32 %v2353, %v2385
        %v2388 = vld [vmem:[%s11] sm:$0x1]
        %v2390 = vperm.slane %v2388, 0
        %v2392 = vmul.f32 %v2386, %v2390
        %v2393 = vmul.f32 %v2387, %v2390
        %v2394 = vld [vmem:[%s12] sm:$0x1]
        %v2396 = vperm.slane %v2394, 0
        %v2398 = vadd.f32 %v2392, %v2396
        %v2399 = vadd.f32 %v2393, %v2396
        %v2400 = vld [vmem:[#allocation5] sm:$0xff]
        %v2401 = vld [vmem:[#allocation5 + $0x8] sm:$0xff]
        %v2402 = vld [vmem:[#allocation5 + $0x10] sm:$0xff]
        %v2403 = vld [vmem:[#allocation5 + $0x18] sm:$0xff]
        %v2404 = vld [vmem:[%s14] sm:$0x1]
        %v2406 = vperm.slane %v2404, 0
        %v2409 = vsel %vm584, %v2398, 0
        %v2412 = vsel %vm584, %v2399, 0
        %2414 = vmatpush.msra.mxu0 0.0
        %2415 = vmatpush.msra.mxu0 0.0
        %2416 = vmatpush.msra.mxu0 0.0
        %2417 = vmatpush.msra.mxu0 0.0
        %2418 = vmatpush.msra.mxu0 0.0
        %2419 = vmatpush.msra.mxu0 0.0
        %2420 = vmatpush.msra.mxu0 0.0
        %2421 = vmatpush.msra.mxu0 0.0
        %2422 = vmatpush.msra.mxu0 0.0
        %2423 = vmatpush.msra.mxu0 0.0
        %2424 = vmatpush.msra.mxu0 0.0
        %2425 = vmatpush.msra.mxu0 0.0
        %2426 = vmatpush.msra.mxu0 %v2403
        %2427 = vmatpush.msra.mxu0 %v2402
        %2428 = vmatpush.msra.mxu0 %v2401
        %2429 = vmatpush.msra.mxu0 %v2400
        %2430 = vmatmul.f32.gmra.mxu0 %v2409
        %v2431 = vpop.f32.mrf.mxu0
        %v2432 = vadd.f32 %v2406, %v2431
        %2433 = vmatmul.f32.gmra.mxu0 %v2412
        %v2434 = vpop.f32.mrf.mxu0
        %v2435 = vadd.f32 %v2406, %v2434
        %2436 = vdwg.mxu0
        %v2437 = vmul.f32 %v2432, 1.702
        %v2438 = vmul.f32 %v2435, 1.702
        %v2439 = vxor.u32 %v2437, 2147483648
        %v2440 = vxor.u32 %v2438, 2147483648
        %v2441 = vmul.f32 %v2439, 1.442695
        %v2442 = vpow.pop %v2441
        %v2443 = vmul.f32 %v2440, 1.442695
        %v2444 = vpow.pop %v2443
        %v2445 = vadd.f32 %v2442, 1.0
        %v2446 = vadd.f32 %v2444, 1.0
        %v2447 = vrcp.pop %v2445
        %v2448 = vmul.f32 %v2445, %v2447
        %v2449 = vsub.f32 1.0, %v2448
        %v2450 = vmul.f32 %v2447, %v2449
        %v2451 = vadd.f32 %v2447, %v2450
        %vm2452 = vweird.f32 %v2445
        %vm2453 = vweird.f32 %v2447
        %vm2454 = vmor %vm2452, %vm2453
        %v2455 = vsel %vm2454, %v2447, %v2451
        %v2456 = vand.u32 2147483647, %v2445
        %vm2457 = vcmp.eq.f32.partialorder %v2456, 8.507059e+37
        %v2458 = vand.u32 %v2445, 2147483648
        %v2459 = vor.u32 1.1754944e-38, %v2458
        %v2460 = vsel %vm2457, %v2459, %v2455
        %v2461 = vmul.f32 1.0, %v2460
        %v2462 = vrcp.pop %v2446
        %v2463 = vmul.f32 %v2446, %v2462
        %v2464 = vsub.f32 1.0, %v2463
        %v2465 = vmul.f32 %v2462, %v2464
        %v2466 = vadd.f32 %v2462, %v2465
        %vm2467 = vweird.f32 %v2446
        %vm2468 = vweird.f32 %v2462
        %vm2469 = vmor %vm2467, %vm2468
        %v2470 = vsel %vm2469, %v2462, %v2466
        %v2471 = vand.u32 2147483647, %v2446
        %vm2472 = vcmp.eq.f32.partialorder %v2471, 8.507059e+37
        %v2473 = vand.u32 %v2446, 2147483648
        %v2474 = vor.u32 1.1754944e-38, %v2473
        %v2475 = vsel %vm2472, %v2474, %v2470
        %v2476 = vmul.f32 1.0, %v2475
        %v2477 = vmul.f32 %v2432, %v2461
        %v2478 = vmul.f32 %v2435, %v2476
        %v2479 = vld [vmem:[%s15] sm:$0xff]
        %v2480 = vld [vmem:[%s15 + $0x8] sm:$0xff]
        %v2481 = vld [vmem:[%s15 + $0x10] sm:$0xff]
        %v2482 = vld [vmem:[%s15 + $0x18] sm:$0xff]
        %v2483 = vld [vmem:[%s15 + $0x20] sm:$0xff]
        %v2484 = vld [vmem:[%s15 + $0x28] sm:$0xff]
        %v2485 = vld [vmem:[%s15 + $0x30] sm:$0xff]
        %v2486 = vld [vmem:[%s15 + $0x38] sm:$0xff]
        %v2487 = vld [vmem:[%s15 + $0x40] sm:$0xff]
        %v2488 = vld [vmem:[%s15 + $0x48] sm:$0xff]
        %v2489 = vld [vmem:[%s15 + $0x50] sm:$0xff]
        %v2490 = vld [vmem:[%s15 + $0x58] sm:$0xff]
        %v2491 = vld [vmem:[%s15 + $0x60] sm:$0xff]
        %v2492 = vld [vmem:[%s15 + $0x68] sm:$0xff]
        %v2493 = vld [vmem:[%s15 + $0x70] sm:$0xff]
        %v2494 = vld [vmem:[%s15 + $0x78] sm:$0xff]
        %v2495 = vld [vmem:[%s16] sm:$0x1]
        %v2497 = vperm.slane %v2495, 0
        %2499 = vmatpush.msra.mxu0 %v2494
        %2500 = vmatpush.msra.mxu0 %v2493
        %2501 = vmatpush.msra.mxu0 %v2492
        %2502 = vmatpush.msra.mxu0 %v2491
        %2503 = vmatpush.msra.mxu0 %v2490
        %2504 = vmatpush.msra.mxu0 %v2489
        %2505 = vmatpush.msra.mxu0 %v2488
        %2506 = vmatpush.msra.mxu0 %v2487
        %2507 = vmatpush.msra.mxu0 %v2486
        %2508 = vmatpush.msra.mxu0 %v2485
        %2509 = vmatpush.msra.mxu0 %v2484
        %2510 = vmatpush.msra.mxu0 %v2483
        %2511 = vmatpush.msra.mxu0 %v2482
        %2512 = vmatpush.msra.mxu0 %v2481
        %2513 = vmatpush.msra.mxu0 %v2480
        %2514 = vmatpush.msra.mxu0 %v2479
        %2515 = vmatmul.f32.gmra.mxu0 %v2477
        %v2516 = vpop.f32.mrf.mxu0
        %v2517 = vadd.f32 %v2497, %v2516
        %2518 = vmatmul.f32.gmra.mxu0 %v2478
        %v2519 = vpop.f32.mrf.mxu0
        %v2520 = vadd.f32 %v2497, %v2519
        %2521 = vdwg.mxu0
        %v2522 = vadd.f32 %v2342, %v2517
        %v2523 = vadd.f32 %v2343, %v2520
        %2524 = vst.msk [vmem:[%s574] sm:$0xff] %vm584, %v2522
        %2525 = vst.msk [vmem:[%s574 + $0x8] sm:$0xff] %vm584, %v2523
        %s2526 = sand.u32 %s403, 1
        %s2527 = scalar_lea.sflag [#allocation4], %s2526
        %s2528 = sand.u32 %s403, 1
        %s2529 = smul.addr %s2528, 16
        %s2530 = scalar_lea.vmem [#allocation7], %s2529
        // Predicated region
        $region97: #{tpu_custom_call.1} parent=87 // pred_check
          %p2531 = pneg %p413
        $region98: #{tpu_custom_call.1} parent=87 // pred_check_branch
          %2533 = sbr.rel (%p2531) target = $region100
        $region99: #{tpu_custom_call.1} parent=87 // pred_region
          %s2534 = smul.u32 2, %s33
          %2536 = vsyncadd %s2527, 0
          %s2537 = smul.addr %s2534, 8
          %s2538 = scalar_lea.hbm %s17, %s2537
          %s2539 = sshll.u32 %s2530, 4
          %s2540 = int_to_ptr.vmem [resolvable:$true] %s2539
          %s2541 = sshll.u32 %s2538, 4
          %s2542 = int_to_ptr.hbm [resolvable:$true] %s2541
          %2547 = dma.vmem_to_hbm [thread:$0]  %s2540, 256, %s2542, %s2527, 128, 128, 8
        $region100: #{tpu_custom_call.1} parent=87 // pred_fallthru
          _
      $region88: #{tpu_custom_call.1} parent=5 // pred_fallthru
        _
      %p2548 = scmp.le.s32.totalorder 2, %s28
      // Predicated region
      $region101: #{tpu_custom_call.1} parent=5 // pred_check
        %p2549 = pneg %p2548
      $region102: #{tpu_custom_call.1} parent=5 // pred_check_branch
        %2551 = sbr.rel (%p2549) target = $region104
      $region103: #{tpu_custom_call.1} parent=5 // pred_region
        %s2552 = ssub.s32 %s28, 2
        // Predicated region
        $region105: #{tpu_custom_call.1} parent=103 // pred_check
          %p2553 = pneg %p419
        $region106: #{tpu_custom_call.1} parent=103 // pred_check_branch
          %2555 = sbr.rel (%p2553) target = $region108
        $region107: #{tpu_custom_call.1} parent=103 // pred_region
          %s2556 = sand.u32 %s404, 1
          %s2557 = scalar_lea.sflag [#allocation4], %s2556
          %s2558 = sand.u32 %s404, 1
          %s2559 = smul.addr %s2558, 16
          %s2560 = scalar_lea.vmem [#allocation7], %s2559
          %2562 = dma.done %s2557, 256
        $region108: #{tpu_custom_call.1} parent=103 // pred_fallthru
          _
      $region104: #{tpu_custom_call.1} parent=5 // pred_fallthru
        _
    $region6: #{tpu_custom_call.1} parent=1 // loop_footer
      %s32 = sadd.s32 1, %s28
    $region7: #{tpu_custom_call.1} parent=1 // loop_footer_branch
      %27 = sbr.rel target = $region3
    $region8: #{tpu_custom_call.1} parent=1 // loop_exit
      _
    %2563 = vsyncpa [#allocation3], 1
    %s2564 = scalar_lea.sflag [#allocation3], 1
    %2565 = vsyncpa %s2564, 1
    %2566 = vsyncpa [#allocation6], 1
    %2567 = vsyncpa [#allocation4], 1
    %s2568 = scalar_lea.sflag [#allocation4], 1
    %2569 = vsyncpa %s2568, 1

</llo_original>
